<compile_context>
chip_gen: v7x
topology: tpu7x:2x2x1
jax: 0.10.0
libtpu: 0.0.40
codegen_flags: <defaults>
</compile_context>

<pallas_src>
import math

import jax
import jax.numpy as jnp
import numpy as np
from jax.experimental import pallas as pl
from jax.experimental.pallas import tpu as pltpu


def _multi_phlp_kernel(alpha_ref,            # SMEM (M,)   softmax(alpha)
                       x_ref,                # VMEM (TN, M*H); head i in lanes [i*H,(i+1)*H)
                       w1_ref, b1_ref,       # (M, H, H), (M, 1, H)
                       w2_ref, b2_ref,       # (M, H, H), (M, 1, H)
                       w3_ref, b3_ref,       # (M, 1, H), (M, 1)
                       res_ref,              # (M, TN)  per-head sigmoid, N on lanes
                       out_ref):             # (1, TN)  blended + clamped output
    M, H, _ = w1_ref.shape
    TN = x_ref.shape[0]
    acc = jnp.zeros((TN,), jnp.float32)

    for i in range(M):                        # M is tiny & static -> fully unrolled
        xi = x_ref[:, i * H:(i + 1) * H]                                   # (TN, H)
        h = jnp.dot(xi.astype(jnp.bfloat16), w1_ref[i].astype(jnp.bfloat16),
                    preferred_element_type=jnp.float32) + b1_ref[i]
        h = jnp.maximum(h, 0.0)                                            # ReLU
        # dropout == identity (eval mode)
        h = jnp.dot(h.astype(jnp.bfloat16), w2_ref[i].astype(jnp.bfloat16),
                    preferred_element_type=jnp.float32) + b2_ref[i]
        h = jnp.maximum(h, 0.0)
        # Third linear (H -> 1): VPU multiply + XLU lane reduce (MXU-free tail).
        logit = jnp.sum(h * w3_ref[i], axis=-1) + b3_ref[i]                # (TN,)
        sig = jax.nn.sigmoid(logit)
        res_ref[i, :] = sig
        acc = acc + alpha_ref[i] * sig                                     # fused blend

    out_ref[0, :] = jnp.clip(acc, 0.0, 1.0)


def multi_phlp_forward(x, params, alpha):
    """x: (N, M, H) float32.  Returns (out (N,), result (N, M)) like PyTorch."""
    N, M, H = x.shape
    w1, b1, w2, b2, w3, b3 = params

    alpha_soft = jax.nn.softmax(alpha).astype(jnp.float32)   # (M,), trivial

    # Lane-aligned tiling over N.  Weights stay pinned in VMEM (constant index
    # map -> no re-DMA); x tiles double-buffer against them.
    TN = 512 if N >= 512 else 128
    Np = ((N + TN - 1) // TN) * TN

    x2 = x.reshape(N, M * H)            # contiguous collapse, no HBM transpose
    if Np != N:
        x2 = jnp.pad(x2, ((0, Np - N), (0, 0)))

    flops = 2 * Np * M * (2 * H * H + H)
    bytes_accessed = 4 * (Np * M * H                         # x
                          + 2 * M * H * H + 2 * M * H        # w1/w2 + b1/b2
                          + M * H + M                        # w3 + b3
                          + M * Np + Np)                     # outputs
    cost = pl.CostEstimate(flops=int(flops),
                           transcendentals=int(Np * M),
                           bytes_accessed=int(bytes_accessed))

    res_mn, out_row = pl.pallas_call(
        _multi_phlp_kernel,
        out_shape=(jax.ShapeDtypeStruct((M, Np), jnp.float32),
                   jax.ShapeDtypeStruct((1, Np), jnp.float32)),
        grid=(Np // TN,),
        in_specs=[
            pl.BlockSpec(memory_space=pltpu.MemorySpace.SMEM),   # softmax(alpha)
            pl.BlockSpec((TN, M * H), lambda n: (n, 0)),         # x tile (pipelined)
            pl.BlockSpec((M, H, H), lambda n: (0, 0, 0)),        # w1 (pinned)
            pl.BlockSpec((M, 1, H), lambda n: (0, 0, 0)),        # b1
            pl.BlockSpec((M, H, H), lambda n: (0, 0, 0)),        # w2 (pinned)
            pl.BlockSpec((M, 1, H), lambda n: (0, 0, 0)),        # b2
            pl.BlockSpec((M, 1, H), lambda n: (0, 0, 0)),        # w3
            pl.BlockSpec((M, 1), lambda n: (0, 0)),              # b3
        ],
        out_specs=(
            pl.BlockSpec((M, TN), lambda n: (0, n)),             # per-head sigmoid
            pl.BlockSpec((1, TN), lambda n: (0, n)),             # blended out
        ),
        compiler_params=pltpu.CompilerParams(
            dimension_semantics=("parallel",)),                  # v7x megacore
        cost_estimate=cost,
    )(alpha_soft, x2, w1, b1, w2, b2, w3, b3)

    result = res_mn[:, :N].T                    # (N, M) PyTorch layout
    out = out_row[0, :N]                        # (N,)
    return out, result


def init_params(key, M, H):
    """Deterministic PyTorch-Linear-style uniform init; W stored as (in, out),
    last layer stored as a row (M, 1, H) for the VPU reduce."""
    ks = jax.random.split(key, 6)
    b = 1.0 / math.sqrt(H)
    w1 = jax.random.uniform(ks[0], (M, H, H), jnp.float32, -b, b)
    b1 = jax.random.uniform(ks[1], (M, 1, H), jnp.float32, -b, b)
    w2 = jax.random.uniform(ks[2], (M, H, H), jnp.float32, -b, b)
    b2 = jax.random.uniform(ks[3], (M, 1, H), jnp.float32, -b, b)
    w3 = jax.random.uniform(ks[4], (M, 1, H), jnp.float32, -b, b)
    b3 = jax.random.uniform(ks[5], (M, 1), jnp.float32, -b, b)
    return (w1, b1, w2, b2, w3, b3)


def ref_forward(x, params, alpha):
    """Pure-JAX f32 reference matching the PyTorch forward (eval mode)."""
    w1, b1, w2, b2, w3, b3 = params
    xt = jnp.transpose(x, (1, 0, 2))                                   # (M, N, H)
    h = jnp.maximum(jnp.einsum('mnh,mhk->mnk', xt, w1) + b1, 0.0)
    h = jnp.maximum(jnp.einsum('mnh,mhk->mnk', h, w2) + b2, 0.0)
    logit = jnp.sum(h * w3, axis=-1) + b3                              # (M, N)
    result = jax.nn.sigmoid(logit).T                                   # (N, M)
    a = jax.nn.softmax(alpha)
    out = jnp.clip((result * a).sum(axis=1), 0.0, 1.0)
    return out, result


if __name__ == "__main__":
    N, M, H = 8, 4, 128          # batch, num_multi, hidden_channels_PI (small)
    key = jax.random.PRNGKey(0)
    k_x, k_p = jax.random.split(key)

    x = jax.random.normal(k_x, (N, M, H), jnp.float32)
    params = init_params(k_p, M, H)
    alpha = jnp.zeros((M,), jnp.float32)   # matches torch.nn.init.constant_(alpha, 0)

    out, result = multi_phlp_forward(x, params, alpha)
    jax.block_until_ready((out, result))

    out_ref, result_ref = ref_forward(x, params, alpha)
    assert out.shape == (N,) and result.shape == (N, M)
    # bf16 MXU operands with f32 accumulation -> compare to the f32 reference
    # with a correspondingly relaxed (but still tight for [0,1] sigmoids) tol.
    np.testing.assert_allclose(np.asarray(result), np.asarray(result_ref),
                               rtol=2e-2, atol=2e-2)
    np.testing.assert_allclose(np.asarray(out), np.asarray(out_ref),
                               rtol=2e-2, atol=2e-2)
    print("KERNEL_OK")
</pallas_src>

<mosaic_0001>
module attributes {stable_mosaic.version = 11 : i64} {
  func.func @_multi_phlp_kernel(%arg0: i32, %arg1: memref<4xf32, #tpu.memory_space<smem>>, %arg2: memref<128x512xf32, #tpu.memory_space<vmem>>, %arg3: memref<4x128x128xf32, #tpu.memory_space<vmem>>, %arg4: memref<4x1x128xf32, #tpu.memory_space<vmem>>, %arg5: memref<4x128x128xf32, #tpu.memory_space<vmem>>, %arg6: memref<4x1x128xf32, #tpu.memory_space<vmem>>, %arg7: memref<4x1x128xf32, #tpu.memory_space<vmem>>, %arg8: memref<4x1xf32, #tpu.memory_space<vmem>>, %arg9: memref<4x128xf32, #tpu.memory_space<vmem>>, %arg10: memref<1x128xf32, #tpu.memory_space<vmem>>) attributes {dimension_semantics = [#tpu.dimension_semantics<parallel>], iteration_bounds = array<i64: 1>, scalar_prefetch = 0 : i64, scratch_operands = 0 : i64, tpu.core_type = #tpu.core_type<tc>, window_params = [{transform_indices = @transform_0, window_bounds = array<i64: 4>}, {transform_indices = @transform_1, window_bounds = array<i64: 128, 512>}, {pipeline_mode = #tpu.pipeline_mode<synchronous>, transform_indices = @transform_2, window_bounds = array<i64: 4, 128, 128>}, {pipeline_mode = #tpu.pipeline_mode<synchronous>, transform_indices = @transform_3, window_bounds = array<i64: 4, 1, 128>}, {pipeline_mode = #tpu.pipeline_mode<synchronous>, transform_indices = @transform_4, window_bounds = array<i64: 4, 128, 128>}, {pipeline_mode = #tpu.pipeline_mode<synchronous>, transform_indices = @transform_5, window_bounds = array<i64: 4, 1, 128>}, {pipeline_mode = #tpu.pipeline_mode<synchronous>, transform_indices = @transform_6, window_bounds = array<i64: 4, 1, 128>}, {pipeline_mode = #tpu.pipeline_mode<synchronous>, transform_indices = @transform_7, window_bounds = array<i64: 4, 1>}, {transform_indices = @transform_8, window_bounds = array<i64: 4, 128>}, {transform_indices = @transform_9, window_bounds = array<i64: 1, 128>}]} {
    %cst = arith.constant 0.000000e+00 : f32
    %0 = vector.broadcast %cst : f32 to vector<128xf32>
    %c0 = arith.constant 0 : index
    %c0_0 = arith.constant 0 : index
    %1 = vector.load %arg2[%c0, %c0_0] : memref<128x512xf32, #tpu.memory_space<vmem>>, vector<128x128xf32>
    %2 = arith.truncf %1 : vector<128x128xf32> to vector<128x128xbf16>
    %c0_1 = arith.constant 0 : index
    %c0_2 = arith.constant 0 : index
    %c0_3 = arith.constant 0 : index
    %3 = vector.load %arg3[%c0_1, %c0_2, %c0_3] : memref<4x128x128xf32, #tpu.memory_space<vmem>>, vector<1x128x128xf32>
    %4 = vector.shape_cast %3 : vector<1x128x128xf32> to vector<128x128xf32>
    %5 = arith.truncf %4 : vector<128x128xf32> to vector<128x128xbf16>
    %cst_4 = arith.constant dense<0.000000e+00> : vector<128x128xf32>
    %6 = tpu.matmul %2, %5, %cst_4 {dimension_numbers = #tpu.dot_dimension_numbers<[1], [0], [0], [1], [0, 0, 1, 1], [], []>} : vector<128x128xbf16>, vector<128x128xbf16>, vector<128x128xf32> -> vector<128x128xf32>
    %c0_5 = arith.constant 0 : index
    %c0_6 = arith.constant 0 : index
    %c0_7 = arith.constant 0 : index
    %7 = vector.load %arg4[%c0_5, %c0_6, %c0_7] : memref<4x1x128xf32, #tpu.memory_space<vmem>>, vector<1x1x128xf32>
    %8 = vector.shape_cast %7 : vector<1x1x128xf32> to vector<1x128xf32>
    %9 = vector.broadcast %8 : vector<1x128xf32> to vector<128x128xf32>
    %10 = arith.addf %6, %9 : vector<128x128xf32>
    %cst_8 = arith.constant 0.000000e+00 : f32
    %11 = vector.broadcast %cst_8 : f32 to vector<128x128xf32>
    %12 = arith.maximumf %10, %11 : vector<128x128xf32>
    %13 = arith.truncf %12 : vector<128x128xf32> to vector<128x128xbf16>
    %c0_9 = arith.constant 0 : index
    %c0_10 = arith.constant 0 : index
    %c0_11 = arith.constant 0 : index
    %14 = vector.load %arg5[%c0_9, %c0_10, %c0_11] : memref<4x128x128xf32, #tpu.memory_space<vmem>>, vector<1x128x128xf32>
    %15 = vector.shape_cast %14 : vector<1x128x128xf32> to vector<128x128xf32>
    %16 = arith.truncf %15 : vector<128x128xf32> to vector<128x128xbf16>
    %cst_12 = arith.constant dense<0.000000e+00> : vector<128x128xf32>
    %17 = tpu.matmul %13, %16, %cst_12 {dimension_numbers = #tpu.dot_dimension_numbers<[1], [0], [0], [1], [0, 0, 1, 1], [], []>} : vector<128x128xbf16>, vector<128x128xbf16>, vector<128x128xf32> -> vector<128x128xf32>
    %c0_13 = arith.constant 0 : index
    %c0_14 = arith.constant 0 : index
    %c0_15 = arith.constant 0 : index
    %18 = vector.load %arg6[%c0_13, %c0_14, %c0_15] : memref<4x1x128xf32, #tpu.memory_space<vmem>>, vector<1x1x128xf32>
    %19 = vector.shape_cast %18 : vector<1x1x128xf32> to vector<1x128xf32>
    %20 = vector.broadcast %19 : vector<1x128xf32> to vector<128x128xf32>
    %21 = arith.addf %17, %20 : vector<128x128xf32>
    %cst_16 = arith.constant 0.000000e+00 : f32
    %22 = vector.broadcast %cst_16 : f32 to vector<128x128xf32>
    %23 = arith.maximumf %21, %22 : vector<128x128xf32>
    %c0_17 = arith.constant 0 : index
    %c0_18 = arith.constant 0 : index
    %c0_19 = arith.constant 0 : index
    %24 = vector.load %arg7[%c0_17, %c0_18, %c0_19] : memref<4x1x128xf32, #tpu.memory_space<vmem>>, vector<1x1x128xf32>
    %25 = vector.shape_cast %24 : vector<1x1x128xf32> to vector<1x128xf32>
    %26 = vector.broadcast %25 : vector<1x128xf32> to vector<128x128xf32>
    %27 = arith.mulf %23, %26 : vector<128x128xf32>
    %cst_20 = arith.constant dense<0.000000e+00> : vector<128xf32>
    %28 = vector.multi_reduction <add>, %27, %cst_20 [1] : vector<128x128xf32> to vector<128xf32>
    %c0_21 = arith.constant 0 : index
    %c0_22 = arith.constant 0 : index
    %29 = vector.load %arg8[%c0_21, %c0_22] : memref<4x1xf32, #tpu.memory_space<vmem>>, vector<1x1xf32>
    %30 = vector.shape_cast %29 : vector<1x1xf32> to vector<1xf32>
    %31 = vector.broadcast %30 : vector<1xf32> to vector<128xf32>
    %32 = arith.addf %28, %31 : vector<128xf32>
    %33 = arith.negf %32 : vector<128xf32>
    %34 = math.exp %33 : vector<128xf32>
    %cst_23 = arith.constant 1.000000e+00 : f32
    %35 = vector.broadcast %cst_23 : f32 to vector<128xf32>
    %36 = arith.addf %35, %34 : vector<128xf32>
    %37 = arith.divf %35, %36 : vector<128xf32>
    %c0_24 = arith.constant 0 : index
    %c0_25 = arith.constant 0 : index
    %38 = vector.load %arg9[%c0_24, %c0_25] : memref<4x128xf32, #tpu.memory_space<vmem>>, vector<1x128xf32>
    %39 = vector.shape_cast %38 : vector<1x128xf32> to vector<128xf32>
    %40 = vector.shape_cast %37 : vector<128xf32> to vector<1x128xf32>
    tpu.vector_store %arg9[%c0_24, %c0_25], %40 {strides = array<i32>} : memref<4x128xf32, #tpu.memory_space<vmem>>, vector<1x128xf32>,
    %c0_26 = arith.constant 0 : index
    %41 = memref.load %arg1[%c0_26] : memref<4xf32, #tpu.memory_space<smem>>
    %42 = vector.broadcast %41 : f32 to vector<128xf32>
    %43 = arith.mulf %42, %37 : vector<128xf32>
    %44 = arith.addf %0, %43 : vector<128xf32>
    %c0_27 = arith.constant 0 : index
    %c128 = arith.constant 128 : index
    %45 = vector.load %arg2[%c0_27, %c128] : memref<128x512xf32, #tpu.memory_space<vmem>>, vector<128x128xf32>
    %46 = arith.truncf %45 : vector<128x128xf32> to vector<128x128xbf16>
    %c1 = arith.constant 1 : index
    %c0_28 = arith.constant 0 : index
    %c0_29 = arith.constant 0 : index
    %47 = vector.load %arg3[%c1, %c0_28, %c0_29] : memref<4x128x128xf32, #tpu.memory_space<vmem>>, vector<1x128x128xf32>
    %48 = vector.shape_cast %47 : vector<1x128x128xf32> to vector<128x128xf32>
    %49 = arith.truncf %48 : vector<128x128xf32> to vector<128x128xbf16>
    %cst_30 = arith.constant dense<0.000000e+00> : vector<128x128xf32>
    %50 = tpu.matmul %46, %49, %cst_30 {dimension_numbers = #tpu.dot_dimension_numbers<[1], [0], [0], [1], [0, 0, 1, 1], [], []>} : vector<128x128xbf16>, vector<128x128xbf16>, vector<128x128xf32> -> vector<128x128xf32>
    %c1_31 = arith.constant 1 : index
    %c0_32 = arith.constant 0 : index
    %c0_33 = arith.constant 0 : index
    %51 = vector.load %arg4[%c1_31, %c0_32, %c0_33] : memref<4x1x128xf32, #tpu.memory_space<vmem>>, vector<1x1x128xf32>
    %52 = vector.shape_cast %51 : vector<1x1x128xf32> to vector<1x128xf32>
    %53 = vector.broadcast %52 : vector<1x128xf32> to vector<128x128xf32>
    %54 = arith.addf %50, %53 : vector<128x128xf32>
    %cst_34 = arith.constant 0.000000e+00 : f32
    %55 = vector.broadcast %cst_34 : f32 to vector<128x128xf32>
    %56 = arith.maximumf %54, %55 : vector<128x128xf32>
    %57 = arith.truncf %56 : vector<128x128xf32> to vector<128x128xbf16>
    %c1_35 = arith.constant 1 : index
    %c0_36 = arith.constant 0 : index
    %c0_37 = arith.constant 0 : index
    %58 = vector.load %arg5[%c1_35, %c0_36, %c0_37] : memref<4x128x128xf32, #tpu.memory_space<vmem>>, vector<1x128x128xf32>
    %59 = vector.shape_cast %58 : vector<1x128x128xf32> to vector<128x128xf32>
    %60 = arith.truncf %59 : vector<128x128xf32> to vector<128x128xbf16>
    %cst_38 = arith.constant dense<0.000000e+00> : vector<128x128xf32>
    %61 = tpu.matmul %57, %60, %cst_38 {dimension_numbers = #tpu.dot_dimension_numbers<[1], [0], [0], [1], [0, 0, 1, 1], [], []>} : vector<128x128xbf16>, vector<128x128xbf16>, vector<128x128xf32> -> vector<128x128xf32>
    %c1_39 = arith.constant 1 : index
    %c0_40 = arith.constant 0 : index
    %c0_41 = arith.constant 0 : index
    %62 = vector.load %arg6[%c1_39, %c0_40, %c0_41] : memref<4x1x128xf32, #tpu.memory_space<vmem>>, vector<1x1x128xf32>
    %63 = vector.shape_cast %62 : vector<1x1x128xf32> to vector<1x128xf32>
    %64 = vector.broadcast %63 : vector<1x128xf32> to vector<128x128xf32>
    %65 = arith.addf %61, %64 : vector<128x128xf32>
    %cst_42 = arith.constant 0.000000e+00 : f32
    %66 = vector.broadcast %cst_42 : f32 to vector<128x128xf32>
    %67 = arith.maximumf %65, %66 : vector<128x128xf32>
    %c1_43 = arith.constant 1 : index
    %c0_44 = arith.constant 0 : index
    %c0_45 = arith.constant 0 : index
    %68 = vector.load %arg7[%c1_43, %c0_44, %c0_45] : memref<4x1x128xf32, #tpu.memory_space<vmem>>, vector<1x1x128xf32>
    %69 = vector.shape_cast %68 : vector<1x1x128xf32> to vector<1x128xf32>
    %70 = vector.broadcast %69 : vector<1x128xf32> to vector<128x128xf32>
    %71 = arith.mulf %67, %70 : vector<128x128xf32>
    %cst_46 = arith.constant dense<0.000000e+00> : vector<128xf32>
    %72 = vector.multi_reduction <add>, %71, %cst_46 [1] : vector<128x128xf32> to vector<128xf32>
    %c1_47 = arith.constant 1 : index
    %c0_48 = arith.constant 0 : index
    %73 = vector.load %arg8[%c1_47, %c0_48] : memref<4x1xf32, #tpu.memory_space<vmem>>, vector<1x1xf32>
    %74 = vector.shape_cast %73 : vector<1x1xf32> to vector<1xf32>
    %75 = vector.broadcast %74 : vector<1xf32> to vector<128xf32>
    %76 = arith.addf %72, %75 : vector<128xf32>
    %77 = arith.negf %76 : vector<128xf32>
    %78 = math.exp %77 : vector<128xf32>
    %cst_49 = arith.constant 1.000000e+00 : f32
    %79 = vector.broadcast %cst_49 : f32 to vector<128xf32>
    %80 = arith.addf %79, %78 : vector<128xf32>
    %81 = arith.divf %79, %80 : vector<128xf32>
    %c1_50 = arith.constant 1 : index
    %c0_51 = arith.constant 0 : index
    %82 = vector.load %arg9[%c1_50, %c0_51] : memref<4x128xf32, #tpu.memory_space<vmem>>, vector<1x128xf32>
    %83 = vector.shape_cast %82 : vector<1x128xf32> to vector<128xf32>
    %84 = vector.shape_cast %81 : vector<128xf32> to vector<1x128xf32>
    tpu.vector_store %arg9[%c1_50, %c0_51], %84 {strides = array<i32>} : memref<4x128xf32, #tpu.memory_space<vmem>>, vector<1x128xf32>,
    %c1_52 = arith.constant 1 : index
    %85 = memref.load %arg1[%c1_52] : memref<4xf32, #tpu.memory_space<smem>>
    %86 = vector.broadcast %85 : f32 to vector<128xf32>
    %87 = arith.mulf %86, %81 : vector<128xf32>
    %88 = arith.addf %44, %87 : vector<128xf32>
    %c0_53 = arith.constant 0 : index
    %c256 = arith.constant 256 : index
    %89 = vector.load %arg2[%c0_53, %c256] : memref<128x512xf32, #tpu.memory_space<vmem>>, vector<128x128xf32>
    %90 = arith.truncf %89 : vector<128x128xf32> to vector<128x128xbf16>
    %c2 = arith.constant 2 : index
    %c0_54 = arith.constant 0 : index
    %c0_55 = arith.constant 0 : index
    %91 = vector.load %arg3[%c2, %c0_54, %c0_55] : memref<4x128x128xf32, #tpu.memory_space<vmem>>, vector<1x128x128xf32>
    %92 = vector.shape_cast %91 : vector<1x128x128xf32> to vector<128x128xf32>
    %93 = arith.truncf %92 : vector<128x128xf32> to vector<128x128xbf16>
    %cst_56 = arith.constant dense<0.000000e+00> : vector<128x128xf32>
    %94 = tpu.matmul %90, %93, %cst_56 {dimension_numbers = #tpu.dot_dimension_numbers<[1], [0], [0], [1], [0, 0, 1, 1], [], []>} : vector<128x128xbf16>, vector<128x128xbf16>, vector<128x128xf32> -> vector<128x128xf32>
    %c2_57 = arith.constant 2 : index
    %c0_58 = arith.constant 0 : index
    %c0_59 = arith.constant 0 : index
    %95 = vector.load %arg4[%c2_57, %c0_58, %c0_59] : memref<4x1x128xf32, #tpu.memory_space<vmem>>, vector<1x1x128xf32>
    %96 = vector.shape_cast %95 : vector<1x1x128xf32> to vector<1x128xf32>
    %97 = vector.broadcast %96 : vector<1x128xf32> to vector<128x128xf32>
    %98 = arith.addf %94, %97 : vector<128x128xf32>
    %cst_60 = arith.constant 0.000000e+00 : f32
    %99 = vector.broadcast %cst_60 : f32 to vector<128x128xf32>
    %100 = arith.maximumf %98, %99 : vector<128x128xf32>
    %101 = arith.truncf %100 : vector<128x128xf32> to vector<128x128xbf16>
    %c2_61 = arith.constant 2 : index
    %c0_62 = arith.constant 0 : index
    %c0_63 = arith.constant 0 : index
    %102 = vector.load %arg5[%c2_61, %c0_62, %c0_63] : memref<4x128x128xf32, #tpu.memory_space<vmem>>, vector<1x128x128xf32>
    %103 = vector.shape_cast %102 : vector<1x128x128xf32> to vector<128x128xf32>
    %104 = arith.truncf %103 : vector<128x128xf32> to vector<128x128xbf16>
    %cst_64 = arith.constant dense<0.000000e+00> : vector<128x128xf32>
    %105 = tpu.matmul %101, %104, %cst_64 {dimension_numbers = #tpu.dot_dimension_numbers<[1], [0], [0], [1], [0, 0, 1, 1], [], []>} : vector<128x128xbf16>, vector<128x128xbf16>, vector<128x128xf32> -> vector<128x128xf32>
    %c2_65 = arith.constant 2 : index
    %c0_66 = arith.constant 0 : index
    %c0_67 = arith.constant 0 : index
    %106 = vector.load %arg6[%c2_65, %c0_66, %c0_67] : memref<4x1x128xf32, #tpu.memory_space<vmem>>, vector<1x1x128xf32>
    %107 = vector.shape_cast %106 : vector<1x1x128xf32> to vector<1x128xf32>
    %108 = vector.broadcast %107 : vector<1x128xf32> to vector<128x128xf32>
    %109 = arith.addf %105, %108 : vector<128x128xf32>
    %cst_68 = arith.constant 0.000000e+00 : f32
    %110 = vector.broadcast %cst_68 : f32 to vector<128x128xf32>
    %111 = arith.maximumf %109, %110 : vector<128x128xf32>
    %c2_69 = arith.constant 2 : index
    %c0_70 = arith.constant 0 : index
    %c0_71 = arith.constant 0 : index
    %112 = vector.load %arg7[%c2_69, %c0_70, %c0_71] : memref<4x1x128xf32, #tpu.memory_space<vmem>>, vector<1x1x128xf32>
    %113 = vector.shape_cast %112 : vector<1x1x128xf32> to vector<1x128xf32>
    %114 = vector.broadcast %113 : vector<1x128xf32> to vector<128x128xf32>
    %115 = arith.mulf %111, %114 : vector<128x128xf32>
    %cst_72 = arith.constant dense<0.000000e+00> : vector<128xf32>
    %116 = vector.multi_reduction <add>, %115, %cst_72 [1] : vector<128x128xf32> to vector<128xf32>
    %c2_73 = arith.constant 2 : index
    %c0_74 = arith.constant 0 : index
    %117 = vector.load %arg8[%c2_73, %c0_74] : memref<4x1xf32, #tpu.memory_space<vmem>>, vector<1x1xf32>
    %118 = vector.shape_cast %117 : vector<1x1xf32> to vector<1xf32>
    %119 = vector.broadcast %118 : vector<1xf32> to vector<128xf32>
    %120 = arith.addf %116, %119 : vector<128xf32>
    %121 = arith.negf %120 : vector<128xf32>
    %122 = math.exp %121 : vector<128xf32>
    %cst_75 = arith.constant 1.000000e+00 : f32
    %123 = vector.broadcast %cst_75 : f32 to vector<128xf32>
    %124 = arith.addf %123, %122 : vector<128xf32>
    %125 = arith.divf %123, %124 : vector<128xf32>
    %c2_76 = arith.constant 2 : index
    %c0_77 = arith.constant 0 : index
    %126 = vector.load %arg9[%c2_76, %c0_77] : memref<4x128xf32, #tpu.memory_space<vmem>>, vector<1x128xf32>
    %127 = vector.shape_cast %126 : vector<1x128xf32> to vector<128xf32>
    %128 = vector.shape_cast %125 : vector<128xf32> to vector<1x128xf32>
    tpu.vector_store %arg9[%c2_76, %c0_77], %128 {strides = array<i32>} : memref<4x128xf32, #tpu.memory_space<vmem>>, vector<1x128xf32>,
    %c2_78 = arith.constant 2 : index
    %129 = memref.load %arg1[%c2_78] : memref<4xf32, #tpu.memory_space<smem>>
    %130 = vector.broadcast %129 : f32 to vector<128xf32>
    %131 = arith.mulf %130, %125 : vector<128xf32>
    %132 = arith.addf %88, %131 : vector<128xf32>
    %c0_79 = arith.constant 0 : index
    %c384 = arith.constant 384 : index
    %133 = vector.load %arg2[%c0_79, %c384] : memref<128x512xf32, #tpu.memory_space<vmem>>, vector<128x128xf32>
    %134 = arith.truncf %133 : vector<128x128xf32> to vector<128x128xbf16>
    %c3 = arith.constant 3 : index
    %c0_80 = arith.constant 0 : index
    %c0_81 = arith.constant 0 : index
    %135 = vector.load %arg3[%c3, %c0_80, %c0_81] : memref<4x128x128xf32, #tpu.memory_space<vmem>>, vector<1x128x128xf32>
    %136 = vector.shape_cast %135 : vector<1x128x128xf32> to vector<128x128xf32>
    %137 = arith.truncf %136 : vector<128x128xf32> to vector<128x128xbf16>
    %cst_82 = arith.constant dense<0.000000e+00> : vector<128x128xf32>
    %138 = tpu.matmul %134, %137, %cst_82 {dimension_numbers = #tpu.dot_dimension_numbers<[1], [0], [0], [1], [0, 0, 1, 1], [], []>} : vector<128x128xbf16>, vector<128x128xbf16>, vector<128x128xf32> -> vector<128x128xf32>
    %c3_83 = arith.constant 3 : index
    %c0_84 = arith.constant 0 : index
    %c0_85 = arith.constant 0 : index
    %139 = vector.load %arg4[%c3_83, %c0_84, %c0_85] : memref<4x1x128xf32, #tpu.memory_space<vmem>>, vector<1x1x128xf32>
    %140 = vector.shape_cast %139 : vector<1x1x128xf32> to vector<1x128xf32>
    %141 = vector.broadcast %140 : vector<1x128xf32> to vector<128x128xf32>
    %142 = arith.addf %138, %141 : vector<128x128xf32>
    %cst_86 = arith.constant 0.000000e+00 : f32
    %143 = vector.broadcast %cst_86 : f32 to vector<128x128xf32>
    %144 = arith.maximumf %142, %143 : vector<128x128xf32>
    %145 = arith.truncf %144 : vector<128x128xf32> to vector<128x128xbf16>
    %c3_87 = arith.constant 3 : index
    %c0_88 = arith.constant 0 : index
    %c0_89 = arith.constant 0 : index
    %146 = vector.load %arg5[%c3_87, %c0_88, %c0_89] : memref<4x128x128xf32, #tpu.memory_space<vmem>>, vector<1x128x128xf32>
    %147 = vector.shape_cast %146 : vector<1x128x128xf32> to vector<128x128xf32>
    %148 = arith.truncf %147 : vector<128x128xf32> to vector<128x128xbf16>
    %cst_90 = arith.constant dense<0.000000e+00> : vector<128x128xf32>
    %149 = tpu.matmul %145, %148, %cst_90 {dimension_numbers = #tpu.dot_dimension_numbers<[1], [0], [0], [1], [0, 0, 1, 1], [], []>} : vector<128x128xbf16>, vector<128x128xbf16>, vector<128x128xf32> -> vector<128x128xf32>
    %c3_91 = arith.constant 3 : index
    %c0_92 = arith.constant 0 : index
    %c0_93 = arith.constant 0 : index
    %150 = vector.load %arg6[%c3_91, %c0_92, %c0_93] : memref<4x1x128xf32, #tpu.memory_space<vmem>>, vector<1x1x128xf32>
    %151 = vector.shape_cast %150 : vector<1x1x128xf32> to vector<1x128xf32>
    %152 = vector.broadcast %151 : vector<1x128xf32> to vector<128x128xf32>
    %153 = arith.addf %149, %152 : vector<128x128xf32>
    %cst_94 = arith.constant 0.000000e+00 : f32
    %154 = vector.broadcast %cst_94 : f32 to vector<128x128xf32>
    %155 = arith.maximumf %153, %154 : vector<128x128xf32>
    %c3_95 = arith.constant 3 : index
    %c0_96 = arith.constant 0 : index
    %c0_97 = arith.constant 0 : index
    %156 = vector.load %arg7[%c3_95, %c0_96, %c0_97] : memref<4x1x128xf32, #tpu.memory_space<vmem>>, vector<1x1x128xf32>
    %157 = vector.shape_cast %156 : vector<1x1x128xf32> to vector<1x128xf32>
    %158 = vector.broadcast %157 : vector<1x128xf32> to vector<128x128xf32>
    %159 = arith.mulf %155, %158 : vector<128x128xf32>
    %cst_98 = arith.constant dense<0.000000e+00> : vector<128xf32>
    %160 = vector.multi_reduction <add>, %159, %cst_98 [1] : vector<128x128xf32> to vector<128xf32>
    %c3_99 = arith.constant 3 : index
    %c0_100 = arith.constant 0 : index
    %161 = vector.load %arg8[%c3_99, %c0_100] : memref<4x1xf32, #tpu.memory_space<vmem>>, vector<1x1xf32>
    %162 = vector.shape_cast %161 : vector<1x1xf32> to vector<1xf32>
    %163 = vector.broadcast %162 : vector<1xf32> to vector<128xf32>
    %164 = arith.addf %160, %163 : vector<128xf32>
    %165 = arith.negf %164 : vector<128xf32>
    %166 = math.exp %165 : vector<128xf32>
    %cst_101 = arith.constant 1.000000e+00 : f32
    %167 = vector.broadcast %cst_101 : f32 to vector<128xf32>
    %168 = arith.addf %167, %166 : vector<128xf32>
    %169 = arith.divf %167, %168 : vector<128xf32>
    %c3_102 = arith.constant 3 : index
    %c0_103 = arith.constant 0 : index
    %170 = vector.load %arg9[%c3_102, %c0_103] : memref<4x128xf32, #tpu.memory_space<vmem>>, vector<1x128xf32>
    %171 = vector.shape_cast %170 : vector<1x128xf32> to vector<128xf32>
    %172 = vector.shape_cast %169 : vector<128xf32> to vector<1x128xf32>
    tpu.vector_store %arg9[%c3_102, %c0_103], %172 {strides = array<i32>} : memref<4x128xf32, #tpu.memory_space<vmem>>, vector<1x128xf32>,
    %c3_104 = arith.constant 3 : index
    %173 = memref.load %arg1[%c3_104] : memref<4xf32, #tpu.memory_space<smem>>
    %174 = vector.broadcast %173 : f32 to vector<128xf32>
    %175 = arith.mulf %174, %169 : vector<128xf32>
    %176 = arith.addf %132, %175 : vector<128xf32>
    %cst_105 = arith.constant 0.000000e+00 : f32
    %cst_106 = arith.constant 1.000000e+00 : f32
    %177 = vector.broadcast %cst_105 : f32 to vector<128xf32>
    %178 = arith.maximumf %177, %176 : vector<128xf32>
    %179 = vector.broadcast %cst_106 : f32 to vector<128xf32>
    %180 = arith.minimumf %179, %178 : vector<128xf32>
    %c0_107 = arith.constant 0 : index
    %c0_108 = arith.constant 0 : index
    %181 = vector.load %arg10[%c0_107, %c0_108] : memref<1x128xf32, #tpu.memory_space<vmem>>, vector<1x128xf32>
    %182 = vector.shape_cast %181 : vector<1x128xf32> to vector<128xf32>
    %183 = vector.shape_cast %180 : vector<128xf32> to vector<1x128xf32>
    tpu.vector_store %arg10[%c0_107, %c0_108], %183 {strides = array<i32>} : memref<1x128xf32, #tpu.memory_space<vmem>>, vector<1x128xf32>,
    return
  }
  func.func @transform_0(%arg0: i32) -> i32 {
    %c0_i32 = arith.constant 0 : i32
    %c0_i32_0 = arith.constant 0 : i32
    return %c0_i32 : i32
  }
  func.func @transform_1(%arg0: i32) -> (i32, i32) {
    %c0_i32 = arith.constant 0 : i32
    %c0_i32_0 = arith.constant 0 : i32
    return %arg0, %c0_i32 : i32, i32
  }
  func.func @transform_2(%arg0: i32) -> (i32, i32, i32) {
    %c0_i32 = arith.constant 0 : i32
    %c0_i32_0 = arith.constant 0 : i32
    %c0_i32_1 = arith.constant 0 : i32
    %c0_i32_2 = arith.constant 0 : i32
    return %c0_i32, %c0_i32_0, %c0_i32_1 : i32, i32, i32
  }
  func.func @transform_3(%arg0: i32) -> (i32, i32, i32) {
    %c0_i32 = arith.constant 0 : i32
    %c0_i32_0 = arith.constant 0 : i32
    %c0_i32_1 = arith.constant 0 : i32
    %c0_i32_2 = arith.constant 0 : i32
    return %c0_i32, %c0_i32_0, %c0_i32_1 : i32, i32, i32
  }
  func.func @transform_4(%arg0: i32) -> (i32, i32, i32) {
    %c0_i32 = arith.constant 0 : i32
    %c0_i32_0 = arith.constant 0 : i32
    %c0_i32_1 = arith.constant 0 : i32
    %c0_i32_2 = arith.constant 0 : i32
    return %c0_i32, %c0_i32_0, %c0_i32_1 : i32, i32, i32
  }
  func.func @transform_5(%arg0: i32) -> (i32, i32, i32) {
    %c0_i32 = arith.constant 0 : i32
    %c0_i32_0 = arith.constant 0 : i32
    %c0_i32_1 = arith.constant 0 : i32
    %c0_i32_2 = arith.constant 0 : i32
    return %c0_i32, %c0_i32_0, %c0_i32_1 : i32, i32, i32
  }
  func.func @transform_6(%arg0: i32) -> (i32, i32, i32) {
    %c0_i32 = arith.constant 0 : i32
    %c0_i32_0 = arith.constant 0 : i32
    %c0_i32_1 = arith.constant 0 : i32
    %c0_i32_2 = arith.constant 0 : i32
    return %c0_i32, %c0_i32_0, %c0_i32_1 : i32, i32, i32
  }
  func.func @transform_7(%arg0: i32) -> (i32, i32) {
    %c0_i32 = arith.constant 0 : i32
    %c0_i32_0 = arith.constant 0 : i32
    %c0_i32_1 = arith.constant 0 : i32
    return %c0_i32, %c0_i32_0 : i32, i32
  }
  func.func @transform_8(%arg0: i32) -> (i32, i32) {
    %c0_i32 = arith.constant 0 : i32
    %c0_i32_0 = arith.constant 0 : i32
    return %c0_i32, %arg0 : i32, i32
  }
  func.func @transform_9(%arg0: i32) -> (i32, i32) {
    %c0_i32 = arith.constant 0 : i32
    %c0_i32_0 = arith.constant 0 : i32
    return %c0_i32, %arg0 : i32, i32
  }
}

</mosaic_0001>

<llo_original>
// kernel: tpu_custom_call.1
$region0: #{tpu_custom_call.1}
  #allocation0 [shape = 'u32[]', space=smem, size = 0x4, offset = 0x4, fixed_abs, tag = 'smem constant byte address 0x4 - core index']
  #allocation1 [shape = 'u32[144,128]{1,0:T(1,128)}', space=vmem, size = 0x12000, scoped, tag = 'internal scratch']
  %s0 = inlined_call_operand.hbm [shape: f32[4], index: 0, kind: input, shape index: {}]
  %s1 = inlined_call_operand.hbm [shape: f32[128,512], index: 1, kind: input, shape index: {}]
  %s2 = inlined_call_operand.hbm [shape: f32[4,128,128], index: 2, kind: input, shape index: {}]
  %s3 = inlined_call_operand.vmem [shape: f32[4,1,128], index: 3, kind: input, shape index: {}]
  %s4 = inlined_call_operand.hbm [shape: f32[4,128,128], index: 4, kind: input, shape index: {}]
  %s5 = inlined_call_operand.vmem [shape: f32[4,1,128], index: 5, kind: input, shape index: {}]
  %s6 = inlined_call_operand.vmem [shape: f32[4,1,128], index: 6, kind: input, shape index: {}]
  %s7 = inlined_call_operand.vmem [shape: f32[4,1], index: 7, kind: input, shape index: {}]
  %s8 = inlined_call_operand.hbm [shape: f32[4,128], index: 8, kind: output, shape index: {0}]
  %s9 = inlined_call_operand.hbm [shape: f32[1,128], index: 9, kind: output, shape index: {1}]
  %10 = xla_tuple %s8, %s9
  %s11 = sld [smem:[#allocation0]]
  $region66: #{tpu_custom_call.1} parent=0
    _
  %s13 = ssub.s32 1, %s11
  %s14 = scalar_select 0, %s13, %s11
  $region1: #{tpu_custom_call.1} parent=0
    #allocation2 [shape = 'u8[512]{0}', space=smem, size = 0x200, scoped, tag = 'input window, operand 0, single buffered']
    #allocation3 [shape = 's32[1]{0}', space=sflag, size = 0x4, scoped, tag = 'scoped memory for tpu_custom_call.1']
    #allocation4 [shape = 's32[1]{0}', space=sflag, size = 0x4, scoped, tag = 'scoped memory for tpu_custom_call.1']
    #allocation5 [shape = 's32[1]{0}', space=sflag, size = 0x4, scoped, tag = 'scoped memory for tpu_custom_call.1']
    #allocation6 [shape = 'u8[262144]{0}', space=vmem, size = 0x40000, scoped, tag = 'input window, operand 1, single buffered']
    #allocation7 [shape = 'u8[262144]{0}', space=vmem, size = 0x40000, scoped, tag = 'input window, operand 2, single buffered']
    #allocation8 [shape = 's32[1]{0}', space=sflag, size = 0x4, scoped, tag = 'scoped memory for tpu_custom_call.1']
    #allocation9 [shape = 'u8[262144]{0}', space=vmem, size = 0x40000, scoped, tag = 'input window, operand 4, single buffered']
    #allocation10 [shape = 'u8[2048]{0}', space=vmem, size = 0x800, scoped, tag = 'output window, operand 0, single buffered']
    #allocation11 [shape = 'u8[512]{0}', space=vmem, size = 0x400, scoped, tag = 'output window, operand 1, single buffered']
    #allocation12 [shape = 's32[1]{0}', space=sflag, size = 0x4, scoped, tag = 'scoped memory for tpu_custom_call.1']
    %15 = vsyncpa [#allocation5], 0
    %16 = vsyncpa [#allocation3], 0
    %17 = vsyncpa [#allocation8], 0
    %18 = vsyncpa [#allocation4], 0
    %19 = vsyncpa [#allocation12], 0
    // Predicated region
    $region2: #{tpu_custom_call.1} parent=1 // pred_check
      _
    $region3: #{tpu_custom_call.1} parent=1 // pred_check_branch
      %21 = sbr.rel (0) target = $region5
    $region4: #{tpu_custom_call.1} parent=1 // pred_region
      %s23 = ssub.s32 16, 16
      %24 = vsyncadd [#allocation5], %s23
      %27 = dma.hbm_to_smem %s0, 16, [#allocation2], [#allocation5]
    $region5: #{tpu_custom_call.1} parent=1 // pred_fallthru
      _
    // Predicated region
    $region6: #{tpu_custom_call.1} parent=1 // pred_check
      _
    $region7: #{tpu_custom_call.1} parent=1 // pred_check_branch
      %29 = sbr.rel (0) target = $region9
    $region8: #{tpu_custom_call.1} parent=1 // pred_region
      %s31 = ssub.s32 8192, 8192
      %32 = vsyncadd [#allocation3], %s31
      %s33 = sshll.u32 [#allocation6], 4
      %s34 = int_to_ptr.vmem [resolvable:$true] %s33
      %39 = dma.hbm_to_vmem [thread:$0]  %s1, 8192, %s34, [#allocation3], 512, 512, 32
    $region9: #{tpu_custom_call.1} parent=1 // pred_fallthru
      _
    // Predicated region
    $region10: #{tpu_custom_call.1} parent=1 // pred_check
      _
    $region11: #{tpu_custom_call.1} parent=1 // pred_check_branch
      %41 = sbr.rel (0) target = $region13
    $region12: #{tpu_custom_call.1} parent=1 // pred_region
      %s43 = ssub.s32 8192, 8192
      %44 = vsyncadd [#allocation8], %s43
      %s45 = sshll.u32 [#allocation7], 4
      %s46 = int_to_ptr.vmem [resolvable:$true] %s45
      %51 = dma.hbm_to_vmem [thread:$0]  %s2, 8192, %s46, [#allocation8], 128, 128, 8
    $region13: #{tpu_custom_call.1} parent=1 // pred_fallthru
      _
    // Predicated region
    $region14: #{tpu_custom_call.1} parent=1 // pred_check
      _
    $region15: #{tpu_custom_call.1} parent=1 // pred_check_branch
      %53 = sbr.rel (0) target = $region17
    $region16: #{tpu_custom_call.1} parent=1 // pred_region
      _
    $region17: #{tpu_custom_call.1} parent=1 // pred_fallthru
      _
    // Predicated region
    $region18: #{tpu_custom_call.1} parent=1 // pred_check
      _
    $region19: #{tpu_custom_call.1} parent=1 // pred_check_branch
      %55 = sbr.rel (0) target = $region21
    $region20: #{tpu_custom_call.1} parent=1 // pred_region
      %s57 = ssub.s32 8192, 8192
      %58 = vsyncadd [#allocation8], %s57
      %s59 = sshll.u32 [#allocation9], 4
      %s60 = int_to_ptr.vmem [resolvable:$true] %s59
      %65 = dma.hbm_to_vmem [thread:$0]  %s4, 8192, %s60, [#allocation8], 128, 128, 8
    $region21: #{tpu_custom_call.1} parent=1 // pred_fallthru
      _
    // Predicated region
    $region22: #{tpu_custom_call.1} parent=1 // pred_check
      _
    $region23: #{tpu_custom_call.1} parent=1 // pred_check_branch
      %67 = sbr.rel (0) target = $region25
    $region24: #{tpu_custom_call.1} parent=1 // pred_region
      _
    $region25: #{tpu_custom_call.1} parent=1 // pred_fallthru
      _
    // Predicated region
    $region26: #{tpu_custom_call.1} parent=1 // pred_check
      _
    $region27: #{tpu_custom_call.1} parent=1 // pred_check_branch
      %69 = sbr.rel (0) target = $region29
    $region28: #{tpu_custom_call.1} parent=1 // pred_region
      _
    $region29: #{tpu_custom_call.1} parent=1 // pred_fallthru
      _
    // Predicated region
    $region30: #{tpu_custom_call.1} parent=1 // pred_check
      _
    $region31: #{tpu_custom_call.1} parent=1 // pred_check_branch
      %71 = sbr.rel (0) target = $region33
    $region32: #{tpu_custom_call.1} parent=1 // pred_region
      _
    $region33: #{tpu_custom_call.1} parent=1 // pred_fallthru
      _
    // Predicated region
    $region34: #{tpu_custom_call.1} parent=1 // pred_check
      _
    $region35: #{tpu_custom_call.1} parent=1 // pred_check_branch
      %73 = sbr.rel (0) target = $region37
    $region36: #{tpu_custom_call.1} parent=1 // pred_region
      %74 = dma.done [#allocation5], 16
    $region37: #{tpu_custom_call.1} parent=1 // pred_fallthru
      _
    // Predicated region
    $region38: #{tpu_custom_call.1} parent=1 // pred_check
      _
    $region39: #{tpu_custom_call.1} parent=1 // pred_check_branch
      %76 = sbr.rel (0) target = $region41
    $region40: #{tpu_custom_call.1} parent=1 // pred_region
      %77 = dma.done [#allocation3], 8192
    $region41: #{tpu_custom_call.1} parent=1 // pred_fallthru
      _
    // Predicated region
    $region42: #{tpu_custom_call.1} parent=1 // pred_check
      _
    $region43: #{tpu_custom_call.1} parent=1 // pred_check_branch
      %79 = sbr.rel (0) target = $region45
    $region44: #{tpu_custom_call.1} parent=1 // pred_region
      %80 = dma.done [#allocation8], 8192
    $region45: #{tpu_custom_call.1} parent=1 // pred_fallthru
      _
    // Predicated region
    $region46: #{tpu_custom_call.1} parent=1 // pred_check
      _
    $region47: #{tpu_custom_call.1} parent=1 // pred_check_branch
      %82 = sbr.rel (0) target = $region49
    $region48: #{tpu_custom_call.1} parent=1 // pred_region
      %83 = dma.done [#allocation8], 8192
    $region49: #{tpu_custom_call.1} parent=1 // pred_fallthru
      _
    %84 = sfence
    %v86 = vld [vmem:[#allocation6] sm:$0xff]
    %v87 = vld [vmem:[#allocation6 + $0x20] sm:$0xff]
    %v88 = vld [vmem:[#allocation6 + $0x40] sm:$0xff]
    %v89 = vld [vmem:[#allocation6 + $0x60] sm:$0xff]
    %v90 = vld [vmem:[#allocation6 + $0x80] sm:$0xff]
    %v91 = vld [vmem:[#allocation6 + $0xa0] sm:$0xff]
    %v92 = vld [vmem:[#allocation6 + $0xc0] sm:$0xff]
    %v93 = vld [vmem:[#allocation6 + $0xe0] sm:$0xff]
    %v94 = vld [vmem:[#allocation6 + $0x100] sm:$0xff]
    %v95 = vld [vmem:[#allocation6 + $0x120] sm:$0xff]
    %v96 = vld [vmem:[#allocation6 + $0x140] sm:$0xff]
    %v97 = vld [vmem:[#allocation6 + $0x160] sm:$0xff]
    %v98 = vld [vmem:[#allocation6 + $0x180] sm:$0xff]
    %v99 = vld [vmem:[#allocation6 + $0x1a0] sm:$0xff]
    %v100 = vld [vmem:[#allocation6 + $0x1c0] sm:$0xff]
    %v101 = vld [vmem:[#allocation6 + $0x1e0] sm:$0xff]
    %v102 = vpack.c.bf16 %v87, %v86
    %v103 = vpack.c.bf16 %v89, %v88
    %v104 = vpack.c.bf16 %v91, %v90
    %v105 = vpack.c.bf16 %v93, %v92
    %v106 = vpack.c.bf16 %v95, %v94
    %v107 = vpack.c.bf16 %v97, %v96
    %v108 = vpack.c.bf16 %v99, %v98
    %v109 = vpack.c.bf16 %v101, %v100
    %v110 = vld [vmem:[#allocation7] sm:$0xff]
    %v111 = vld [vmem:[#allocation7 + $0x8] sm:$0xff]
    %v112 = vld [vmem:[#allocation7 + $0x10] sm:$0xff]
    %v113 = vld [vmem:[#allocation7 + $0x18] sm:$0xff]
    %v114 = vld [vmem:[#allocation7 + $0x20] sm:$0xff]
    %v115 = vld [vmem:[#allocation7 + $0x28] sm:$0xff]
    %v116 = vld [vmem:[#allocation7 + $0x30] sm:$0xff]
    %v117 = vld [vmem:[#allocation7 + $0x38] sm:$0xff]
    %v118 = vld [vmem:[#allocation7 + $0x40] sm:$0xff]
    %v119 = vld [vmem:[#allocation7 + $0x48] sm:$0xff]
    %v120 = vld [vmem:[#allocation7 + $0x50] sm:$0xff]
    %v121 = vld [vmem:[#allocation7 + $0x58] sm:$0xff]
    %v122 = vld [vmem:[#allocation7 + $0x60] sm:$0xff]
    %v123 = vld [vmem:[#allocation7 + $0x68] sm:$0xff]
    %v124 = vld [vmem:[#allocation7 + $0x70] sm:$0xff]
    %v125 = vld [vmem:[#allocation7 + $0x78] sm:$0xff]
    %v126 = vpack.c.bf16 %v111, %v110
    %v127 = vpack.c.bf16 %v113, %v112
    %v128 = vpack.c.bf16 %v115, %v114
    %v129 = vpack.c.bf16 %v117, %v116
    %v130 = vpack.c.bf16 %v119, %v118
    %v131 = vpack.c.bf16 %v121, %v120
    %v132 = vpack.c.bf16 %v123, %v122
    %v133 = vpack.c.bf16 %v125, %v124
    %v134 = vld [vmem:[%s3] sm:$0x1]
    %v136 = vlaneseq
    %v137 = vshrl.u32 %v136, 7
    %v138 = vsub.s32 0, %v137
    %v139 = vrot.slane %v134, %v138
    %141 = vmatprep.subr.bf16.mxu0 0
    %142 = vmatpush1.bf16.msra.mxu0 %v126
    %143 = vmatprep.subr.bf16.mxu0 0
    %144 = vmatpush1.bf16.msra.mxu0 %v127
    %145 = vmatprep.subr.bf16.mxu0 0
    %146 = vmatpush1.bf16.msra.mxu0 %v128
    %147 = vmatprep.subr.bf16.mxu0 0
    %148 = vmatpush1.bf16.msra.mxu0 %v129
    %149 = vmatprep.subr.bf16.mxu0 0
    %150 = vmatpush1.bf16.msra.mxu0 %v130
    %151 = vmatprep.subr.bf16.mxu0 0
    %152 = vmatpush1.bf16.msra.mxu0 %v131
    %153 = vmatprep.subr.bf16.mxu0 0
    %154 = vmatpush1.bf16.msra.mxu0 %v132
    %155 = vmatprep.subr.bf16.mxu0 0
    %156 = vmatpush1.bf16.msra.mxu0 %v133
    %157 = vmatprep.subr.bf16.mxu0 0
    %158 = vmatpush1.bf16.msra.mxu0 0
    %159 = vmatprep.subr.bf16.mxu0 0
    %160 = vmatpush1.bf16.msra.mxu0 0
    %161 = vmatprep.subr.bf16.mxu0 0
    %162 = vmatpush1.bf16.msra.mxu0 0
    %163 = vmatprep.subr.bf16.mxu0 0
    %164 = vmatpush1.bf16.msra.mxu0 0
    %165 = vmatprep.subr.bf16.mxu0 0
    %166 = vmatpush1.bf16.msra.mxu0 0
    %167 = vmatprep.subr.bf16.mxu0 0
    %168 = vmatpush1.bf16.msra.mxu0 0
    %169 = vmatprep.subr.bf16.mxu0 0
    %170 = vmatpush1.bf16.msra.mxu0 0
    %171 = vmatprep.subr.bf16.mxu0 0
    %172 = vmatpush1.bf16.msra.mxu0 0
    %173 = vmatprep.mubr.bf16.mxu0 0
    %174 = vmatmul.mubr.bf16.gmra.mrb[0].mxu0 %v102
    %v175 = vpop.f32.mrb[0].mxu0
    %v176 = vadd.f32 %v139, %v175
    %v177 = vpop.f32.mrb[0].mxu0
    %v178 = vpop.f32.mrb[0].mxu0
    %v179 = vadd.f32 %v139, %v178
    %v180 = vpop.f32.mrb[0].mxu0
    %181 = vmatprep.mubr.bf16.mxu0 0
    %182 = vmatmul.mubr.bf16.gmra.mrb[0].mxu0 %v103
    %v183 = vpop.f32.mrb[0].mxu0
    %v184 = vadd.f32 %v139, %v183
    %v185 = vpop.f32.mrb[0].mxu0
    %v186 = vpop.f32.mrb[0].mxu0
    %v187 = vadd.f32 %v139, %v186
    %v188 = vpop.f32.mrb[0].mxu0
    %189 = vmatprep.mubr.bf16.mxu0 0
    %190 = vmatmul.mubr.bf16.gmra.mrb[0].mxu0 %v104
    %v191 = vpop.f32.mrb[0].mxu0
    %v192 = vadd.f32 %v139, %v191
    %v193 = vpop.f32.mrb[0].mxu0
    %v194 = vpop.f32.mrb[0].mxu0
    %v195 = vadd.f32 %v139, %v194
    %v196 = vpop.f32.mrb[0].mxu0
    %197 = vmatprep.mubr.bf16.mxu0 0
    %198 = vmatmul.mubr.bf16.gmra.mrb[0].mxu0 %v105
    %v199 = vpop.f32.mrb[0].mxu0
    %v200 = vadd.f32 %v139, %v199
    %v201 = vpop.f32.mrb[0].mxu0
    %v202 = vpop.f32.mrb[0].mxu0
    %v203 = vadd.f32 %v139, %v202
    %v204 = vpop.f32.mrb[0].mxu0
    %205 = vmatprep.mubr.bf16.mxu0 0
    %206 = vmatmul.mubr.bf16.gmra.mrb[0].mxu0 %v106
    %v207 = vpop.f32.mrb[0].mxu0
    %v208 = vadd.f32 %v139, %v207
    %v209 = vpop.f32.mrb[0].mxu0
    %v210 = vpop.f32.mrb[0].mxu0
    %v211 = vadd.f32 %v139, %v210
    %v212 = vpop.f32.mrb[0].mxu0
    %213 = vmatprep.mubr.bf16.mxu0 0
    %214 = vmatmul.mubr.bf16.gmra.mrb[0].mxu0 %v107
    %v215 = vpop.f32.mrb[0].mxu0
    %v216 = vadd.f32 %v139, %v215
    %v217 = vpop.f32.mrb[0].mxu0
    %v218 = vpop.f32.mrb[0].mxu0
    %v219 = vadd.f32 %v139, %v218
    %v220 = vpop.f32.mrb[0].mxu0
    %221 = vmatprep.mubr.bf16.mxu0 0
    %222 = vmatmul.mubr.bf16.gmra.mrb[0].mxu0 %v108
    %v223 = vpop.f32.mrb[0].mxu0
    %v224 = vadd.f32 %v139, %v223
    %v225 = vpop.f32.mrb[0].mxu0
    %v226 = vpop.f32.mrb[0].mxu0
    %v227 = vadd.f32 %v139, %v226
    %v228 = vpop.f32.mrb[0].mxu0
    %229 = vmatprep.mubr.bf16.mxu0 0
    %230 = vmatmul.mubr.bf16.gmra.mrb[0].mxu0 %v109
    %v231 = vpop.f32.mrb[0].mxu0
    %v232 = vadd.f32 %v139, %v231
    %v233 = vpop.f32.mrb[0].mxu0
    %v234 = vpop.f32.mrb[0].mxu0
    %v235 = vadd.f32 %v139, %v234
    %v236 = vpop.f32.mrb[0].mxu0
    %237 = vdwg.mxu0
    %v238 = vmax.f32 %v176, 0.0
    %v239 = vmax.f32 %v179, 0.0
    %v240 = vmax.f32 %v184, 0.0
    %v241 = vmax.f32 %v187, 0.0
    %v242 = vmax.f32 %v192, 0.0
    %v243 = vmax.f32 %v195, 0.0
    %v244 = vmax.f32 %v200, 0.0
    %v245 = vmax.f32 %v203, 0.0
    %v246 = vmax.f32 %v208, 0.0
    %v247 = vmax.f32 %v211, 0.0
    %v248 = vmax.f32 %v216, 0.0
    %v249 = vmax.f32 %v219, 0.0
    %v250 = vmax.f32 %v224, 0.0
    %v251 = vmax.f32 %v227, 0.0
    %v252 = vmax.f32 %v232, 0.0
    %v253 = vmax.f32 %v235, 0.0
    %v254 = vpack.c.bf16 %v239, %v238
    %v255 = vpack.c.bf16 %v241, %v240
    %v256 = vpack.c.bf16 %v243, %v242
    %v257 = vpack.c.bf16 %v245, %v244
    %v258 = vpack.c.bf16 %v247, %v246
    %v259 = vpack.c.bf16 %v249, %v248
    %v260 = vpack.c.bf16 %v251, %v250
    %v261 = vpack.c.bf16 %v253, %v252
    %v262 = vld [vmem:[#allocation9] sm:$0xff]
    %v263 = vld [vmem:[#allocation9 + $0x8] sm:$0xff]
    %v264 = vld [vmem:[#allocation9 + $0x10] sm:$0xff]
    %v265 = vld [vmem:[#allocation9 + $0x18] sm:$0xff]
    %v266 = vld [vmem:[#allocation9 + $0x20] sm:$0xff]
    %v267 = vld [vmem:[#allocation9 + $0x28] sm:$0xff]
    %v268 = vld [vmem:[#allocation9 + $0x30] sm:$0xff]
    %v269 = vld [vmem:[#allocation9 + $0x38] sm:$0xff]
    %v270 = vld [vmem:[#allocation9 + $0x40] sm:$0xff]
    %v271 = vld [vmem:[#allocation9 + $0x48] sm:$0xff]
    %v272 = vld [vmem:[#allocation9 + $0x50] sm:$0xff]
    %v273 = vld [vmem:[#allocation9 + $0x58] sm:$0xff]
    %v274 = vld [vmem:[#allocation9 + $0x60] sm:$0xff]
    %v275 = vld [vmem:[#allocation9 + $0x68] sm:$0xff]
    %v276 = vld [vmem:[#allocation9 + $0x70] sm:$0xff]
    %v277 = vld [vmem:[#allocation9 + $0x78] sm:$0xff]
    %v278 = vpack.c.bf16 %v263, %v262
    %v279 = vpack.c.bf16 %v265, %v264
    %v280 = vpack.c.bf16 %v267, %v266
    %v281 = vpack.c.bf16 %v269, %v268
    %v282 = vpack.c.bf16 %v271, %v270
    %v283 = vpack.c.bf16 %v273, %v272
    %v284 = vpack.c.bf16 %v275, %v274
    %v285 = vpack.c.bf16 %v277, %v276
    %v286 = vld [vmem:[%s5] sm:$0x1]
    %v288 = vlaneseq
    %v289 = vshrl.u32 %v288, 7
    %v290 = vsub.s32 0, %v289
    %v291 = vrot.slane %v286, %v290
    %293 = vmatprep.subr.bf16.mxu0 0
    %294 = vmatpush1.bf16.msra.mxu0 %v278
    %295 = vmatprep.subr.bf16.mxu0 0
    %296 = vmatpush1.bf16.msra.mxu0 %v279
    %297 = vmatprep.subr.bf16.mxu0 0
    %298 = vmatpush1.bf16.msra.mxu0 %v280
    %299 = vmatprep.subr.bf16.mxu0 0
    %300 = vmatpush1.bf16.msra.mxu0 %v281
    %301 = vmatprep.subr.bf16.mxu0 0
    %302 = vmatpush1.bf16.msra.mxu0 %v282
    %303 = vmatprep.subr.bf16.mxu0 0
    %304 = vmatpush1.bf16.msra.mxu0 %v283
    %305 = vmatprep.subr.bf16.mxu0 0
    %306 = vmatpush1.bf16.msra.mxu0 %v284
    %307 = vmatprep.subr.bf16.mxu0 0
    %308 = vmatpush1.bf16.msra.mxu0 %v285
    %309 = vmatprep.subr.bf16.mxu0 0
    %310 = vmatpush1.bf16.msra.mxu0 0
    %311 = vmatprep.subr.bf16.mxu0 0
    %312 = vmatpush1.bf16.msra.mxu0 0
    %313 = vmatprep.subr.bf16.mxu0 0
    %314 = vmatpush1.bf16.msra.mxu0 0
    %315 = vmatprep.subr.bf16.mxu0 0
    %316 = vmatpush1.bf16.msra.mxu0 0
    %317 = vmatprep.subr.bf16.mxu0 0
    %318 = vmatpush1.bf16.msra.mxu0 0
    %319 = vmatprep.subr.bf16.mxu0 0
    %320 = vmatpush1.bf16.msra.mxu0 0
    %321 = vmatprep.subr.bf16.mxu0 0
    %322 = vmatpush1.bf16.msra.mxu0 0
    %323 = vmatprep.subr.bf16.mxu0 0
    %324 = vmatpush1.bf16.msra.mxu0 0
    %325 = vmatprep.mubr.bf16.mxu0 0
    %326 = vmatmul.mubr.bf16.gmra.mrb[0].mxu0 %v254
    %v327 = vpop.f32.mrb[0].mxu0
    %v328 = vadd.f32 %v291, %v327
    %v329 = vpop.f32.mrb[0].mxu0
    %v330 = vpop.f32.mrb[0].mxu0
    %v331 = vadd.f32 %v291, %v330
    %v332 = vpop.f32.mrb[0].mxu0
    %333 = vmatprep.mubr.bf16.mxu0 0
    %334 = vmatmul.mubr.bf16.gmra.mrb[0].mxu0 %v255
    %v335 = vpop.f32.mrb[0].mxu0
    %v336 = vadd.f32 %v291, %v335
    %v337 = vpop.f32.mrb[0].mxu0
    %v338 = vpop.f32.mrb[0].mxu0
    %v339 = vadd.f32 %v291, %v338
    %v340 = vpop.f32.mrb[0].mxu0
    %341 = vmatprep.mubr.bf16.mxu0 0
    %342 = vmatmul.mubr.bf16.gmra.mrb[0].mxu0 %v256
    %v343 = vpop.f32.mrb[0].mxu0
    %v344 = vadd.f32 %v291, %v343
    %v345 = vpop.f32.mrb[0].mxu0
    %v346 = vpop.f32.mrb[0].mxu0
    %v347 = vadd.f32 %v291, %v346
    %v348 = vpop.f32.mrb[0].mxu0
    %349 = vmatprep.mubr.bf16.mxu0 0
    %350 = vmatmul.mubr.bf16.gmra.mrb[0].mxu0 %v257
    %v351 = vpop.f32.mrb[0].mxu0
    %v352 = vadd.f32 %v291, %v351
    %v353 = vpop.f32.mrb[0].mxu0
    %v354 = vpop.f32.mrb[0].mxu0
    %v355 = vadd.f32 %v291, %v354
    %v356 = vpop.f32.mrb[0].mxu0
    %357 = vmatprep.mubr.bf16.mxu0 0
    %358 = vmatmul.mubr.bf16.gmra.mrb[0].mxu0 %v258
    %v359 = vpop.f32.mrb[0].mxu0
    %v360 = vadd.f32 %v291, %v359
    %v361 = vpop.f32.mrb[0].mxu0
    %v362 = vpop.f32.mrb[0].mxu0
    %v363 = vadd.f32 %v291, %v362
    %v364 = vpop.f32.mrb[0].mxu0
    %365 = vmatprep.mubr.bf16.mxu0 0
    %366 = vmatmul.mubr.bf16.gmra.mrb[0].mxu0 %v259
    %v367 = vpop.f32.mrb[0].mxu0
    %v368 = vadd.f32 %v291, %v367
    %v369 = vpop.f32.mrb[0].mxu0
    %v370 = vpop.f32.mrb[0].mxu0
    %v371 = vadd.f32 %v291, %v370
    %v372 = vpop.f32.mrb[0].mxu0
    %373 = vmatprep.mubr.bf16.mxu0 0
    %374 = vmatmul.mubr.bf16.gmra.mrb[0].mxu0 %v260
    %v375 = vpop.f32.mrb[0].mxu0
    %v376 = vadd.f32 %v291, %v375
    %v377 = vpop.f32.mrb[0].mxu0
    %v378 = vpop.f32.mrb[0].mxu0
    %v379 = vadd.f32 %v291, %v378
    %v380 = vpop.f32.mrb[0].mxu0
    %381 = vmatprep.mubr.bf16.mxu0 0
    %382 = vmatmul.mubr.bf16.gmra.mrb[0].mxu0 %v261
    %v383 = vpop.f32.mrb[0].mxu0
    %v384 = vadd.f32 %v291, %v383
    %v385 = vpop.f32.mrb[0].mxu0
    %v386 = vpop.f32.mrb[0].mxu0
    %v387 = vadd.f32 %v291, %v386
    %v388 = vpop.f32.mrb[0].mxu0
    %389 = vdwg.mxu0
    %v390 = vmax.f32 %v328, 0.0
    %v391 = vmax.f32 %v331, 0.0
    %v392 = vmax.f32 %v336, 0.0
    %v393 = vmax.f32 %v339, 0.0
    %v394 = vmax.f32 %v344, 0.0
    %v395 = vmax.f32 %v347, 0.0
    %v396 = vmax.f32 %v352, 0.0
    %v397 = vmax.f32 %v355, 0.0
    %v398 = vmax.f32 %v360, 0.0
    %v399 = vmax.f32 %v363, 0.0
    %v400 = vmax.f32 %v368, 0.0
    %v401 = vmax.f32 %v371, 0.0
    %v402 = vmax.f32 %v376, 0.0
    %v403 = vmax.f32 %v379, 0.0
    %v404 = vmax.f32 %v384, 0.0
    %v405 = vmax.f32 %v387, 0.0
    %v406 = vld [vmem:[%s6] sm:$0x1]
    %v408 = vlaneseq
    %v409 = vshrl.u32 %v408, 7
    %v410 = vsub.s32 0, %v409
    %v411 = vrot.slane %v406, %v410
    %v413 = vmul.f32 %v390, %v411
    %v414 = vmul.f32 %v391, %v411
    %v415 = vmul.f32 %v392, %v411
    %v416 = vmul.f32 %v393, %v411
    %v417 = vmul.f32 %v394, %v411
    %v418 = vmul.f32 %v395, %v411
    %v419 = vmul.f32 %v396, %v411
    %v420 = vmul.f32 %v397, %v411
    %v421 = vmul.f32 %v398, %v411
    %v422 = vmul.f32 %v399, %v411
    %v423 = vmul.f32 %v400, %v411
    %v424 = vmul.f32 %v401, %v411
    %v425 = vmul.f32 %v402, %v411
    %v426 = vmul.f32 %v403, %v411
    %v427 = vmul.f32 %v404, %v411
    %v428 = vmul.f32 %v405, %v411
    %429 = vadd.xlane.f32.xlu0 %v413
    %v430 = vpop.xlane.xlu0 %429
    %431 = vadd.xlane.f32.xlu0 %v414
    %v432 = vpop.xlane.xlu0 %431
    %433 = vadd.xlane.f32.xlu0 %v415
    %v434 = vpop.xlane.xlu0 %433
    %435 = vadd.xlane.f32.xlu0 %v416
    %v436 = vpop.xlane.xlu0 %435
    %437 = vadd.xlane.f32.xlu0 %v417
    %v438 = vpop.xlane.xlu0 %437
    %439 = vadd.xlane.f32.xlu0 %v418
    %v440 = vpop.xlane.xlu0 %439
    %441 = vadd.xlane.f32.xlu0 %v419
    %v442 = vpop.xlane.xlu0 %441
    %443 = vadd.xlane.f32.xlu0 %v420
    %v444 = vpop.xlane.xlu0 %443
    %445 = vadd.xlane.f32.xlu0 %v421
    %v446 = vpop.xlane.xlu0 %445
    %447 = vadd.xlane.f32.xlu0 %v422
    %v448 = vpop.xlane.xlu0 %447
    %449 = vadd.xlane.f32.xlu0 %v423
    %v450 = vpop.xlane.xlu0 %449
    %451 = vadd.xlane.f32.xlu0 %v424
    %v452 = vpop.xlane.xlu0 %451
    %453 = vadd.xlane.f32.xlu0 %v425
    %v454 = vpop.xlane.xlu0 %453
    %455 = vadd.xlane.f32.xlu0 %v426
    %v456 = vpop.xlane.xlu0 %455
    %457 = vadd.xlane.f32.xlu0 %v427
    %v458 = vpop.xlane.xlu0 %457
    %459 = vadd.xlane.f32.xlu0 %v428
    %v460 = vpop.xlane.xlu0 %459
    %v461 = vld [vmem:[%s7] sm:$0x1]
    %463 = vset.pattern.permute.xlu0 0
    %464 = vperm.xlu0 %463, %v461
    %v465 = vpop.permute.xlu0 %464
    %v466 = vlaneseq
    %v467 = vshrl.u32 %v466, 7
    %v468 = vsub.s32 0, %v467
    %v469 = vrot.slane %v465, %v468
    %v471 = vadd.f32 %v430, %v469
    %v472 = vadd.f32 %v432, %v469
    %v473 = vadd.f32 %v434, %v469
    %v474 = vadd.f32 %v436, %v469
    %v475 = vadd.f32 %v438, %v469
    %v476 = vadd.f32 %v440, %v469
    %v477 = vadd.f32 %v442, %v469
    %v478 = vadd.f32 %v444, %v469
    %v479 = vadd.f32 %v446, %v469
    %v480 = vadd.f32 %v448, %v469
    %v481 = vadd.f32 %v450, %v469
    %v482 = vadd.f32 %v452, %v469
    %v483 = vadd.f32 %v454, %v469
    %v484 = vadd.f32 %v456, %v469
    %v485 = vadd.f32 %v458, %v469
    %v486 = vadd.f32 %v460, %v469
    %v487 = vxor.u32 %v471, 2147483648
    %v488 = vxor.u32 %v472, 2147483648
    %v489 = vxor.u32 %v473, 2147483648
    %v490 = vxor.u32 %v474, 2147483648
    %v491 = vxor.u32 %v475, 2147483648
    %v492 = vxor.u32 %v476, 2147483648
    %v493 = vxor.u32 %v477, 2147483648
    %v494 = vxor.u32 %v478, 2147483648
    %v495 = vxor.u32 %v479, 2147483648
    %v496 = vxor.u32 %v480, 2147483648
    %v497 = vxor.u32 %v481, 2147483648
    %v498 = vxor.u32 %v482, 2147483648
    %v499 = vxor.u32 %v483, 2147483648
    %v500 = vxor.u32 %v484, 2147483648
    %v501 = vxor.u32 %v485, 2147483648
    %v502 = vxor.u32 %v486, 2147483648
    %v503 = vmul.f32 %v487, 1.442695
    %v504 = vpow.pop %v503
    %v505 = vmul.f32 %v488, 1.442695
    %v506 = vpow.pop %v505
    %v507 = vmul.f32 %v489, 1.442695
    %v508 = vpow.pop %v507
    %v509 = vmul.f32 %v490, 1.442695
    %v510 = vpow.pop %v509
    %v511 = vmul.f32 %v491, 1.442695
    %v512 = vpow.pop %v511
    %v513 = vmul.f32 %v492, 1.442695
    %v514 = vpow.pop %v513
    %v515 = vmul.f32 %v493, 1.442695
    %v516 = vpow.pop %v515
    %v517 = vmul.f32 %v494, 1.442695
    %v518 = vpow.pop %v517
    %v519 = vmul.f32 %v495, 1.442695
    %v520 = vpow.pop %v519
    %v521 = vmul.f32 %v496, 1.442695
    %v522 = vpow.pop %v521
    %v523 = vmul.f32 %v497, 1.442695
    %v524 = vpow.pop %v523
    %v525 = vmul.f32 %v498, 1.442695
    %v526 = vpow.pop %v525
    %v527 = vmul.f32 %v499, 1.442695
    %v528 = vpow.pop %v527
    %v529 = vmul.f32 %v500, 1.442695
    %v530 = vpow.pop %v529
    %v531 = vmul.f32 %v501, 1.442695
    %v532 = vpow.pop %v531
    %v533 = vmul.f32 %v502, 1.442695
    %v534 = vpow.pop %v533
    %v535 = vadd.f32 %v504, 1.0
    %v536 = vadd.f32 %v506, 1.0
    %v537 = vadd.f32 %v508, 1.0
    %v538 = vadd.f32 %v510, 1.0
    %v539 = vadd.f32 %v512, 1.0
    %v540 = vadd.f32 %v514, 1.0
    %v541 = vadd.f32 %v516, 1.0
    %v542 = vadd.f32 %v518, 1.0
    %v543 = vadd.f32 %v520, 1.0
    %v544 = vadd.f32 %v522, 1.0
    %v545 = vadd.f32 %v524, 1.0
    %v546 = vadd.f32 %v526, 1.0
    %v547 = vadd.f32 %v528, 1.0
    %v548 = vadd.f32 %v530, 1.0
    %v549 = vadd.f32 %v532, 1.0
    %v550 = vadd.f32 %v534, 1.0
    %v551 = vrcp.pop %v535
    %v552 = vmul.f32 1.0, %v551
    %v553 = vrcp.pop %v536
    %v554 = vmul.f32 1.0, %v553
    %v555 = vrcp.pop %v537
    %v556 = vmul.f32 1.0, %v555
    %v557 = vrcp.pop %v538
    %v558 = vmul.f32 1.0, %v557
    %v559 = vrcp.pop %v539
    %v560 = vmul.f32 1.0, %v559
    %v561 = vrcp.pop %v540
    %v562 = vmul.f32 1.0, %v561
    %v563 = vrcp.pop %v541
    %v564 = vmul.f32 1.0, %v563
    %v565 = vrcp.pop %v542
    %v566 = vmul.f32 1.0, %v565
    %v567 = vrcp.pop %v543
    %v568 = vmul.f32 1.0, %v567
    %v569 = vrcp.pop %v544
    %v570 = vmul.f32 1.0, %v569
    %v571 = vrcp.pop %v545
    %v572 = vmul.f32 1.0, %v571
    %v573 = vrcp.pop %v546
    %v574 = vmul.f32 1.0, %v573
    %v575 = vrcp.pop %v547
    %v576 = vmul.f32 1.0, %v575
    %v577 = vrcp.pop %v548
    %v578 = vmul.f32 1.0, %v577
    %v579 = vrcp.pop %v549
    %v580 = vmul.f32 1.0, %v579
    %v581 = vrcp.pop %v550
    %v582 = vmul.f32 1.0, %v581
    %599 = vset.pattern.permute.xlu0 0
    %600 = vperm.xlu0 %599, %v552
    %v601 = vpop.permute.xlu0 %600
    %602 = vset.pattern.permute.xlu0 0
    %603 = vperm.xlu0 %602, %v554
    %v604 = vpop.permute.xlu0 %603
    %605 = vset.pattern.permute.xlu0 0
    %606 = vperm.xlu0 %605, %v556
    %v607 = vpop.permute.xlu0 %606
    %608 = vset.pattern.permute.xlu0 0
    %609 = vperm.xlu0 %608, %v558
    %v610 = vpop.permute.xlu0 %609
    %611 = vset.pattern.permute.xlu0 0
    %612 = vperm.xlu0 %611, %v560
    %v613 = vpop.permute.xlu0 %612
    %614 = vset.pattern.permute.xlu0 0
    %615 = vperm.xlu0 %614, %v562
    %v616 = vpop.permute.xlu0 %615
    %617 = vset.pattern.permute.xlu0 0
    %618 = vperm.xlu0 %617, %v564
    %v619 = vpop.permute.xlu0 %618
    %620 = vset.pattern.permute.xlu0 0
    %621 = vperm.xlu0 %620, %v566
    %v622 = vpop.permute.xlu0 %621
    %623 = vset.pattern.permute.xlu0 0
    %624 = vperm.xlu0 %623, %v568
    %v625 = vpop.permute.xlu0 %624
    %626 = vset.pattern.permute.xlu0 0
    %627 = vperm.xlu0 %626, %v570
    %v628 = vpop.permute.xlu0 %627
    %629 = vset.pattern.permute.xlu0 0
    %630 = vperm.xlu0 %629, %v572
    %v631 = vpop.permute.xlu0 %630
    %632 = vset.pattern.permute.xlu0 0
    %633 = vperm.xlu0 %632, %v574
    %v634 = vpop.permute.xlu0 %633
    %635 = vset.pattern.permute.xlu0 0
    %636 = vperm.xlu0 %635, %v576
    %v637 = vpop.permute.xlu0 %636
    %638 = vset.pattern.permute.xlu0 0
    %639 = vperm.xlu0 %638, %v578
    %v640 = vpop.permute.xlu0 %639
    %641 = vset.pattern.permute.xlu0 0
    %642 = vperm.xlu0 %641, %v580
    %v643 = vpop.permute.xlu0 %642
    %644 = vset.pattern.permute.xlu0 0
    %645 = vperm.xlu0 %644, %v582
    %v646 = vpop.permute.xlu0 %645
    %v647 = vlaneseq
    %v648 = vand.u32 %v647, 127
    %v649 = vlaneseq
    %v650 = vshrl.u32 %v649, 7
    %v651 = vsub.s32 %v648, %v650
    %v652 = vrot.slane %v601, %v651
    %v653 = vadd.s32 %v648, 4294967288
    %v654 = vlaneseq
    %v655 = vshrl.u32 %v654, 7
    %v656 = vsub.s32 %v653, %v655
    %v657 = vrot.slane %v604, %v656
    %vm658 = vcmask 130112
    %v659 = vsel %vm658, %v657, %v652
    %v660 = vadd.s32 %v648, 4294967280
    %v661 = vlaneseq
    %v662 = vshrl.u32 %v661, 7
    %v663 = vsub.s32 %v660, %v662
    %v664 = vrot.slane %v607, %v663
    %vm665 = vcmask 195712
    %v666 = vsel %vm665, %v664, %v659
    %v667 = vadd.s32 %v648, 4294967272
    %v668 = vlaneseq
    %v669 = vshrl.u32 %v668, 7
    %v670 = vsub.s32 %v667, %v669
    %v671 = vrot.slane %v610, %v670
    %vm672 = vcmask 261312
    %v673 = vsel %vm672, %v671, %v666
    %v674 = vadd.s32 %v648, 4294967264
    %v675 = vlaneseq
    %v676 = vshrl.u32 %v675, 7
    %v677 = vsub.s32 %v674, %v676
    %v678 = vrot.slane %v613, %v677
    %vm679 = vcmask 326912
    %v680 = vsel %vm679, %v678, %v673
    %v681 = vadd.s32 %v648, 4294967256
    %v682 = vlaneseq
    %v683 = vshrl.u32 %v682, 7
    %v684 = vsub.s32 %v681, %v683
    %v685 = vrot.slane %v616, %v684
    %vm686 = vcmask 392512
    %v687 = vsel %vm686, %v685, %v680
    %v688 = vadd.s32 %v648, 4294967248
    %v689 = vlaneseq
    %v690 = vshrl.u32 %v689, 7
    %v691 = vsub.s32 %v688, %v690
    %v692 = vrot.slane %v619, %v691
    %vm693 = vcmask 458112
    %v694 = vsel %vm693, %v692, %v687
    %v695 = vadd.s32 %v648, 4294967240
    %v696 = vlaneseq
    %v697 = vshrl.u32 %v696, 7
    %v698 = vsub.s32 %v695, %v697
    %v699 = vrot.slane %v622, %v698
    %vm700 = vcmask 523712
    %v701 = vsel %vm700, %v699, %v694
    %v702 = vadd.s32 %v648, 4294967232
    %v703 = vlaneseq
    %v704 = vshrl.u32 %v703, 7
    %v705 = vsub.s32 %v702, %v704
    %v706 = vrot.slane %v625, %v705
    %vm707 = vcmask 589312
    %v708 = vsel %vm707, %v706, %v701
    %v709 = vadd.s32 %v648, 4294967224
    %v710 = vlaneseq
    %v711 = vshrl.u32 %v710, 7
    %v712 = vsub.s32 %v709, %v711
    %v713 = vrot.slane %v628, %v712
    %vm714 = vcmask 654912
    %v715 = vsel %vm714, %v713, %v708
    %v716 = vadd.s32 %v648, 4294967216
    %v717 = vlaneseq
    %v718 = vshrl.u32 %v717, 7
    %v719 = vsub.s32 %v716, %v718
    %v720 = vrot.slane %v631, %v719
    %vm721 = vcmask 720512
    %v722 = vsel %vm721, %v720, %v715
    %v723 = vadd.s32 %v648, 4294967208
    %v724 = vlaneseq
    %v725 = vshrl.u32 %v724, 7
    %v726 = vsub.s32 %v723, %v725
    %v727 = vrot.slane %v634, %v726
    %vm728 = vcmask 786112
    %v729 = vsel %vm728, %v727, %v722
    %v730 = vadd.s32 %v648, 4294967200
    %v731 = vlaneseq
    %v732 = vshrl.u32 %v731, 7
    %v733 = vsub.s32 %v730, %v732
    %v734 = vrot.slane %v637, %v733
    %vm735 = vcmask 851712
    %v736 = vsel %vm735, %v734, %v729
    %v737 = vadd.s32 %v648, 4294967192
    %v738 = vlaneseq
    %v739 = vshrl.u32 %v738, 7
    %v740 = vsub.s32 %v737, %v739
    %v741 = vrot.slane %v640, %v740
    %vm742 = vcmask 917312
    %v743 = vsel %vm742, %v741, %v736
    %v744 = vadd.s32 %v648, 4294967184
    %v745 = vlaneseq
    %v746 = vshrl.u32 %v745, 7
    %v747 = vsub.s32 %v744, %v746
    %v748 = vrot.slane %v643, %v747
    %vm749 = vcmask 982912
    %v750 = vsel %vm749, %v748, %v743
    %v751 = vadd.s32 %v648, 4294967176
    %v752 = vlaneseq
    %v753 = vshrl.u32 %v752, 7
    %v754 = vsub.s32 %v751, %v753
    %v755 = vrot.slane %v646, %v754
    %vm756 = vcmask 1048512
    %v757 = vsel %vm756, %v755, %v750
    %759 = vst [vmem:[#allocation10] sm:$0x1] %v757
    %s760 = sld [smem:[#allocation2]]
    %v761 = vstv %s760
    %v762 = vmul.f32 %v761, %v552
    %v763 = vmul.f32 %v761, %v554
    %v764 = vmul.f32 %v761, %v556
    %v765 = vmul.f32 %v761, %v558
    %v766 = vmul.f32 %v761, %v560
    %v767 = vmul.f32 %v761, %v562
    %v768 = vmul.f32 %v761, %v564
    %v769 = vmul.f32 %v761, %v566
    %v770 = vmul.f32 %v761, %v568
    %v771 = vmul.f32 %v761, %v570
    %v772 = vmul.f32 %v761, %v572
    %v773 = vmul.f32 %v761, %v574
    %v774 = vmul.f32 %v761, %v576
    %v775 = vmul.f32 %v761, %v578
    %v776 = vmul.f32 %v761, %v580
    %v777 = vmul.f32 %v761, %v582
    %v778 = vadd.f32 %v762, 0.0
    %v779 = vadd.f32 %v763, 0.0
    %v780 = vadd.f32 %v764, 0.0
    %v781 = vadd.f32 %v765, 0.0
    %v782 = vadd.f32 %v766, 0.0
    %v783 = vadd.f32 %v767, 0.0
    %v784 = vadd.f32 %v768, 0.0
    %v785 = vadd.f32 %v769, 0.0
    %v786 = vadd.f32 %v770, 0.0
    %v787 = vadd.f32 %v771, 0.0
    %v788 = vadd.f32 %v772, 0.0
    %v789 = vadd.f32 %v773, 0.0
    %v790 = vadd.f32 %v774, 0.0
    %v791 = vadd.f32 %v775, 0.0
    %v792 = vadd.f32 %v776, 0.0
    %v793 = vadd.f32 %v777, 0.0
    %v794 = vld [vmem:[#allocation6 + $0x8] sm:$0xff]
    %v795 = vld [vmem:[#allocation6 + $0x28] sm:$0xff]
    %v796 = vld [vmem:[#allocation6 + $0x48] sm:$0xff]
    %v797 = vld [vmem:[#allocation6 + $0x68] sm:$0xff]
    %v798 = vld [vmem:[#allocation6 + $0x88] sm:$0xff]
    %v799 = vld [vmem:[#allocation6 + $0xa8] sm:$0xff]
    %v800 = vld [vmem:[#allocation6 + $0xc8] sm:$0xff]
    %v801 = vld [vmem:[#allocation6 + $0xe8] sm:$0xff]
    %v802 = vld [vmem:[#allocation6 + $0x108] sm:$0xff]
    %v803 = vld [vmem:[#allocation6 + $0x128] sm:$0xff]
    %v804 = vld [vmem:[#allocation6 + $0x148] sm:$0xff]
    %v805 = vld [vmem:[#allocation6 + $0x168] sm:$0xff]
    %v806 = vld [vmem:[#allocation6 + $0x188] sm:$0xff]
    %v807 = vld [vmem:[#allocation6 + $0x1a8] sm:$0xff]
    %v808 = vld [vmem:[#allocation6 + $0x1c8] sm:$0xff]
    %v809 = vld [vmem:[#allocation6 + $0x1e8] sm:$0xff]
    %v810 = vpack.c.bf16 %v795, %v794
    %v811 = vpack.c.bf16 %v797, %v796
    %v812 = vpack.c.bf16 %v799, %v798
    %v813 = vpack.c.bf16 %v801, %v800
    %v814 = vpack.c.bf16 %v803, %v802
    %v815 = vpack.c.bf16 %v805, %v804
    %v816 = vpack.c.bf16 %v807, %v806
    %v817 = vpack.c.bf16 %v809, %v808
    %s818 = scalar_lea.vmem [#allocation7], 128
    %v819 = vld [vmem:[%s818] sm:$0xff]
    %v820 = vld [vmem:[%s818 + $0x8] sm:$0xff]
    %v821 = vld [vmem:[%s818 + $0x10] sm:$0xff]
    %v822 = vld [vmem:[%s818 + $0x18] sm:$0xff]
    %v823 = vld [vmem:[%s818 + $0x20] sm:$0xff]
    %v824 = vld [vmem:[%s818 + $0x28] sm:$0xff]
    %v825 = vld [vmem:[%s818 + $0x30] sm:$0xff]
    %v826 = vld [vmem:[%s818 + $0x38] sm:$0xff]
    %v827 = vld [vmem:[%s818 + $0x40] sm:$0xff]
    %v828 = vld [vmem:[%s818 + $0x48] sm:$0xff]
    %v829 = vld [vmem:[%s818 + $0x50] sm:$0xff]
    %v830 = vld [vmem:[%s818 + $0x58] sm:$0xff]
    %v831 = vld [vmem:[%s818 + $0x60] sm:$0xff]
    %v832 = vld [vmem:[%s818 + $0x68] sm:$0xff]
    %v833 = vld [vmem:[%s818 + $0x70] sm:$0xff]
    %v834 = vld [vmem:[%s818 + $0x78] sm:$0xff]
    %v835 = vpack.c.bf16 %v820, %v819
    %v836 = vpack.c.bf16 %v822, %v821
    %v837 = vpack.c.bf16 %v824, %v823
    %v838 = vpack.c.bf16 %v826, %v825
    %v839 = vpack.c.bf16 %v828, %v827
    %v840 = vpack.c.bf16 %v830, %v829
    %v841 = vpack.c.bf16 %v832, %v831
    %v842 = vpack.c.bf16 %v834, %v833
    %s843 = scalar_lea.vmem %s3, 1
    %v844 = vld [vmem:[%s843] sm:$0x1]
    %v846 = vlaneseq
    %v847 = vshrl.u32 %v846, 7
    %v848 = vsub.s32 0, %v847
    %v849 = vrot.slane %v844, %v848
    %851 = vmatprep.subr.bf16.mxu0 0
    %852 = vmatpush1.bf16.msra.mxu0 %v835
    %853 = vmatprep.subr.bf16.mxu0 0
    %854 = vmatpush1.bf16.msra.mxu0 %v836
    %855 = vmatprep.subr.bf16.mxu0 0
    %856 = vmatpush1.bf16.msra.mxu0 %v837
    %857 = vmatprep.subr.bf16.mxu0 0
    %858 = vmatpush1.bf16.msra.mxu0 %v838
    %859 = vmatprep.subr.bf16.mxu0 0
    %860 = vmatpush1.bf16.msra.mxu0 %v839
    %861 = vmatprep.subr.bf16.mxu0 0
    %862 = vmatpush1.bf16.msra.mxu0 %v840
    %863 = vmatprep.subr.bf16.mxu0 0
    %864 = vmatpush1.bf16.msra.mxu0 %v841
    %865 = vmatprep.subr.bf16.mxu0 0
    %866 = vmatpush1.bf16.msra.mxu0 %v842
    %867 = vmatprep.subr.bf16.mxu0 0
    %868 = vmatpush1.bf16.msra.mxu0 0
    %869 = vmatprep.subr.bf16.mxu0 0
    %870 = vmatpush1.bf16.msra.mxu0 0
    %871 = vmatprep.subr.bf16.mxu0 0
    %872 = vmatpush1.bf16.msra.mxu0 0
    %873 = vmatprep.subr.bf16.mxu0 0
    %874 = vmatpush1.bf16.msra.mxu0 0
    %875 = vmatprep.subr.bf16.mxu0 0
    %876 = vmatpush1.bf16.msra.mxu0 0
    %877 = vmatprep.subr.bf16.mxu0 0
    %878 = vmatpush1.bf16.msra.mxu0 0
    %879 = vmatprep.subr.bf16.mxu0 0
    %880 = vmatpush1.bf16.msra.mxu0 0
    %881 = vmatprep.subr.bf16.mxu0 0
    %882 = vmatpush1.bf16.msra.mxu0 0
    %883 = vmatprep.mubr.bf16.mxu0 0
    %884 = vmatmul.mubr.bf16.gmra.mrb[0].mxu0 %v810
    %v885 = vpop.f32.mrb[0].mxu0
    %v886 = vadd.f32 %v849, %v885
    %v887 = vpop.f32.mrb[0].mxu0
    %v888 = vpop.f32.mrb[0].mxu0
    %v889 = vadd.f32 %v849, %v888
    %v890 = vpop.f32.mrb[0].mxu0
    %891 = vmatprep.mubr.bf16.mxu0 0
    %892 = vmatmul.mubr.bf16.gmra.mrb[0].mxu0 %v811
    %v893 = vpop.f32.mrb[0].mxu0
    %v894 = vadd.f32 %v849, %v893
    %v895 = vpop.f32.mrb[0].mxu0
    %v896 = vpop.f32.mrb[0].mxu0
    %v897 = vadd.f32 %v849, %v896
    %v898 = vpop.f32.mrb[0].mxu0
    %899 = vmatprep.mubr.bf16.mxu0 0
    %900 = vmatmul.mubr.bf16.gmra.mrb[0].mxu0 %v812
    %v901 = vpop.f32.mrb[0].mxu0
    %v902 = vadd.f32 %v849, %v901
    %v903 = vpop.f32.mrb[0].mxu0
    %v904 = vpop.f32.mrb[0].mxu0
    %v905 = vadd.f32 %v849, %v904
    %v906 = vpop.f32.mrb[0].mxu0
    %907 = vmatprep.mubr.bf16.mxu0 0
    %908 = vmatmul.mubr.bf16.gmra.mrb[0].mxu0 %v813
    %v909 = vpop.f32.mrb[0].mxu0
    %v910 = vadd.f32 %v849, %v909
    %v911 = vpop.f32.mrb[0].mxu0
    %v912 = vpop.f32.mrb[0].mxu0
    %v913 = vadd.f32 %v849, %v912
    %v914 = vpop.f32.mrb[0].mxu0
    %915 = vmatprep.mubr.bf16.mxu0 0
    %916 = vmatmul.mubr.bf16.gmra.mrb[0].mxu0 %v814
    %v917 = vpop.f32.mrb[0].mxu0
    %v918 = vadd.f32 %v849, %v917
    %v919 = vpop.f32.mrb[0].mxu0
    %v920 = vpop.f32.mrb[0].mxu0
    %v921 = vadd.f32 %v849, %v920
    %v922 = vpop.f32.mrb[0].mxu0
    %923 = vmatprep.mubr.bf16.mxu0 0
    %924 = vmatmul.mubr.bf16.gmra.mrb[0].mxu0 %v815
    %v925 = vpop.f32.mrb[0].mxu0
    %v926 = vadd.f32 %v849, %v925
    %v927 = vpop.f32.mrb[0].mxu0
    %v928 = vpop.f32.mrb[0].mxu0
    %v929 = vadd.f32 %v849, %v928
    %v930 = vpop.f32.mrb[0].mxu0
    %931 = vmatprep.mubr.bf16.mxu0 0
    %932 = vmatmul.mubr.bf16.gmra.mrb[0].mxu0 %v816
    %v933 = vpop.f32.mrb[0].mxu0
    %v934 = vadd.f32 %v849, %v933
    %v935 = vpop.f32.mrb[0].mxu0
    %v936 = vpop.f32.mrb[0].mxu0
    %v937 = vadd.f32 %v849, %v936
    %v938 = vpop.f32.mrb[0].mxu0
    %939 = vmatprep.mubr.bf16.mxu0 0
    %940 = vmatmul.mubr.bf16.gmra.mrb[0].mxu0 %v817
    %v941 = vpop.f32.mrb[0].mxu0
    %v942 = vadd.f32 %v849, %v941
    %v943 = vpop.f32.mrb[0].mxu0
    %v944 = vpop.f32.mrb[0].mxu0
    %v945 = vadd.f32 %v849, %v944
    %v946 = vpop.f32.mrb[0].mxu0
    %947 = vdwg.mxu0
    %v948 = vmax.f32 %v886, 0.0
    %v949 = vmax.f32 %v889, 0.0
    %v950 = vmax.f32 %v894, 0.0
    %v951 = vmax.f32 %v897, 0.0
    %v952 = vmax.f32 %v902, 0.0
    %v953 = vmax.f32 %v905, 0.0
    %v954 = vmax.f32 %v910, 0.0
    %v955 = vmax.f32 %v913, 0.0
    %v956 = vmax.f32 %v918, 0.0
    %v957 = vmax.f32 %v921, 0.0
    %v958 = vmax.f32 %v926, 0.0
    %v959 = vmax.f32 %v929, 0.0
    %v960 = vmax.f32 %v934, 0.0
    %v961 = vmax.f32 %v937, 0.0
    %v962 = vmax.f32 %v942, 0.0
    %v963 = vmax.f32 %v945, 0.0
    %v964 = vpack.c.bf16 %v949, %v948
    %v965 = vpack.c.bf16 %v951, %v950
    %v966 = vpack.c.bf16 %v953, %v952
    %v967 = vpack.c.bf16 %v955, %v954
    %v968 = vpack.c.bf16 %v957, %v956
    %v969 = vpack.c.bf16 %v959, %v958
    %v970 = vpack.c.bf16 %v961, %v960
    %v971 = vpack.c.bf16 %v963, %v962
    %s972 = scalar_lea.vmem [#allocation9], 128
    %v973 = vld [vmem:[%s972] sm:$0xff]
    %v974 = vld [vmem:[%s972 + $0x8] sm:$0xff]
    %v975 = vld [vmem:[%s972 + $0x10] sm:$0xff]
    %v976 = vld [vmem:[%s972 + $0x18] sm:$0xff]
    %v977 = vld [vmem:[%s972 + $0x20] sm:$0xff]
    %v978 = vld [vmem:[%s972 + $0x28] sm:$0xff]
    %v979 = vld [vmem:[%s972 + $0x30] sm:$0xff]
    %v980 = vld [vmem:[%s972 + $0x38] sm:$0xff]
    %v981 = vld [vmem:[%s972 + $0x40] sm:$0xff]
    %v982 = vld [vmem:[%s972 + $0x48] sm:$0xff]
    %v983 = vld [vmem:[%s972 + $0x50] sm:$0xff]
    %v984 = vld [vmem:[%s972 + $0x58] sm:$0xff]
    %v985 = vld [vmem:[%s972 + $0x60] sm:$0xff]
    %v986 = vld [vmem:[%s972 + $0x68] sm:$0xff]
    %v987 = vld [vmem:[%s972 + $0x70] sm:$0xff]
    %v988 = vld [vmem:[%s972 + $0x78] sm:$0xff]
    %v989 = vpack.c.bf16 %v974, %v973
    %v990 = vpack.c.bf16 %v976, %v975
    %v991 = vpack.c.bf16 %v978, %v977
    %v992 = vpack.c.bf16 %v980, %v979
    %v993 = vpack.c.bf16 %v982, %v981
    %v994 = vpack.c.bf16 %v984, %v983
    %v995 = vpack.c.bf16 %v986, %v985
    %v996 = vpack.c.bf16 %v988, %v987
    %s997 = scalar_lea.vmem %s5, 1
    %v998 = vld [vmem:[%s997] sm:$0x1]
    %v1000 = vlaneseq
    %v1001 = vshrl.u32 %v1000, 7
    %v1002 = vsub.s32 0, %v1001
    %v1003 = vrot.slane %v998, %v1002
    %1005 = vmatprep.subr.bf16.mxu0 0
    %1006 = vmatpush1.bf16.msra.mxu0 %v989
    %1007 = vmatprep.subr.bf16.mxu0 0
    %1008 = vmatpush1.bf16.msra.mxu0 %v990
    %1009 = vmatprep.subr.bf16.mxu0 0
    %1010 = vmatpush1.bf16.msra.mxu0 %v991
    %1011 = vmatprep.subr.bf16.mxu0 0
    %1012 = vmatpush1.bf16.msra.mxu0 %v992
    %1013 = vmatprep.subr.bf16.mxu0 0
    %1014 = vmatpush1.bf16.msra.mxu0 %v993
    %1015 = vmatprep.subr.bf16.mxu0 0
    %1016 = vmatpush1.bf16.msra.mxu0 %v994
    %1017 = vmatprep.subr.bf16.mxu0 0
    %1018 = vmatpush1.bf16.msra.mxu0 %v995
    %1019 = vmatprep.subr.bf16.mxu0 0
    %1020 = vmatpush1.bf16.msra.mxu0 %v996
    %1021 = vmatprep.subr.bf16.mxu0 0
    %1022 = vmatpush1.bf16.msra.mxu0 0
    %1023 = vmatprep.subr.bf16.mxu0 0
    %1024 = vmatpush1.bf16.msra.mxu0 0
    %1025 = vmatprep.subr.bf16.mxu0 0
    %1026 = vmatpush1.bf16.msra.mxu0 0
    %1027 = vmatprep.subr.bf16.mxu0 0
    %1028 = vmatpush1.bf16.msra.mxu0 0
    %1029 = vmatprep.subr.bf16.mxu0 0
    %1030 = vmatpush1.bf16.msra.mxu0 0
    %1031 = vmatprep.subr.bf16.mxu0 0
    %1032 = vmatpush1.bf16.msra.mxu0 0
    %1033 = vmatprep.subr.bf16.mxu0 0
    %1034 = vmatpush1.bf16.msra.mxu0 0
    %1035 = vmatprep.subr.bf16.mxu0 0
    %1036 = vmatpush1.bf16.msra.mxu0 0
    %1037 = vmatprep.mubr.bf16.mxu0 0
    %1038 = vmatmul.mubr.bf16.gmra.mrb[0].mxu0 %v964
    %v1039 = vpop.f32.mrb[0].mxu0
    %v1040 = vadd.f32 %v1003, %v1039
    %v1041 = vpop.f32.mrb[0].mxu0
    %v1042 = vpop.f32.mrb[0].mxu0
    %v1043 = vadd.f32 %v1003, %v1042
    %v1044 = vpop.f32.mrb[0].mxu0
    %1045 = vmatprep.mubr.bf16.mxu0 0
    %1046 = vmatmul.mubr.bf16.gmra.mrb[0].mxu0 %v965
    %v1047 = vpop.f32.mrb[0].mxu0
    %v1048 = vadd.f32 %v1003, %v1047
    %v1049 = vpop.f32.mrb[0].mxu0
    %v1050 = vpop.f32.mrb[0].mxu0
    %v1051 = vadd.f32 %v1003, %v1050
    %v1052 = vpop.f32.mrb[0].mxu0
    %1053 = vmatprep.mubr.bf16.mxu0 0
    %1054 = vmatmul.mubr.bf16.gmra.mrb[0].mxu0 %v966
    %v1055 = vpop.f32.mrb[0].mxu0
    %v1056 = vadd.f32 %v1003, %v1055
    %v1057 = vpop.f32.mrb[0].mxu0
    %v1058 = vpop.f32.mrb[0].mxu0
    %v1059 = vadd.f32 %v1003, %v1058
    %v1060 = vpop.f32.mrb[0].mxu0
    %1061 = vmatprep.mubr.bf16.mxu0 0
    %1062 = vmatmul.mubr.bf16.gmra.mrb[0].mxu0 %v967
    %v1063 = vpop.f32.mrb[0].mxu0
    %v1064 = vadd.f32 %v1003, %v1063
    %v1065 = vpop.f32.mrb[0].mxu0
    %v1066 = vpop.f32.mrb[0].mxu0
    %v1067 = vadd.f32 %v1003, %v1066
    %v1068 = vpop.f32.mrb[0].mxu0
    %1069 = vmatprep.mubr.bf16.mxu0 0
    %1070 = vmatmul.mubr.bf16.gmra.mrb[0].mxu0 %v968
    %v1071 = vpop.f32.mrb[0].mxu0
    %v1072 = vadd.f32 %v1003, %v1071
    %v1073 = vpop.f32.mrb[0].mxu0
    %v1074 = vpop.f32.mrb[0].mxu0
    %v1075 = vadd.f32 %v1003, %v1074
    %v1076 = vpop.f32.mrb[0].mxu0
    %1077 = vmatprep.mubr.bf16.mxu0 0
    %1078 = vmatmul.mubr.bf16.gmra.mrb[0].mxu0 %v969
    %v1079 = vpop.f32.mrb[0].mxu0
    %v1080 = vadd.f32 %v1003, %v1079
    %v1081 = vpop.f32.mrb[0].mxu0
    %v1082 = vpop.f32.mrb[0].mxu0
    %v1083 = vadd.f32 %v1003, %v1082
    %v1084 = vpop.f32.mrb[0].mxu0
    %1085 = vmatprep.mubr.bf16.mxu0 0
    %1086 = vmatmul.mubr.bf16.gmra.mrb[0].mxu0 %v970
    %v1087 = vpop.f32.mrb[0].mxu0
    %v1088 = vadd.f32 %v1003, %v1087
    %v1089 = vpop.f32.mrb[0].mxu0
    %v1090 = vpop.f32.mrb[0].mxu0
    %v1091 = vadd.f32 %v1003, %v1090
    %v1092 = vpop.f32.mrb[0].mxu0
    %1093 = vmatprep.mubr.bf16.mxu0 0
    %1094 = vmatmul.mubr.bf16.gmra.mrb[0].mxu0 %v971
    %v1095 = vpop.f32.mrb[0].mxu0
    %v1096 = vadd.f32 %v1003, %v1095
    %v1097 = vpop.f32.mrb[0].mxu0
    %v1098 = vpop.f32.mrb[0].mxu0
    %v1099 = vadd.f32 %v1003, %v1098
    %v1100 = vpop.f32.mrb[0].mxu0
    %1101 = vdwg.mxu0
    %v1102 = vmax.f32 %v1040, 0.0
    %v1103 = vmax.f32 %v1043, 0.0
    %v1104 = vmax.f32 %v1048, 0.0
    %v1105 = vmax.f32 %v1051, 0.0
    %v1106 = vmax.f32 %v1056, 0.0
    %v1107 = vmax.f32 %v1059, 0.0
    %v1108 = vmax.f32 %v1064, 0.0
    %v1109 = vmax.f32 %v1067, 0.0
    %v1110 = vmax.f32 %v1072, 0.0
    %v1111 = vmax.f32 %v1075, 0.0
    %v1112 = vmax.f32 %v1080, 0.0
    %v1113 = vmax.f32 %v1083, 0.0
    %v1114 = vmax.f32 %v1088, 0.0
    %v1115 = vmax.f32 %v1091, 0.0
    %v1116 = vmax.f32 %v1096, 0.0
    %v1117 = vmax.f32 %v1099, 0.0
    %s1118 = scalar_lea.vmem %s6, 1
    %v1119 = vld [vmem:[%s1118] sm:$0x1]
    %v1121 = vlaneseq
    %v1122 = vshrl.u32 %v1121, 7
    %v1123 = vsub.s32 0, %v1122
    %v1124 = vrot.slane %v1119, %v1123
    %v1126 = vmul.f32 %v1102, %v1124
    %v1127 = vmul.f32 %v1103, %v1124
    %v1128 = vmul.f32 %v1104, %v1124
    %v1129 = vmul.f32 %v1105, %v1124
    %v1130 = vmul.f32 %v1106, %v1124
    %v1131 = vmul.f32 %v1107, %v1124
    %v1132 = vmul.f32 %v1108, %v1124
    %v1133 = vmul.f32 %v1109, %v1124
    %v1134 = vmul.f32 %v1110, %v1124
    %v1135 = vmul.f32 %v1111, %v1124
    %v1136 = vmul.f32 %v1112, %v1124
    %v1137 = vmul.f32 %v1113, %v1124
    %v1138 = vmul.f32 %v1114, %v1124
    %v1139 = vmul.f32 %v1115, %v1124
    %v1140 = vmul.f32 %v1116, %v1124
    %v1141 = vmul.f32 %v1117, %v1124
    %1142 = vadd.xlane.f32.xlu0 %v1126
    %v1143 = vpop.xlane.xlu0 %1142
    %1144 = vadd.xlane.f32.xlu0 %v1127
    %v1145 = vpop.xlane.xlu0 %1144
    %1146 = vadd.xlane.f32.xlu0 %v1128
    %v1147 = vpop.xlane.xlu0 %1146
    %1148 = vadd.xlane.f32.xlu0 %v1129
    %v1149 = vpop.xlane.xlu0 %1148
    %1150 = vadd.xlane.f32.xlu0 %v1130
    %v1151 = vpop.xlane.xlu0 %1150
    %1152 = vadd.xlane.f32.xlu0 %v1131
    %v1153 = vpop.xlane.xlu0 %1152
    %1154 = vadd.xlane.f32.xlu0 %v1132
    %v1155 = vpop.xlane.xlu0 %1154
    %1156 = vadd.xlane.f32.xlu0 %v1133
    %v1157 = vpop.xlane.xlu0 %1156
    %1158 = vadd.xlane.f32.xlu0 %v1134
    %v1159 = vpop.xlane.xlu0 %1158
    %1160 = vadd.xlane.f32.xlu0 %v1135
    %v1161 = vpop.xlane.xlu0 %1160
    %1162 = vadd.xlane.f32.xlu0 %v1136
    %v1163 = vpop.xlane.xlu0 %1162
    %1164 = vadd.xlane.f32.xlu0 %v1137
    %v1165 = vpop.xlane.xlu0 %1164
    %1166 = vadd.xlane.f32.xlu0 %v1138
    %v1167 = vpop.xlane.xlu0 %1166
    %1168 = vadd.xlane.f32.xlu0 %v1139
    %v1169 = vpop.xlane.xlu0 %1168
    %1170 = vadd.xlane.f32.xlu0 %v1140
    %v1171 = vpop.xlane.xlu0 %1170
    %1172 = vadd.xlane.f32.xlu0 %v1141
    %v1173 = vpop.xlane.xlu0 %1172
    %v1174 = vld [vmem:[%s7 + $0x1] sm:$0x1]
    %1176 = vset.pattern.permute.xlu0 0
    %1177 = vperm.xlu0 %1176, %v1174
    %v1178 = vpop.permute.xlu0 %1177
    %v1179 = vlaneseq
    %v1180 = vshrl.u32 %v1179, 7
    %v1181 = vsub.s32 0, %v1180
    %v1182 = vrot.slane %v1178, %v1181
    %v1184 = vadd.f32 %v1143, %v1182
    %v1185 = vadd.f32 %v1145, %v1182
    %v1186 = vadd.f32 %v1147, %v1182
    %v1187 = vadd.f32 %v1149, %v1182
    %v1188 = vadd.f32 %v1151, %v1182
    %v1189 = vadd.f32 %v1153, %v1182
    %v1190 = vadd.f32 %v1155, %v1182
    %v1191 = vadd.f32 %v1157, %v1182
    %v1192 = vadd.f32 %v1159, %v1182
    %v1193 = vadd.f32 %v1161, %v1182
    %v1194 = vadd.f32 %v1163, %v1182
    %v1195 = vadd.f32 %v1165, %v1182
    %v1196 = vadd.f32 %v1167, %v1182
    %v1197 = vadd.f32 %v1169, %v1182
    %v1198 = vadd.f32 %v1171, %v1182
    %v1199 = vadd.f32 %v1173, %v1182
    %v1200 = vxor.u32 %v1184, 2147483648
    %v1201 = vxor.u32 %v1185, 2147483648
    %v1202 = vxor.u32 %v1186, 2147483648
    %v1203 = vxor.u32 %v1187, 2147483648
    %v1204 = vxor.u32 %v1188, 2147483648
    %v1205 = vxor.u32 %v1189, 2147483648
    %v1206 = vxor.u32 %v1190, 2147483648
    %v1207 = vxor.u32 %v1191, 2147483648
    %v1208 = vxor.u32 %v1192, 2147483648
    %v1209 = vxor.u32 %v1193, 2147483648
    %v1210 = vxor.u32 %v1194, 2147483648
    %v1211 = vxor.u32 %v1195, 2147483648
    %v1212 = vxor.u32 %v1196, 2147483648
    %v1213 = vxor.u32 %v1197, 2147483648
    %v1214 = vxor.u32 %v1198, 2147483648
    %v1215 = vxor.u32 %v1199, 2147483648
    %v1216 = vmul.f32 %v1200, 1.442695
    %v1217 = vpow.pop %v1216
    %v1218 = vmul.f32 %v1201, 1.442695
    %v1219 = vpow.pop %v1218
    %v1220 = vmul.f32 %v1202, 1.442695
    %v1221 = vpow.pop %v1220
    %v1222 = vmul.f32 %v1203, 1.442695
    %v1223 = vpow.pop %v1222
    %v1224 = vmul.f32 %v1204, 1.442695
    %v1225 = vpow.pop %v1224
    %v1226 = vmul.f32 %v1205, 1.442695
    %v1227 = vpow.pop %v1226
    %v1228 = vmul.f32 %v1206, 1.442695
    %v1229 = vpow.pop %v1228
    %v1230 = vmul.f32 %v1207, 1.442695
    %v1231 = vpow.pop %v1230
    %v1232 = vmul.f32 %v1208, 1.442695
    %v1233 = vpow.pop %v1232
    %v1234 = vmul.f32 %v1209, 1.442695
    %v1235 = vpow.pop %v1234
    %v1236 = vmul.f32 %v1210, 1.442695
    %v1237 = vpow.pop %v1236
    %v1238 = vmul.f32 %v1211, 1.442695
    %v1239 = vpow.pop %v1238
    %v1240 = vmul.f32 %v1212, 1.442695
    %v1241 = vpow.pop %v1240
    %v1242 = vmul.f32 %v1213, 1.442695
    %v1243 = vpow.pop %v1242
    %v1244 = vmul.f32 %v1214, 1.442695
    %v1245 = vpow.pop %v1244
    %v1246 = vmul.f32 %v1215, 1.442695
    %v1247 = vpow.pop %v1246
    %v1248 = vadd.f32 %v1217, 1.0
    %v1249 = vadd.f32 %v1219, 1.0
    %v1250 = vadd.f32 %v1221, 1.0
    %v1251 = vadd.f32 %v1223, 1.0
    %v1252 = vadd.f32 %v1225, 1.0
    %v1253 = vadd.f32 %v1227, 1.0
    %v1254 = vadd.f32 %v1229, 1.0
    %v1255 = vadd.f32 %v1231, 1.0
    %v1256 = vadd.f32 %v1233, 1.0
    %v1257 = vadd.f32 %v1235, 1.0
    %v1258 = vadd.f32 %v1237, 1.0
    %v1259 = vadd.f32 %v1239, 1.0
    %v1260 = vadd.f32 %v1241, 1.0
    %v1261 = vadd.f32 %v1243, 1.0
    %v1262 = vadd.f32 %v1245, 1.0
    %v1263 = vadd.f32 %v1247, 1.0
    %v1264 = vrcp.pop %v1248
    %v1265 = vmul.f32 1.0, %v1264
    %v1266 = vrcp.pop %v1249
    %v1267 = vmul.f32 1.0, %v1266
    %v1268 = vrcp.pop %v1250
    %v1269 = vmul.f32 1.0, %v1268
    %v1270 = vrcp.pop %v1251
    %v1271 = vmul.f32 1.0, %v1270
    %v1272 = vrcp.pop %v1252
    %v1273 = vmul.f32 1.0, %v1272
    %v1274 = vrcp.pop %v1253
    %v1275 = vmul.f32 1.0, %v1274
    %v1276 = vrcp.pop %v1254
    %v1277 = vmul.f32 1.0, %v1276
    %v1278 = vrcp.pop %v1255
    %v1279 = vmul.f32 1.0, %v1278
    %v1280 = vrcp.pop %v1256
    %v1281 = vmul.f32 1.0, %v1280
    %v1282 = vrcp.pop %v1257
    %v1283 = vmul.f32 1.0, %v1282
    %v1284 = vrcp.pop %v1258
    %v1285 = vmul.f32 1.0, %v1284
    %v1286 = vrcp.pop %v1259
    %v1287 = vmul.f32 1.0, %v1286
    %v1288 = vrcp.pop %v1260
    %v1289 = vmul.f32 1.0, %v1288
    %v1290 = vrcp.pop %v1261
    %v1291 = vmul.f32 1.0, %v1290
    %v1292 = vrcp.pop %v1262
    %v1293 = vmul.f32 1.0, %v1292
    %v1294 = vrcp.pop %v1263
    %v1295 = vmul.f32 1.0, %v1294
    %1312 = vset.pattern.permute.xlu0 0
    %1313 = vperm.xlu0 %1312, %v1265
    %v1314 = vpop.permute.xlu0 %1313
    %1315 = vset.pattern.permute.xlu0 0
    %1316 = vperm.xlu0 %1315, %v1267
    %v1317 = vpop.permute.xlu0 %1316
    %1318 = vset.pattern.permute.xlu0 0
    %1319 = vperm.xlu0 %1318, %v1269
    %v1320 = vpop.permute.xlu0 %1319
    %1321 = vset.pattern.permute.xlu0 0
    %1322 = vperm.xlu0 %1321, %v1271
    %v1323 = vpop.permute.xlu0 %1322
    %1324 = vset.pattern.permute.xlu0 0
    %1325 = vperm.xlu0 %1324, %v1273
    %v1326 = vpop.permute.xlu0 %1325
    %1327 = vset.pattern.permute.xlu0 0
    %1328 = vperm.xlu0 %1327, %v1275
    %v1329 = vpop.permute.xlu0 %1328
    %1330 = vset.pattern.permute.xlu0 0
    %1331 = vperm.xlu0 %1330, %v1277
    %v1332 = vpop.permute.xlu0 %1331
    %1333 = vset.pattern.permute.xlu0 0
    %1334 = vperm.xlu0 %1333, %v1279
    %v1335 = vpop.permute.xlu0 %1334
    %1336 = vset.pattern.permute.xlu0 0
    %1337 = vperm.xlu0 %1336, %v1281
    %v1338 = vpop.permute.xlu0 %1337
    %1339 = vset.pattern.permute.xlu0 0
    %1340 = vperm.xlu0 %1339, %v1283
    %v1341 = vpop.permute.xlu0 %1340
    %1342 = vset.pattern.permute.xlu0 0
    %1343 = vperm.xlu0 %1342, %v1285
    %v1344 = vpop.permute.xlu0 %1343
    %1345 = vset.pattern.permute.xlu0 0
    %1346 = vperm.xlu0 %1345, %v1287
    %v1347 = vpop.permute.xlu0 %1346
    %1348 = vset.pattern.permute.xlu0 0
    %1349 = vperm.xlu0 %1348, %v1289
    %v1350 = vpop.permute.xlu0 %1349
    %1351 = vset.pattern.permute.xlu0 0
    %1352 = vperm.xlu0 %1351, %v1291
    %v1353 = vpop.permute.xlu0 %1352
    %1354 = vset.pattern.permute.xlu0 0
    %1355 = vperm.xlu0 %1354, %v1293
    %v1356 = vpop.permute.xlu0 %1355
    %1357 = vset.pattern.permute.xlu0 0
    %1358 = vperm.xlu0 %1357, %v1295
    %v1359 = vpop.permute.xlu0 %1358
    %v1360 = vlaneseq
    %v1361 = vshrl.u32 %v1360, 7
    %v1362 = vsub.s32 %v648, %v1361
    %v1363 = vrot.slane %v1314, %v1362
    %v1364 = vlaneseq
    %v1365 = vshrl.u32 %v1364, 7
    %v1366 = vsub.s32 %v653, %v1365
    %v1367 = vrot.slane %v1317, %v1366
    %v1368 = vsel %vm658, %v1367, %v1363
    %v1369 = vlaneseq
    %v1370 = vshrl.u32 %v1369, 7
    %v1371 = vsub.s32 %v660, %v1370
    %v1372 = vrot.slane %v1320, %v1371
    %v1373 = vsel %vm665, %v1372, %v1368
    %v1374 = vlaneseq
    %v1375 = vshrl.u32 %v1374, 7
    %v1376 = vsub.s32 %v667, %v1375
    %v1377 = vrot.slane %v1323, %v1376
    %v1378 = vsel %vm672, %v1377, %v1373
    %v1379 = vlaneseq
    %v1380 = vshrl.u32 %v1379, 7
    %v1381 = vsub.s32 %v674, %v1380
    %v1382 = vrot.slane %v1326, %v1381
    %v1383 = vsel %vm679, %v1382, %v1378
    %v1384 = vlaneseq
    %v1385 = vshrl.u32 %v1384, 7
    %v1386 = vsub.s32 %v681, %v1385
    %v1387 = vrot.slane %v1329, %v1386
    %v1388 = vsel %vm686, %v1387, %v1383
    %v1389 = vlaneseq
    %v1390 = vshrl.u32 %v1389, 7
    %v1391 = vsub.s32 %v688, %v1390
    %v1392 = vrot.slane %v1332, %v1391
    %v1393 = vsel %vm693, %v1392, %v1388
    %v1394 = vlaneseq
    %v1395 = vshrl.u32 %v1394, 7
    %v1396 = vsub.s32 %v695, %v1395
    %v1397 = vrot.slane %v1335, %v1396
    %v1398 = vsel %vm700, %v1397, %v1393
    %v1399 = vlaneseq
    %v1400 = vshrl.u32 %v1399, 7
    %v1401 = vsub.s32 %v702, %v1400
    %v1402 = vrot.slane %v1338, %v1401
    %v1403 = vsel %vm707, %v1402, %v1398
    %v1404 = vlaneseq
    %v1405 = vshrl.u32 %v1404, 7
    %v1406 = vsub.s32 %v709, %v1405
    %v1407 = vrot.slane %v1341, %v1406
    %v1408 = vsel %vm714, %v1407, %v1403
    %v1409 = vlaneseq
    %v1410 = vshrl.u32 %v1409, 7
    %v1411 = vsub.s32 %v716, %v1410
    %v1412 = vrot.slane %v1344, %v1411
    %v1413 = vsel %vm721, %v1412, %v1408
    %v1414 = vlaneseq
    %v1415 = vshrl.u32 %v1414, 7
    %v1416 = vsub.s32 %v723, %v1415
    %v1417 = vrot.slane %v1347, %v1416
    %v1418 = vsel %vm728, %v1417, %v1413
    %v1419 = vlaneseq
    %v1420 = vshrl.u32 %v1419, 7
    %v1421 = vsub.s32 %v730, %v1420
    %v1422 = vrot.slane %v1350, %v1421
    %v1423 = vsel %vm735, %v1422, %v1418
    %v1424 = vlaneseq
    %v1425 = vshrl.u32 %v1424, 7
    %v1426 = vsub.s32 %v737, %v1425
    %v1427 = vrot.slane %v1353, %v1426
    %v1428 = vsel %vm742, %v1427, %v1423
    %v1429 = vlaneseq
    %v1430 = vshrl.u32 %v1429, 7
    %v1431 = vsub.s32 %v744, %v1430
    %v1432 = vrot.slane %v1356, %v1431
    %v1433 = vsel %vm749, %v1432, %v1428
    %v1434 = vlaneseq
    %v1435 = vshrl.u32 %v1434, 7
    %v1436 = vsub.s32 %v751, %v1435
    %v1437 = vrot.slane %v1359, %v1436
    %v1438 = vsel %vm756, %v1437, %v1433
    %1440 = vst [vmem:[#allocation10 + $0x1] sm:$0x1] %v1438
    %s1441 = sld [smem:[#allocation2 + $0x1]]
    %v1442 = vstv %s1441
    %v1443 = vmul.f32 %v1442, %v1265
    %v1444 = vmul.f32 %v1442, %v1267
    %v1445 = vmul.f32 %v1442, %v1269
    %v1446 = vmul.f32 %v1442, %v1271
    %v1447 = vmul.f32 %v1442, %v1273
    %v1448 = vmul.f32 %v1442, %v1275
    %v1449 = vmul.f32 %v1442, %v1277
    %v1450 = vmul.f32 %v1442, %v1279
    %v1451 = vmul.f32 %v1442, %v1281
    %v1452 = vmul.f32 %v1442, %v1283
    %v1453 = vmul.f32 %v1442, %v1285
    %v1454 = vmul.f32 %v1442, %v1287
    %v1455 = vmul.f32 %v1442, %v1289
    %v1456 = vmul.f32 %v1442, %v1291
    %v1457 = vmul.f32 %v1442, %v1293
    %v1458 = vmul.f32 %v1442, %v1295
    %v1459 = vadd.f32 %v778, %v1443
    %v1460 = vadd.f32 %v779, %v1444
    %v1461 = vadd.f32 %v780, %v1445
    %v1462 = vadd.f32 %v781, %v1446
    %v1463 = vadd.f32 %v782, %v1447
    %v1464 = vadd.f32 %v783, %v1448
    %v1465 = vadd.f32 %v784, %v1449
    %v1466 = vadd.f32 %v785, %v1450
    %v1467 = vadd.f32 %v786, %v1451
    %v1468 = vadd.f32 %v787, %v1452
    %v1469 = vadd.f32 %v788, %v1453
    %v1470 = vadd.f32 %v789, %v1454
    %v1471 = vadd.f32 %v790, %v1455
    %v1472 = vadd.f32 %v791, %v1456
    %v1473 = vadd.f32 %v792, %v1457
    %v1474 = vadd.f32 %v793, %v1458
    %v1475 = vld [vmem:[#allocation6 + $0x10] sm:$0xff]
    %v1476 = vld [vmem:[#allocation6 + $0x30] sm:$0xff]
    %v1477 = vld [vmem:[#allocation6 + $0x50] sm:$0xff]
    %v1478 = vld [vmem:[#allocation6 + $0x70] sm:$0xff]
    %v1479 = vld [vmem:[#allocation6 + $0x90] sm:$0xff]
    %v1480 = vld [vmem:[#allocation6 + $0xb0] sm:$0xff]
    %v1481 = vld [vmem:[#allocation6 + $0xd0] sm:$0xff]
    %v1482 = vld [vmem:[#allocation6 + $0xf0] sm:$0xff]
    %v1483 = vld [vmem:[#allocation6 + $0x110] sm:$0xff]
    %v1484 = vld [vmem:[#allocation6 + $0x130] sm:$0xff]
    %v1485 = vld [vmem:[#allocation6 + $0x150] sm:$0xff]
    %v1486 = vld [vmem:[#allocation6 + $0x170] sm:$0xff]
    %v1487 = vld [vmem:[#allocation6 + $0x190] sm:$0xff]
    %v1488 = vld [vmem:[#allocation6 + $0x1b0] sm:$0xff]
    %v1489 = vld [vmem:[#allocation6 + $0x1d0] sm:$0xff]
    %v1490 = vld [vmem:[#allocation6 + $0x1f0] sm:$0xff]
    %v1491 = vpack.c.bf16 %v1476, %v1475
    %v1492 = vpack.c.bf16 %v1478, %v1477
    %v1493 = vpack.c.bf16 %v1480, %v1479
    %v1494 = vpack.c.bf16 %v1482, %v1481
    %v1495 = vpack.c.bf16 %v1484, %v1483
    %v1496 = vpack.c.bf16 %v1486, %v1485
    %v1497 = vpack.c.bf16 %v1488, %v1487
    %v1498 = vpack.c.bf16 %v1490, %v1489
    %s1499 = scalar_lea.vmem [#allocation7], 256
    %v1500 = vld [vmem:[%s1499] sm:$0xff]
    %v1501 = vld [vmem:[%s1499 + $0x8] sm:$0xff]
    %v1502 = vld [vmem:[%s1499 + $0x10] sm:$0xff]
    %v1503 = vld [vmem:[%s1499 + $0x18] sm:$0xff]
    %v1504 = vld [vmem:[%s1499 + $0x20] sm:$0xff]
    %v1505 = vld [vmem:[%s1499 + $0x28] sm:$0xff]
    %v1506 = vld [vmem:[%s1499 + $0x30] sm:$0xff]
    %v1507 = vld [vmem:[%s1499 + $0x38] sm:$0xff]
    %v1508 = vld [vmem:[%s1499 + $0x40] sm:$0xff]
    %v1509 = vld [vmem:[%s1499 + $0x48] sm:$0xff]
    %v1510 = vld [vmem:[%s1499 + $0x50] sm:$0xff]
    %v1511 = vld [vmem:[%s1499 + $0x58] sm:$0xff]
    %v1512 = vld [vmem:[%s1499 + $0x60] sm:$0xff]
    %v1513 = vld [vmem:[%s1499 + $0x68] sm:$0xff]
    %v1514 = vld [vmem:[%s1499 + $0x70] sm:$0xff]
    %v1515 = vld [vmem:[%s1499 + $0x78] sm:$0xff]
    %v1516 = vpack.c.bf16 %v1501, %v1500
    %v1517 = vpack.c.bf16 %v1503, %v1502
    %v1518 = vpack.c.bf16 %v1505, %v1504
    %v1519 = vpack.c.bf16 %v1507, %v1506
    %v1520 = vpack.c.bf16 %v1509, %v1508
    %v1521 = vpack.c.bf16 %v1511, %v1510
    %v1522 = vpack.c.bf16 %v1513, %v1512
    %v1523 = vpack.c.bf16 %v1515, %v1514
    %s1524 = scalar_lea.vmem %s3, 2
    %v1525 = vld [vmem:[%s1524] sm:$0x1]
    %v1527 = vlaneseq
    %v1528 = vshrl.u32 %v1527, 7
    %v1529 = vsub.s32 0, %v1528
    %v1530 = vrot.slane %v1525, %v1529
    %1532 = vmatprep.subr.bf16.mxu0 0
    %1533 = vmatpush1.bf16.msra.mxu0 %v1516
    %1534 = vmatprep.subr.bf16.mxu0 0
    %1535 = vmatpush1.bf16.msra.mxu0 %v1517
    %1536 = vmatprep.subr.bf16.mxu0 0
    %1537 = vmatpush1.bf16.msra.mxu0 %v1518
    %1538 = vmatprep.subr.bf16.mxu0 0
    %1539 = vmatpush1.bf16.msra.mxu0 %v1519
    %1540 = vmatprep.subr.bf16.mxu0 0
    %1541 = vmatpush1.bf16.msra.mxu0 %v1520
    %1542 = vmatprep.subr.bf16.mxu0 0
    %1543 = vmatpush1.bf16.msra.mxu0 %v1521
    %1544 = vmatprep.subr.bf16.mxu0 0
    %1545 = vmatpush1.bf16.msra.mxu0 %v1522
    %1546 = vmatprep.subr.bf16.mxu0 0
    %1547 = vmatpush1.bf16.msra.mxu0 %v1523
    %1548 = vmatprep.subr.bf16.mxu0 0
    %1549 = vmatpush1.bf16.msra.mxu0 0
    %1550 = vmatprep.subr.bf16.mxu0 0
    %1551 = vmatpush1.bf16.msra.mxu0 0
    %1552 = vmatprep.subr.bf16.mxu0 0
    %1553 = vmatpush1.bf16.msra.mxu0 0
    %1554 = vmatprep.subr.bf16.mxu0 0
    %1555 = vmatpush1.bf16.msra.mxu0 0
    %1556 = vmatprep.subr.bf16.mxu0 0
    %1557 = vmatpush1.bf16.msra.mxu0 0
    %1558 = vmatprep.subr.bf16.mxu0 0
    %1559 = vmatpush1.bf16.msra.mxu0 0
    %1560 = vmatprep.subr.bf16.mxu0 0
    %1561 = vmatpush1.bf16.msra.mxu0 0
    %1562 = vmatprep.subr.bf16.mxu0 0
    %1563 = vmatpush1.bf16.msra.mxu0 0
    %1564 = vmatprep.mubr.bf16.mxu0 0
    %1565 = vmatmul.mubr.bf16.gmra.mrb[0].mxu0 %v1491
    %v1566 = vpop.f32.mrb[0].mxu0
    %v1567 = vadd.f32 %v1530, %v1566
    %v1568 = vpop.f32.mrb[0].mxu0
    %v1569 = vpop.f32.mrb[0].mxu0
    %v1570 = vadd.f32 %v1530, %v1569
    %v1571 = vpop.f32.mrb[0].mxu0
    %1572 = vmatprep.mubr.bf16.mxu0 0
    %1573 = vmatmul.mubr.bf16.gmra.mrb[0].mxu0 %v1492
    %v1574 = vpop.f32.mrb[0].mxu0
    %v1575 = vadd.f32 %v1530, %v1574
    %v1576 = vpop.f32.mrb[0].mxu0
    %v1577 = vpop.f32.mrb[0].mxu0
    %v1578 = vadd.f32 %v1530, %v1577
    %v1579 = vpop.f32.mrb[0].mxu0
    %1580 = vmatprep.mubr.bf16.mxu0 0
    %1581 = vmatmul.mubr.bf16.gmra.mrb[0].mxu0 %v1493
    %v1582 = vpop.f32.mrb[0].mxu0
    %v1583 = vadd.f32 %v1530, %v1582
    %v1584 = vpop.f32.mrb[0].mxu0
    %v1585 = vpop.f32.mrb[0].mxu0
    %v1586 = vadd.f32 %v1530, %v1585
    %v1587 = vpop.f32.mrb[0].mxu0
    %1588 = vmatprep.mubr.bf16.mxu0 0
    %1589 = vmatmul.mubr.bf16.gmra.mrb[0].mxu0 %v1494
    %v1590 = vpop.f32.mrb[0].mxu0
    %v1591 = vadd.f32 %v1530, %v1590
    %v1592 = vpop.f32.mrb[0].mxu0
    %v1593 = vpop.f32.mrb[0].mxu0
    %v1594 = vadd.f32 %v1530, %v1593
    %v1595 = vpop.f32.mrb[0].mxu0
    %1596 = vmatprep.mubr.bf16.mxu0 0
    %1597 = vmatmul.mubr.bf16.gmra.mrb[0].mxu0 %v1495
    %v1598 = vpop.f32.mrb[0].mxu0
    %v1599 = vadd.f32 %v1530, %v1598
    %v1600 = vpop.f32.mrb[0].mxu0
    %v1601 = vpop.f32.mrb[0].mxu0
    %v1602 = vadd.f32 %v1530, %v1601
    %v1603 = vpop.f32.mrb[0].mxu0
    %1604 = vmatprep.mubr.bf16.mxu0 0
    %1605 = vmatmul.mubr.bf16.gmra.mrb[0].mxu0 %v1496
    %v1606 = vpop.f32.mrb[0].mxu0
    %v1607 = vadd.f32 %v1530, %v1606
    %v1608 = vpop.f32.mrb[0].mxu0
    %v1609 = vpop.f32.mrb[0].mxu0
    %v1610 = vadd.f32 %v1530, %v1609
    %v1611 = vpop.f32.mrb[0].mxu0
    %1612 = vmatprep.mubr.bf16.mxu0 0
    %1613 = vmatmul.mubr.bf16.gmra.mrb[0].mxu0 %v1497
    %v1614 = vpop.f32.mrb[0].mxu0
    %v1615 = vadd.f32 %v1530, %v1614
    %v1616 = vpop.f32.mrb[0].mxu0
    %v1617 = vpop.f32.mrb[0].mxu0
    %v1618 = vadd.f32 %v1530, %v1617
    %v1619 = vpop.f32.mrb[0].mxu0
    %1620 = vmatprep.mubr.bf16.mxu0 0
    %1621 = vmatmul.mubr.bf16.gmra.mrb[0].mxu0 %v1498
    %v1622 = vpop.f32.mrb[0].mxu0
    %v1623 = vadd.f32 %v1530, %v1622
    %v1624 = vpop.f32.mrb[0].mxu0
    %v1625 = vpop.f32.mrb[0].mxu0
    %v1626 = vadd.f32 %v1530, %v1625
    %v1627 = vpop.f32.mrb[0].mxu0
    %1628 = vdwg.mxu0
    %v1629 = vmax.f32 %v1567, 0.0
    %v1630 = vmax.f32 %v1570, 0.0
    %v1631 = vmax.f32 %v1575, 0.0
    %v1632 = vmax.f32 %v1578, 0.0
    %v1633 = vmax.f32 %v1583, 0.0
    %v1634 = vmax.f32 %v1586, 0.0
    %v1635 = vmax.f32 %v1591, 0.0
    %v1636 = vmax.f32 %v1594, 0.0
    %v1637 = vmax.f32 %v1599, 0.0
    %v1638 = vmax.f32 %v1602, 0.0
    %v1639 = vmax.f32 %v1607, 0.0
    %v1640 = vmax.f32 %v1610, 0.0
    %v1641 = vmax.f32 %v1615, 0.0
    %v1642 = vmax.f32 %v1618, 0.0
    %v1643 = vmax.f32 %v1623, 0.0
    %v1644 = vmax.f32 %v1626, 0.0
    %v1645 = vpack.c.bf16 %v1630, %v1629
    %v1646 = vpack.c.bf16 %v1632, %v1631
    %v1647 = vpack.c.bf16 %v1634, %v1633
    %v1648 = vpack.c.bf16 %v1636, %v1635
    %v1649 = vpack.c.bf16 %v1638, %v1637
    %v1650 = vpack.c.bf16 %v1640, %v1639
    %v1651 = vpack.c.bf16 %v1642, %v1641
    %v1652 = vpack.c.bf16 %v1644, %v1643
    %s1653 = scalar_lea.vmem [#allocation9], 256
    %v1654 = vld [vmem:[%s1653] sm:$0xff]
    %v1655 = vld [vmem:[%s1653 + $0x8] sm:$0xff]
    %v1656 = vld [vmem:[%s1653 + $0x10] sm:$0xff]
    %v1657 = vld [vmem:[%s1653 + $0x18] sm:$0xff]
    %v1658 = vld [vmem:[%s1653 + $0x20] sm:$0xff]
    %v1659 = vld [vmem:[%s1653 + $0x28] sm:$0xff]
    %v1660 = vld [vmem:[%s1653 + $0x30] sm:$0xff]
    %v1661 = vld [vmem:[%s1653 + $0x38] sm:$0xff]
    %v1662 = vld [vmem:[%s1653 + $0x40] sm:$0xff]
    %v1663 = vld [vmem:[%s1653 + $0x48] sm:$0xff]
    %v1664 = vld [vmem:[%s1653 + $0x50] sm:$0xff]
    %v1665 = vld [vmem:[%s1653 + $0x58] sm:$0xff]
    %v1666 = vld [vmem:[%s1653 + $0x60] sm:$0xff]
    %v1667 = vld [vmem:[%s1653 + $0x68] sm:$0xff]
    %v1668 = vld [vmem:[%s1653 + $0x70] sm:$0xff]
    %v1669 = vld [vmem:[%s1653 + $0x78] sm:$0xff]
    %v1670 = vpack.c.bf16 %v1655, %v1654
    %v1671 = vpack.c.bf16 %v1657, %v1656
    %v1672 = vpack.c.bf16 %v1659, %v1658
    %v1673 = vpack.c.bf16 %v1661, %v1660
    %v1674 = vpack.c.bf16 %v1663, %v1662
    %v1675 = vpack.c.bf16 %v1665, %v1664
    %v1676 = vpack.c.bf16 %v1667, %v1666
    %v1677 = vpack.c.bf16 %v1669, %v1668
    %s1678 = scalar_lea.vmem %s5, 2
    %v1679 = vld [vmem:[%s1678] sm:$0x1]
    %v1681 = vlaneseq
    %v1682 = vshrl.u32 %v1681, 7
    %v1683 = vsub.s32 0, %v1682
    %v1684 = vrot.slane %v1679, %v1683
    %1686 = vmatprep.subr.bf16.mxu0 0
    %1687 = vmatpush1.bf16.msra.mxu0 %v1670
    %1688 = vmatprep.subr.bf16.mxu0 0
    %1689 = vmatpush1.bf16.msra.mxu0 %v1671
    %1690 = vmatprep.subr.bf16.mxu0 0
    %1691 = vmatpush1.bf16.msra.mxu0 %v1672
    %1692 = vmatprep.subr.bf16.mxu0 0
    %1693 = vmatpush1.bf16.msra.mxu0 %v1673
    %1694 = vmatprep.subr.bf16.mxu0 0
    %1695 = vmatpush1.bf16.msra.mxu0 %v1674
    %1696 = vmatprep.subr.bf16.mxu0 0
    %1697 = vmatpush1.bf16.msra.mxu0 %v1675
    %1698 = vmatprep.subr.bf16.mxu0 0
    %1699 = vmatpush1.bf16.msra.mxu0 %v1676
    %1700 = vmatprep.subr.bf16.mxu0 0
    %1701 = vmatpush1.bf16.msra.mxu0 %v1677
    %1702 = vmatprep.subr.bf16.mxu0 0
    %1703 = vmatpush1.bf16.msra.mxu0 0
    %1704 = vmatprep.subr.bf16.mxu0 0
    %1705 = vmatpush1.bf16.msra.mxu0 0
    %1706 = vmatprep.subr.bf16.mxu0 0
    %1707 = vmatpush1.bf16.msra.mxu0 0
    %1708 = vmatprep.subr.bf16.mxu0 0
    %1709 = vmatpush1.bf16.msra.mxu0 0
    %1710 = vmatprep.subr.bf16.mxu0 0
    %1711 = vmatpush1.bf16.msra.mxu0 0
    %1712 = vmatprep.subr.bf16.mxu0 0
    %1713 = vmatpush1.bf16.msra.mxu0 0
    %1714 = vmatprep.subr.bf16.mxu0 0
    %1715 = vmatpush1.bf16.msra.mxu0 0
    %1716 = vmatprep.subr.bf16.mxu0 0
    %1717 = vmatpush1.bf16.msra.mxu0 0
    %1718 = vmatprep.mubr.bf16.mxu0 0
    %1719 = vmatmul.mubr.bf16.gmra.mrb[0].mxu0 %v1645
    %v1720 = vpop.f32.mrb[0].mxu0
    %v1721 = vadd.f32 %v1684, %v1720
    %v1722 = vpop.f32.mrb[0].mxu0
    %v1723 = vpop.f32.mrb[0].mxu0
    %v1724 = vadd.f32 %v1684, %v1723
    %v1725 = vpop.f32.mrb[0].mxu0
    %1726 = vmatprep.mubr.bf16.mxu0 0
    %1727 = vmatmul.mubr.bf16.gmra.mrb[0].mxu0 %v1646
    %v1728 = vpop.f32.mrb[0].mxu0
    %v1729 = vadd.f32 %v1684, %v1728
    %v1730 = vpop.f32.mrb[0].mxu0
    %v1731 = vpop.f32.mrb[0].mxu0
    %v1732 = vadd.f32 %v1684, %v1731
    %v1733 = vpop.f32.mrb[0].mxu0
    %1734 = vmatprep.mubr.bf16.mxu0 0
    %1735 = vmatmul.mubr.bf16.gmra.mrb[0].mxu0 %v1647
    %v1736 = vpop.f32.mrb[0].mxu0
    %v1737 = vadd.f32 %v1684, %v1736
    %v1738 = vpop.f32.mrb[0].mxu0
    %v1739 = vpop.f32.mrb[0].mxu0
    %v1740 = vadd.f32 %v1684, %v1739
    %v1741 = vpop.f32.mrb[0].mxu0
    %1742 = vmatprep.mubr.bf16.mxu0 0
    %1743 = vmatmul.mubr.bf16.gmra.mrb[0].mxu0 %v1648
    %v1744 = vpop.f32.mrb[0].mxu0
    %v1745 = vadd.f32 %v1684, %v1744
    %v1746 = vpop.f32.mrb[0].mxu0
    %v1747 = vpop.f32.mrb[0].mxu0
    %v1748 = vadd.f32 %v1684, %v1747
    %v1749 = vpop.f32.mrb[0].mxu0
    %1750 = vmatprep.mubr.bf16.mxu0 0
    %1751 = vmatmul.mubr.bf16.gmra.mrb[0].mxu0 %v1649
    %v1752 = vpop.f32.mrb[0].mxu0
    %v1753 = vadd.f32 %v1684, %v1752
    %v1754 = vpop.f32.mrb[0].mxu0
    %v1755 = vpop.f32.mrb[0].mxu0
    %v1756 = vadd.f32 %v1684, %v1755
    %v1757 = vpop.f32.mrb[0].mxu0
    %1758 = vmatprep.mubr.bf16.mxu0 0
    %1759 = vmatmul.mubr.bf16.gmra.mrb[0].mxu0 %v1650
    %v1760 = vpop.f32.mrb[0].mxu0
    %v1761 = vadd.f32 %v1684, %v1760
    %v1762 = vpop.f32.mrb[0].mxu0
    %v1763 = vpop.f32.mrb[0].mxu0
    %v1764 = vadd.f32 %v1684, %v1763
    %v1765 = vpop.f32.mrb[0].mxu0
    %1766 = vmatprep.mubr.bf16.mxu0 0
    %1767 = vmatmul.mubr.bf16.gmra.mrb[0].mxu0 %v1651
    %v1768 = vpop.f32.mrb[0].mxu0
    %v1769 = vadd.f32 %v1684, %v1768
    %v1770 = vpop.f32.mrb[0].mxu0
    %v1771 = vpop.f32.mrb[0].mxu0
    %v1772 = vadd.f32 %v1684, %v1771
    %v1773 = vpop.f32.mrb[0].mxu0
    %1774 = vmatprep.mubr.bf16.mxu0 0
    %1775 = vmatmul.mubr.bf16.gmra.mrb[0].mxu0 %v1652
    %v1776 = vpop.f32.mrb[0].mxu0
    %v1777 = vadd.f32 %v1684, %v1776
    %v1778 = vpop.f32.mrb[0].mxu0
    %v1779 = vpop.f32.mrb[0].mxu0
    %v1780 = vadd.f32 %v1684, %v1779
    %v1781 = vpop.f32.mrb[0].mxu0
    %1782 = vdwg.mxu0
    %v1783 = vmax.f32 %v1721, 0.0
    %v1784 = vmax.f32 %v1724, 0.0
    %v1785 = vmax.f32 %v1729, 0.0
    %v1786 = vmax.f32 %v1732, 0.0
    %v1787 = vmax.f32 %v1737, 0.0
    %v1788 = vmax.f32 %v1740, 0.0
    %v1789 = vmax.f32 %v1745, 0.0
    %v1790 = vmax.f32 %v1748, 0.0
    %v1791 = vmax.f32 %v1753, 0.0
    %v1792 = vmax.f32 %v1756, 0.0
    %v1793 = vmax.f32 %v1761, 0.0
    %v1794 = vmax.f32 %v1764, 0.0
    %v1795 = vmax.f32 %v1769, 0.0
    %v1796 = vmax.f32 %v1772, 0.0
    %v1797 = vmax.f32 %v1777, 0.0
    %v1798 = vmax.f32 %v1780, 0.0
    %s1799 = scalar_lea.vmem %s6, 2
    %v1800 = vld [vmem:[%s1799] sm:$0x1]
    %v1802 = vlaneseq
    %v1803 = vshrl.u32 %v1802, 7
    %v1804 = vsub.s32 0, %v1803
    %v1805 = vrot.slane %v1800, %v1804
    %v1807 = vmul.f32 %v1783, %v1805
    %v1808 = vmul.f32 %v1784, %v1805
    %v1809 = vmul.f32 %v1785, %v1805
    %v1810 = vmul.f32 %v1786, %v1805
    %v1811 = vmul.f32 %v1787, %v1805
    %v1812 = vmul.f32 %v1788, %v1805
    %v1813 = vmul.f32 %v1789, %v1805
    %v1814 = vmul.f32 %v1790, %v1805
    %v1815 = vmul.f32 %v1791, %v1805
    %v1816 = vmul.f32 %v1792, %v1805
    %v1817 = vmul.f32 %v1793, %v1805
    %v1818 = vmul.f32 %v1794, %v1805
    %v1819 = vmul.f32 %v1795, %v1805
    %v1820 = vmul.f32 %v1796, %v1805
    %v1821 = vmul.f32 %v1797, %v1805
    %v1822 = vmul.f32 %v1798, %v1805
    %1823 = vadd.xlane.f32.xlu0 %v1807
    %v1824 = vpop.xlane.xlu0 %1823
    %1825 = vadd.xlane.f32.xlu0 %v1808
    %v1826 = vpop.xlane.xlu0 %1825
    %1827 = vadd.xlane.f32.xlu0 %v1809
    %v1828 = vpop.xlane.xlu0 %1827
    %1829 = vadd.xlane.f32.xlu0 %v1810
    %v1830 = vpop.xlane.xlu0 %1829
    %1831 = vadd.xlane.f32.xlu0 %v1811
    %v1832 = vpop.xlane.xlu0 %1831
    %1833 = vadd.xlane.f32.xlu0 %v1812
    %v1834 = vpop.xlane.xlu0 %1833
    %1835 = vadd.xlane.f32.xlu0 %v1813
    %v1836 = vpop.xlane.xlu0 %1835
    %1837 = vadd.xlane.f32.xlu0 %v1814
    %v1838 = vpop.xlane.xlu0 %1837
    %1839 = vadd.xlane.f32.xlu0 %v1815
    %v1840 = vpop.xlane.xlu0 %1839
    %1841 = vadd.xlane.f32.xlu0 %v1816
    %v1842 = vpop.xlane.xlu0 %1841
    %1843 = vadd.xlane.f32.xlu0 %v1817
    %v1844 = vpop.xlane.xlu0 %1843
    %1845 = vadd.xlane.f32.xlu0 %v1818
    %v1846 = vpop.xlane.xlu0 %1845
    %1847 = vadd.xlane.f32.xlu0 %v1819
    %v1848 = vpop.xlane.xlu0 %1847
    %1849 = vadd.xlane.f32.xlu0 %v1820
    %v1850 = vpop.xlane.xlu0 %1849
    %1851 = vadd.xlane.f32.xlu0 %v1821
    %v1852 = vpop.xlane.xlu0 %1851
    %1853 = vadd.xlane.f32.xlu0 %v1822
    %v1854 = vpop.xlane.xlu0 %1853
    %v1855 = vld [vmem:[%s7 + $0x2] sm:$0x1]
    %1857 = vset.pattern.permute.xlu0 0
    %1858 = vperm.xlu0 %1857, %v1855
    %v1859 = vpop.permute.xlu0 %1858
    %v1860 = vlaneseq
    %v1861 = vshrl.u32 %v1860, 7
    %v1862 = vsub.s32 0, %v1861
    %v1863 = vrot.slane %v1859, %v1862
    %v1865 = vadd.f32 %v1824, %v1863
    %v1866 = vadd.f32 %v1826, %v1863
    %v1867 = vadd.f32 %v1828, %v1863
    %v1868 = vadd.f32 %v1830, %v1863
    %v1869 = vadd.f32 %v1832, %v1863
    %v1870 = vadd.f32 %v1834, %v1863
    %v1871 = vadd.f32 %v1836, %v1863
    %v1872 = vadd.f32 %v1838, %v1863
    %v1873 = vadd.f32 %v1840, %v1863
    %v1874 = vadd.f32 %v1842, %v1863
    %v1875 = vadd.f32 %v1844, %v1863
    %v1876 = vadd.f32 %v1846, %v1863
    %v1877 = vadd.f32 %v1848, %v1863
    %v1878 = vadd.f32 %v1850, %v1863
    %v1879 = vadd.f32 %v1852, %v1863
    %v1880 = vadd.f32 %v1854, %v1863
    %v1881 = vxor.u32 %v1865, 2147483648
    %v1882 = vxor.u32 %v1866, 2147483648
    %v1883 = vxor.u32 %v1867, 2147483648
    %v1884 = vxor.u32 %v1868, 2147483648
    %v1885 = vxor.u32 %v1869, 2147483648
    %v1886 = vxor.u32 %v1870, 2147483648
    %v1887 = vxor.u32 %v1871, 2147483648
    %v1888 = vxor.u32 %v1872, 2147483648
    %v1889 = vxor.u32 %v1873, 2147483648
    %v1890 = vxor.u32 %v1874, 2147483648
    %v1891 = vxor.u32 %v1875, 2147483648
    %v1892 = vxor.u32 %v1876, 2147483648
    %v1893 = vxor.u32 %v1877, 2147483648
    %v1894 = vxor.u32 %v1878, 2147483648
    %v1895 = vxor.u32 %v1879, 2147483648
    %v1896 = vxor.u32 %v1880, 2147483648
    %v1897 = vmul.f32 %v1881, 1.442695
    %v1898 = vpow.pop %v1897
    %v1899 = vmul.f32 %v1882, 1.442695
    %v1900 = vpow.pop %v1899
    %v1901 = vmul.f32 %v1883, 1.442695
    %v1902 = vpow.pop %v1901
    %v1903 = vmul.f32 %v1884, 1.442695
    %v1904 = vpow.pop %v1903
    %v1905 = vmul.f32 %v1885, 1.442695
    %v1906 = vpow.pop %v1905
    %v1907 = vmul.f32 %v1886, 1.442695
    %v1908 = vpow.pop %v1907
    %v1909 = vmul.f32 %v1887, 1.442695
    %v1910 = vpow.pop %v1909
    %v1911 = vmul.f32 %v1888, 1.442695
    %v1912 = vpow.pop %v1911
    %v1913 = vmul.f32 %v1889, 1.442695
    %v1914 = vpow.pop %v1913
    %v1915 = vmul.f32 %v1890, 1.442695
    %v1916 = vpow.pop %v1915
    %v1917 = vmul.f32 %v1891, 1.442695
    %v1918 = vpow.pop %v1917
    %v1919 = vmul.f32 %v1892, 1.442695
    %v1920 = vpow.pop %v1919
    %v1921 = vmul.f32 %v1893, 1.442695
    %v1922 = vpow.pop %v1921
    %v1923 = vmul.f32 %v1894, 1.442695
    %v1924 = vpow.pop %v1923
    %v1925 = vmul.f32 %v1895, 1.442695
    %v1926 = vpow.pop %v1925
    %v1927 = vmul.f32 %v1896, 1.442695
    %v1928 = vpow.pop %v1927
    %v1929 = vadd.f32 %v1898, 1.0
    %v1930 = vadd.f32 %v1900, 1.0
    %v1931 = vadd.f32 %v1902, 1.0
    %v1932 = vadd.f32 %v1904, 1.0
    %v1933 = vadd.f32 %v1906, 1.0
    %v1934 = vadd.f32 %v1908, 1.0
    %v1935 = vadd.f32 %v1910, 1.0
    %v1936 = vadd.f32 %v1912, 1.0
    %v1937 = vadd.f32 %v1914, 1.0
    %v1938 = vadd.f32 %v1916, 1.0
    %v1939 = vadd.f32 %v1918, 1.0
    %v1940 = vadd.f32 %v1920, 1.0
    %v1941 = vadd.f32 %v1922, 1.0
    %v1942 = vadd.f32 %v1924, 1.0
    %v1943 = vadd.f32 %v1926, 1.0
    %v1944 = vadd.f32 %v1928, 1.0
    %v1945 = vrcp.pop %v1929
    %v1946 = vmul.f32 1.0, %v1945
    %v1947 = vrcp.pop %v1930
    %v1948 = vmul.f32 1.0, %v1947
    %v1949 = vrcp.pop %v1931
    %v1950 = vmul.f32 1.0, %v1949
    %v1951 = vrcp.pop %v1932
    %v1952 = vmul.f32 1.0, %v1951
    %v1953 = vrcp.pop %v1933
    %v1954 = vmul.f32 1.0, %v1953
    %v1955 = vrcp.pop %v1934
    %v1956 = vmul.f32 1.0, %v1955
    %v1957 = vrcp.pop %v1935
    %v1958 = vmul.f32 1.0, %v1957
    %v1959 = vrcp.pop %v1936
    %v1960 = vmul.f32 1.0, %v1959
    %v1961 = vrcp.pop %v1937
    %v1962 = vmul.f32 1.0, %v1961
    %v1963 = vrcp.pop %v1938
    %v1964 = vmul.f32 1.0, %v1963
    %v1965 = vrcp.pop %v1939
    %v1966 = vmul.f32 1.0, %v1965
    %v1967 = vrcp.pop %v1940
    %v1968 = vmul.f32 1.0, %v1967
    %v1969 = vrcp.pop %v1941
    %v1970 = vmul.f32 1.0, %v1969
    %v1971 = vrcp.pop %v1942
    %v1972 = vmul.f32 1.0, %v1971
    %v1973 = vrcp.pop %v1943
    %v1974 = vmul.f32 1.0, %v1973
    %v1975 = vrcp.pop %v1944
    %v1976 = vmul.f32 1.0, %v1975
    %1993 = vset.pattern.permute.xlu0 0
    %1994 = vperm.xlu0 %1993, %v1946
    %v1995 = vpop.permute.xlu0 %1994
    %1996 = vset.pattern.permute.xlu0 0
    %1997 = vperm.xlu0 %1996, %v1948
    %v1998 = vpop.permute.xlu0 %1997
    %1999 = vset.pattern.permute.xlu0 0
    %2000 = vperm.xlu0 %1999, %v1950
    %v2001 = vpop.permute.xlu0 %2000
    %2002 = vset.pattern.permute.xlu0 0
    %2003 = vperm.xlu0 %2002, %v1952
    %v2004 = vpop.permute.xlu0 %2003
    %2005 = vset.pattern.permute.xlu0 0
    %2006 = vperm.xlu0 %2005, %v1954
    %v2007 = vpop.permute.xlu0 %2006
    %2008 = vset.pattern.permute.xlu0 0
    %2009 = vperm.xlu0 %2008, %v1956
    %v2010 = vpop.permute.xlu0 %2009
    %2011 = vset.pattern.permute.xlu0 0
    %2012 = vperm.xlu0 %2011, %v1958
    %v2013 = vpop.permute.xlu0 %2012
    %2014 = vset.pattern.permute.xlu0 0
    %2015 = vperm.xlu0 %2014, %v1960
    %v2016 = vpop.permute.xlu0 %2015
    %2017 = vset.pattern.permute.xlu0 0
    %2018 = vperm.xlu0 %2017, %v1962
    %v2019 = vpop.permute.xlu0 %2018
    %2020 = vset.pattern.permute.xlu0 0
    %2021 = vperm.xlu0 %2020, %v1964
    %v2022 = vpop.permute.xlu0 %2021
    %2023 = vset.pattern.permute.xlu0 0
    %2024 = vperm.xlu0 %2023, %v1966
    %v2025 = vpop.permute.xlu0 %2024
    %2026 = vset.pattern.permute.xlu0 0
    %2027 = vperm.xlu0 %2026, %v1968
    %v2028 = vpop.permute.xlu0 %2027
    %2029 = vset.pattern.permute.xlu0 0
    %2030 = vperm.xlu0 %2029, %v1970
    %v2031 = vpop.permute.xlu0 %2030
    %2032 = vset.pattern.permute.xlu0 0
    %2033 = vperm.xlu0 %2032, %v1972
    %v2034 = vpop.permute.xlu0 %2033
    %2035 = vset.pattern.permute.xlu0 0
    %2036 = vperm.xlu0 %2035, %v1974
    %v2037 = vpop.permute.xlu0 %2036
    %2038 = vset.pattern.permute.xlu0 0
    %2039 = vperm.xlu0 %2038, %v1976
    %v2040 = vpop.permute.xlu0 %2039
    %v2041 = vlaneseq
    %v2042 = vshrl.u32 %v2041, 7
    %v2043 = vsub.s32 %v648, %v2042
    %v2044 = vrot.slane %v1995, %v2043
    %v2045 = vlaneseq
    %v2046 = vshrl.u32 %v2045, 7
    %v2047 = vsub.s32 %v653, %v2046
    %v2048 = vrot.slane %v1998, %v2047
    %v2049 = vsel %vm658, %v2048, %v2044
    %v2050 = vlaneseq
    %v2051 = vshrl.u32 %v2050, 7
    %v2052 = vsub.s32 %v660, %v2051
    %v2053 = vrot.slane %v2001, %v2052
    %v2054 = vsel %vm665, %v2053, %v2049
    %v2055 = vlaneseq
    %v2056 = vshrl.u32 %v2055, 7
    %v2057 = vsub.s32 %v667, %v2056
    %v2058 = vrot.slane %v2004, %v2057
    %v2059 = vsel %vm672, %v2058, %v2054
    %v2060 = vlaneseq
    %v2061 = vshrl.u32 %v2060, 7
    %v2062 = vsub.s32 %v674, %v2061
    %v2063 = vrot.slane %v2007, %v2062
    %v2064 = vsel %vm679, %v2063, %v2059
    %v2065 = vlaneseq
    %v2066 = vshrl.u32 %v2065, 7
    %v2067 = vsub.s32 %v681, %v2066
    %v2068 = vrot.slane %v2010, %v2067
    %v2069 = vsel %vm686, %v2068, %v2064
    %v2070 = vlaneseq
    %v2071 = vshrl.u32 %v2070, 7
    %v2072 = vsub.s32 %v688, %v2071
    %v2073 = vrot.slane %v2013, %v2072
    %v2074 = vsel %vm693, %v2073, %v2069
    %v2075 = vlaneseq
    %v2076 = vshrl.u32 %v2075, 7
    %v2077 = vsub.s32 %v695, %v2076
    %v2078 = vrot.slane %v2016, %v2077
    %v2079 = vsel %vm700, %v2078, %v2074
    %v2080 = vlaneseq
    %v2081 = vshrl.u32 %v2080, 7
    %v2082 = vsub.s32 %v702, %v2081
    %v2083 = vrot.slane %v2019, %v2082
    %v2084 = vsel %vm707, %v2083, %v2079
    %v2085 = vlaneseq
    %v2086 = vshrl.u32 %v2085, 7
    %v2087 = vsub.s32 %v709, %v2086
    %v2088 = vrot.slane %v2022, %v2087
    %v2089 = vsel %vm714, %v2088, %v2084
    %v2090 = vlaneseq
    %v2091 = vshrl.u32 %v2090, 7
    %v2092 = vsub.s32 %v716, %v2091
    %v2093 = vrot.slane %v2025, %v2092
    %v2094 = vsel %vm721, %v2093, %v2089
    %v2095 = vlaneseq
    %v2096 = vshrl.u32 %v2095, 7
    %v2097 = vsub.s32 %v723, %v2096
    %v2098 = vrot.slane %v2028, %v2097
    %v2099 = vsel %vm728, %v2098, %v2094
    %v2100 = vlaneseq
    %v2101 = vshrl.u32 %v2100, 7
    %v2102 = vsub.s32 %v730, %v2101
    %v2103 = vrot.slane %v2031, %v2102
    %v2104 = vsel %vm735, %v2103, %v2099
    %v2105 = vlaneseq
    %v2106 = vshrl.u32 %v2105, 7
    %v2107 = vsub.s32 %v737, %v2106
    %v2108 = vrot.slane %v2034, %v2107
    %v2109 = vsel %vm742, %v2108, %v2104
    %v2110 = vlaneseq
    %v2111 = vshrl.u32 %v2110, 7
    %v2112 = vsub.s32 %v744, %v2111
    %v2113 = vrot.slane %v2037, %v2112
    %v2114 = vsel %vm749, %v2113, %v2109
    %v2115 = vlaneseq
    %v2116 = vshrl.u32 %v2115, 7
    %v2117 = vsub.s32 %v751, %v2116
    %v2118 = vrot.slane %v2040, %v2117
    %v2119 = vsel %vm756, %v2118, %v2114
    %2121 = vst [vmem:[#allocation10 + $0x2] sm:$0x1] %v2119
    %s2122 = sld [smem:[#allocation2 + $0x2]]
    %v2123 = vstv %s2122
    %v2124 = vmul.f32 %v2123, %v1946
    %v2125 = vmul.f32 %v2123, %v1948
    %v2126 = vmul.f32 %v2123, %v1950
    %v2127 = vmul.f32 %v2123, %v1952
    %v2128 = vmul.f32 %v2123, %v1954
    %v2129 = vmul.f32 %v2123, %v1956
    %v2130 = vmul.f32 %v2123, %v1958
    %v2131 = vmul.f32 %v2123, %v1960
    %v2132 = vmul.f32 %v2123, %v1962
    %v2133 = vmul.f32 %v2123, %v1964
    %v2134 = vmul.f32 %v2123, %v1966
    %v2135 = vmul.f32 %v2123, %v1968
    %v2136 = vmul.f32 %v2123, %v1970
    %v2137 = vmul.f32 %v2123, %v1972
    %v2138 = vmul.f32 %v2123, %v1974
    %v2139 = vmul.f32 %v2123, %v1976
    %v2140 = vadd.f32 %v1459, %v2124
    %v2141 = vadd.f32 %v1460, %v2125
    %v2142 = vadd.f32 %v1461, %v2126
    %v2143 = vadd.f32 %v1462, %v2127
    %v2144 = vadd.f32 %v1463, %v2128
    %v2145 = vadd.f32 %v1464, %v2129
    %v2146 = vadd.f32 %v1465, %v2130
    %v2147 = vadd.f32 %v1466, %v2131
    %v2148 = vadd.f32 %v1467, %v2132
    %v2149 = vadd.f32 %v1468, %v2133
    %v2150 = vadd.f32 %v1469, %v2134
    %v2151 = vadd.f32 %v1470, %v2135
    %v2152 = vadd.f32 %v1471, %v2136
    %v2153 = vadd.f32 %v1472, %v2137
    %v2154 = vadd.f32 %v1473, %v2138
    %v2155 = vadd.f32 %v1474, %v2139
    %v2156 = vld [vmem:[#allocation6 + $0x18] sm:$0xff]
    %v2157 = vld [vmem:[#allocation6 + $0x38] sm:$0xff]
    %v2158 = vld [vmem:[#allocation6 + $0x58] sm:$0xff]
    %v2159 = vld [vmem:[#allocation6 + $0x78] sm:$0xff]
    %v2160 = vld [vmem:[#allocation6 + $0x98] sm:$0xff]
    %v2161 = vld [vmem:[#allocation6 + $0xb8] sm:$0xff]
    %v2162 = vld [vmem:[#allocation6 + $0xd8] sm:$0xff]
    %v2163 = vld [vmem:[#allocation6 + $0xf8] sm:$0xff]
    %v2164 = vld [vmem:[#allocation6 + $0x118] sm:$0xff]
    %v2165 = vld [vmem:[#allocation6 + $0x138] sm:$0xff]
    %v2166 = vld [vmem:[#allocation6 + $0x158] sm:$0xff]
    %v2167 = vld [vmem:[#allocation6 + $0x178] sm:$0xff]
    %v2168 = vld [vmem:[#allocation6 + $0x198] sm:$0xff]
    %v2169 = vld [vmem:[#allocation6 + $0x1b8] sm:$0xff]
    %v2170 = vld [vmem:[#allocation6 + $0x1d8] sm:$0xff]
    %v2171 = vld [vmem:[#allocation6 + $0x1f8] sm:$0xff]
    %v2172 = vpack.c.bf16 %v2157, %v2156
    %v2173 = vpack.c.bf16 %v2159, %v2158
    %v2174 = vpack.c.bf16 %v2161, %v2160
    %v2175 = vpack.c.bf16 %v2163, %v2162
    %v2176 = vpack.c.bf16 %v2165, %v2164
    %v2177 = vpack.c.bf16 %v2167, %v2166
    %v2178 = vpack.c.bf16 %v2169, %v2168
    %v2179 = vpack.c.bf16 %v2171, %v2170
    %s2180 = scalar_lea.vmem [#allocation7], 384
    %v2181 = vld [vmem:[%s2180] sm:$0xff]
    %v2182 = vld [vmem:[%s2180 + $0x8] sm:$0xff]
    %v2183 = vld [vmem:[%s2180 + $0x10] sm:$0xff]
    %v2184 = vld [vmem:[%s2180 + $0x18] sm:$0xff]
    %v2185 = vld [vmem:[%s2180 + $0x20] sm:$0xff]
    %v2186 = vld [vmem:[%s2180 + $0x28] sm:$0xff]
    %v2187 = vld [vmem:[%s2180 + $0x30] sm:$0xff]
    %v2188 = vld [vmem:[%s2180 + $0x38] sm:$0xff]
    %v2189 = vld [vmem:[%s2180 + $0x40] sm:$0xff]
    %v2190 = vld [vmem:[%s2180 + $0x48] sm:$0xff]
    %v2191 = vld [vmem:[%s2180 + $0x50] sm:$0xff]
    %v2192 = vld [vmem:[%s2180 + $0x58] sm:$0xff]
    %v2193 = vld [vmem:[%s2180 + $0x60] sm:$0xff]
    %v2194 = vld [vmem:[%s2180 + $0x68] sm:$0xff]
    %v2195 = vld [vmem:[%s2180 + $0x70] sm:$0xff]
    %v2196 = vld [vmem:[%s2180 + $0x78] sm:$0xff]
    %v2197 = vpack.c.bf16 %v2182, %v2181
    %v2198 = vpack.c.bf16 %v2184, %v2183
    %v2199 = vpack.c.bf16 %v2186, %v2185
    %v2200 = vpack.c.bf16 %v2188, %v2187
    %v2201 = vpack.c.bf16 %v2190, %v2189
    %v2202 = vpack.c.bf16 %v2192, %v2191
    %v2203 = vpack.c.bf16 %v2194, %v2193
    %v2204 = vpack.c.bf16 %v2196, %v2195
    %s2205 = scalar_lea.vmem %s3, 3
    %v2206 = vld [vmem:[%s2205] sm:$0x1]
    %v2208 = vlaneseq
    %v2209 = vshrl.u32 %v2208, 7
    %v2210 = vsub.s32 0, %v2209
    %v2211 = vrot.slane %v2206, %v2210
    %2213 = vmatprep.subr.bf16.mxu0 0
    %2214 = vmatpush1.bf16.msra.mxu0 %v2197
    %2215 = vmatprep.subr.bf16.mxu0 0
    %2216 = vmatpush1.bf16.msra.mxu0 %v2198
    %2217 = vmatprep.subr.bf16.mxu0 0
    %2218 = vmatpush1.bf16.msra.mxu0 %v2199
    %2219 = vmatprep.subr.bf16.mxu0 0
    %2220 = vmatpush1.bf16.msra.mxu0 %v2200
    %2221 = vmatprep.subr.bf16.mxu0 0
    %2222 = vmatpush1.bf16.msra.mxu0 %v2201
    %2223 = vmatprep.subr.bf16.mxu0 0
    %2224 = vmatpush1.bf16.msra.mxu0 %v2202
    %2225 = vmatprep.subr.bf16.mxu0 0
    %2226 = vmatpush1.bf16.msra.mxu0 %v2203
    %2227 = vmatprep.subr.bf16.mxu0 0
    %2228 = vmatpush1.bf16.msra.mxu0 %v2204
    %2229 = vmatprep.subr.bf16.mxu0 0
    %2230 = vmatpush1.bf16.msra.mxu0 0
    %2231 = vmatprep.subr.bf16.mxu0 0
    %2232 = vmatpush1.bf16.msra.mxu0 0
    %2233 = vmatprep.subr.bf16.mxu0 0
    %2234 = vmatpush1.bf16.msra.mxu0 0
    %2235 = vmatprep.subr.bf16.mxu0 0
    %2236 = vmatpush1.bf16.msra.mxu0 0
    %2237 = vmatprep.subr.bf16.mxu0 0
    %2238 = vmatpush1.bf16.msra.mxu0 0
    %2239 = vmatprep.subr.bf16.mxu0 0
    %2240 = vmatpush1.bf16.msra.mxu0 0
    %2241 = vmatprep.subr.bf16.mxu0 0
    %2242 = vmatpush1.bf16.msra.mxu0 0
    %2243 = vmatprep.subr.bf16.mxu0 0
    %2244 = vmatpush1.bf16.msra.mxu0 0
    %2245 = vmatprep.mubr.bf16.mxu0 0
    %2246 = vmatmul.mubr.bf16.gmra.mrb[0].mxu0 %v2172
    %v2247 = vpop.f32.mrb[0].mxu0
    %v2248 = vadd.f32 %v2211, %v2247
    %v2249 = vpop.f32.mrb[0].mxu0
    %v2250 = vpop.f32.mrb[0].mxu0
    %v2251 = vadd.f32 %v2211, %v2250
    %v2252 = vpop.f32.mrb[0].mxu0
    %2253 = vmatprep.mubr.bf16.mxu0 0
    %2254 = vmatmul.mubr.bf16.gmra.mrb[0].mxu0 %v2173
    %v2255 = vpop.f32.mrb[0].mxu0
    %v2256 = vadd.f32 %v2211, %v2255
    %v2257 = vpop.f32.mrb[0].mxu0
    %v2258 = vpop.f32.mrb[0].mxu0
    %v2259 = vadd.f32 %v2211, %v2258
    %v2260 = vpop.f32.mrb[0].mxu0
    %2261 = vmatprep.mubr.bf16.mxu0 0
    %2262 = vmatmul.mubr.bf16.gmra.mrb[0].mxu0 %v2174
    %v2263 = vpop.f32.mrb[0].mxu0
    %v2264 = vadd.f32 %v2211, %v2263
    %v2265 = vpop.f32.mrb[0].mxu0
    %v2266 = vpop.f32.mrb[0].mxu0
    %v2267 = vadd.f32 %v2211, %v2266
    %v2268 = vpop.f32.mrb[0].mxu0
    %2269 = vmatprep.mubr.bf16.mxu0 0
    %2270 = vmatmul.mubr.bf16.gmra.mrb[0].mxu0 %v2175
    %v2271 = vpop.f32.mrb[0].mxu0
    %v2272 = vadd.f32 %v2211, %v2271
    %v2273 = vpop.f32.mrb[0].mxu0
    %v2274 = vpop.f32.mrb[0].mxu0
    %v2275 = vadd.f32 %v2211, %v2274
    %v2276 = vpop.f32.mrb[0].mxu0
    %2277 = vmatprep.mubr.bf16.mxu0 0
    %2278 = vmatmul.mubr.bf16.gmra.mrb[0].mxu0 %v2176
    %v2279 = vpop.f32.mrb[0].mxu0
    %v2280 = vadd.f32 %v2211, %v2279
    %v2281 = vpop.f32.mrb[0].mxu0
    %v2282 = vpop.f32.mrb[0].mxu0
    %v2283 = vadd.f32 %v2211, %v2282
    %v2284 = vpop.f32.mrb[0].mxu0
    %2285 = vmatprep.mubr.bf16.mxu0 0
    %2286 = vmatmul.mubr.bf16.gmra.mrb[0].mxu0 %v2177
    %v2287 = vpop.f32.mrb[0].mxu0
    %v2288 = vadd.f32 %v2211, %v2287
    %v2289 = vpop.f32.mrb[0].mxu0
    %v2290 = vpop.f32.mrb[0].mxu0
    %v2291 = vadd.f32 %v2211, %v2290
    %v2292 = vpop.f32.mrb[0].mxu0
    %2293 = vmatprep.mubr.bf16.mxu0 0
    %2294 = vmatmul.mubr.bf16.gmra.mrb[0].mxu0 %v2178
    %v2295 = vpop.f32.mrb[0].mxu0
    %v2296 = vadd.f32 %v2211, %v2295
    %v2297 = vpop.f32.mrb[0].mxu0
    %v2298 = vpop.f32.mrb[0].mxu0
    %v2299 = vadd.f32 %v2211, %v2298
    %v2300 = vpop.f32.mrb[0].mxu0
    %2301 = vmatprep.mubr.bf16.mxu0 0
    %2302 = vmatmul.mubr.bf16.gmra.mrb[0].mxu0 %v2179
    %v2303 = vpop.f32.mrb[0].mxu0
    %v2304 = vadd.f32 %v2211, %v2303
    %v2305 = vpop.f32.mrb[0].mxu0
    %v2306 = vpop.f32.mrb[0].mxu0
    %v2307 = vadd.f32 %v2211, %v2306
    %v2308 = vpop.f32.mrb[0].mxu0
    %2309 = vdwg.mxu0
    %v2310 = vmax.f32 %v2248, 0.0
    %v2311 = vmax.f32 %v2251, 0.0
    %v2312 = vmax.f32 %v2256, 0.0
    %v2313 = vmax.f32 %v2259, 0.0
    %v2314 = vmax.f32 %v2264, 0.0
    %v2315 = vmax.f32 %v2267, 0.0
    %v2316 = vmax.f32 %v2272, 0.0
    %v2317 = vmax.f32 %v2275, 0.0
    %v2318 = vmax.f32 %v2280, 0.0
    %v2319 = vmax.f32 %v2283, 0.0
    %v2320 = vmax.f32 %v2288, 0.0
    %v2321 = vmax.f32 %v2291, 0.0
    %v2322 = vmax.f32 %v2296, 0.0
    %v2323 = vmax.f32 %v2299, 0.0
    %v2324 = vmax.f32 %v2304, 0.0
    %v2325 = vmax.f32 %v2307, 0.0
    %v2326 = vpack.c.bf16 %v2311, %v2310
    %v2327 = vpack.c.bf16 %v2313, %v2312
    %v2328 = vpack.c.bf16 %v2315, %v2314
    %v2329 = vpack.c.bf16 %v2317, %v2316
    %v2330 = vpack.c.bf16 %v2319, %v2318
    %v2331 = vpack.c.bf16 %v2321, %v2320
    %v2332 = vpack.c.bf16 %v2323, %v2322
    %v2333 = vpack.c.bf16 %v2325, %v2324
    %s2334 = scalar_lea.vmem [#allocation9], 384
    %v2335 = vld [vmem:[%s2334] sm:$0xff]
    %v2336 = vld [vmem:[%s2334 + $0x8] sm:$0xff]
    %v2337 = vld [vmem:[%s2334 + $0x10] sm:$0xff]
    %v2338 = vld [vmem:[%s2334 + $0x18] sm:$0xff]
    %v2339 = vld [vmem:[%s2334 + $0x20] sm:$0xff]
    %v2340 = vld [vmem:[%s2334 + $0x28] sm:$0xff]
    %v2341 = vld [vmem:[%s2334 + $0x30] sm:$0xff]
    %v2342 = vld [vmem:[%s2334 + $0x38] sm:$0xff]
    %v2343 = vld [vmem:[%s2334 + $0x40] sm:$0xff]
    %v2344 = vld [vmem:[%s2334 + $0x48] sm:$0xff]
    %v2345 = vld [vmem:[%s2334 + $0x50] sm:$0xff]
    %v2346 = vld [vmem:[%s2334 + $0x58] sm:$0xff]
    %v2347 = vld [vmem:[%s2334 + $0x60] sm:$0xff]
    %v2348 = vld [vmem:[%s2334 + $0x68] sm:$0xff]
    %v2349 = vld [vmem:[%s2334 + $0x70] sm:$0xff]
    %v2350 = vld [vmem:[%s2334 + $0x78] sm:$0xff]
    %v2351 = vpack.c.bf16 %v2336, %v2335
    %v2352 = vpack.c.bf16 %v2338, %v2337
    %v2353 = vpack.c.bf16 %v2340, %v2339
    %v2354 = vpack.c.bf16 %v2342, %v2341
    %v2355 = vpack.c.bf16 %v2344, %v2343
    %v2356 = vpack.c.bf16 %v2346, %v2345
    %v2357 = vpack.c.bf16 %v2348, %v2347
    %v2358 = vpack.c.bf16 %v2350, %v2349
    %s2359 = scalar_lea.vmem %s5, 3
    %v2360 = vld [vmem:[%s2359] sm:$0x1]
    %v2362 = vlaneseq
    %v2363 = vshrl.u32 %v2362, 7
    %v2364 = vsub.s32 0, %v2363
    %v2365 = vrot.slane %v2360, %v2364
    %2367 = vmatprep.subr.bf16.mxu0 0
    %2368 = vmatpush1.bf16.msra.mxu0 %v2351
    %2369 = vmatprep.subr.bf16.mxu0 0
    %2370 = vmatpush1.bf16.msra.mxu0 %v2352
    %2371 = vmatprep.subr.bf16.mxu0 0
    %2372 = vmatpush1.bf16.msra.mxu0 %v2353
    %2373 = vmatprep.subr.bf16.mxu0 0
    %2374 = vmatpush1.bf16.msra.mxu0 %v2354
    %2375 = vmatprep.subr.bf16.mxu0 0
    %2376 = vmatpush1.bf16.msra.mxu0 %v2355
    %2377 = vmatprep.subr.bf16.mxu0 0
    %2378 = vmatpush1.bf16.msra.mxu0 %v2356
    %2379 = vmatprep.subr.bf16.mxu0 0
    %2380 = vmatpush1.bf16.msra.mxu0 %v2357
    %2381 = vmatprep.subr.bf16.mxu0 0
    %2382 = vmatpush1.bf16.msra.mxu0 %v2358
    %2383 = vmatprep.subr.bf16.mxu0 0
    %2384 = vmatpush1.bf16.msra.mxu0 0
    %2385 = vmatprep.subr.bf16.mxu0 0
    %2386 = vmatpush1.bf16.msra.mxu0 0
    %2387 = vmatprep.subr.bf16.mxu0 0
    %2388 = vmatpush1.bf16.msra.mxu0 0
    %2389 = vmatprep.subr.bf16.mxu0 0
    %2390 = vmatpush1.bf16.msra.mxu0 0
    %2391 = vmatprep.subr.bf16.mxu0 0
    %2392 = vmatpush1.bf16.msra.mxu0 0
    %2393 = vmatprep.subr.bf16.mxu0 0
    %2394 = vmatpush1.bf16.msra.mxu0 0
    %2395 = vmatprep.subr.bf16.mxu0 0
    %2396 = vmatpush1.bf16.msra.mxu0 0
    %2397 = vmatprep.subr.bf16.mxu0 0
    %2398 = vmatpush1.bf16.msra.mxu0 0
    %2399 = vmatprep.mubr.bf16.mxu0 0
    %2400 = vmatmul.mubr.bf16.gmra.mrb[0].mxu0 %v2326
    %v2401 = vpop.f32.mrb[0].mxu0
    %v2402 = vadd.f32 %v2365, %v2401
    %v2403 = vpop.f32.mrb[0].mxu0
    %v2404 = vpop.f32.mrb[0].mxu0
    %v2405 = vadd.f32 %v2365, %v2404
    %v2406 = vpop.f32.mrb[0].mxu0
    %2407 = vmatprep.mubr.bf16.mxu0 0
    %2408 = vmatmul.mubr.bf16.gmra.mrb[0].mxu0 %v2327
    %v2409 = vpop.f32.mrb[0].mxu0
    %v2410 = vadd.f32 %v2365, %v2409
    %v2411 = vpop.f32.mrb[0].mxu0
    %v2412 = vpop.f32.mrb[0].mxu0
    %v2413 = vadd.f32 %v2365, %v2412
    %v2414 = vpop.f32.mrb[0].mxu0
    %2415 = vmatprep.mubr.bf16.mxu0 0
    %2416 = vmatmul.mubr.bf16.gmra.mrb[0].mxu0 %v2328
    %v2417 = vpop.f32.mrb[0].mxu0
    %v2418 = vadd.f32 %v2365, %v2417
    %v2419 = vpop.f32.mrb[0].mxu0
    %v2420 = vpop.f32.mrb[0].mxu0
    %v2421 = vadd.f32 %v2365, %v2420
    %v2422 = vpop.f32.mrb[0].mxu0
    %2423 = vmatprep.mubr.bf16.mxu0 0
    %2424 = vmatmul.mubr.bf16.gmra.mrb[0].mxu0 %v2329
    %v2425 = vpop.f32.mrb[0].mxu0
    %v2426 = vadd.f32 %v2365, %v2425
    %v2427 = vpop.f32.mrb[0].mxu0
    %v2428 = vpop.f32.mrb[0].mxu0
    %v2429 = vadd.f32 %v2365, %v2428
    %v2430 = vpop.f32.mrb[0].mxu0
    %2431 = vmatprep.mubr.bf16.mxu0 0
    %2432 = vmatmul.mubr.bf16.gmra.mrb[0].mxu0 %v2330
    %v2433 = vpop.f32.mrb[0].mxu0
    %v2434 = vadd.f32 %v2365, %v2433
    %v2435 = vpop.f32.mrb[0].mxu0
    %v2436 = vpop.f32.mrb[0].mxu0
    %v2437 = vadd.f32 %v2365, %v2436
    %v2438 = vpop.f32.mrb[0].mxu0
    %2439 = vmatprep.mubr.bf16.mxu0 0
    %2440 = vmatmul.mubr.bf16.gmra.mrb[0].mxu0 %v2331
    %v2441 = vpop.f32.mrb[0].mxu0
    %v2442 = vadd.f32 %v2365, %v2441
    %v2443 = vpop.f32.mrb[0].mxu0
    %v2444 = vpop.f32.mrb[0].mxu0
    %v2445 = vadd.f32 %v2365, %v2444
    %v2446 = vpop.f32.mrb[0].mxu0
    %2447 = vmatprep.mubr.bf16.mxu0 0
    %2448 = vmatmul.mubr.bf16.gmra.mrb[0].mxu0 %v2332
    %v2449 = vpop.f32.mrb[0].mxu0
    %v2450 = vadd.f32 %v2365, %v2449
    %v2451 = vpop.f32.mrb[0].mxu0
    %v2452 = vpop.f32.mrb[0].mxu0
    %v2453 = vadd.f32 %v2365, %v2452
    %v2454 = vpop.f32.mrb[0].mxu0
    %2455 = vmatprep.mubr.bf16.mxu0 0
    %2456 = vmatmul.mubr.bf16.gmra.mrb[0].mxu0 %v2333
    %v2457 = vpop.f32.mrb[0].mxu0
    %v2458 = vadd.f32 %v2365, %v2457
    %v2459 = vpop.f32.mrb[0].mxu0
    %v2460 = vpop.f32.mrb[0].mxu0
    %v2461 = vadd.f32 %v2365, %v2460
    %v2462 = vpop.f32.mrb[0].mxu0
    %2463 = vdwg.mxu0
    %v2464 = vmax.f32 %v2402, 0.0
    %v2465 = vmax.f32 %v2405, 0.0
    %v2466 = vmax.f32 %v2410, 0.0
    %v2467 = vmax.f32 %v2413, 0.0
    %v2468 = vmax.f32 %v2418, 0.0
    %v2469 = vmax.f32 %v2421, 0.0
    %v2470 = vmax.f32 %v2426, 0.0
    %v2471 = vmax.f32 %v2429, 0.0
    %v2472 = vmax.f32 %v2434, 0.0
    %v2473 = vmax.f32 %v2437, 0.0
    %v2474 = vmax.f32 %v2442, 0.0
    %v2475 = vmax.f32 %v2445, 0.0
    %v2476 = vmax.f32 %v2450, 0.0
    %v2477 = vmax.f32 %v2453, 0.0
    %v2478 = vmax.f32 %v2458, 0.0
    %v2479 = vmax.f32 %v2461, 0.0
    %s2480 = scalar_lea.vmem %s6, 3
    %v2481 = vld [vmem:[%s2480] sm:$0x1]
    %v2483 = vlaneseq
    %v2484 = vshrl.u32 %v2483, 7
    %v2485 = vsub.s32 0, %v2484
    %v2486 = vrot.slane %v2481, %v2485
    %v2488 = vmul.f32 %v2464, %v2486
    %v2489 = vmul.f32 %v2465, %v2486
    %v2490 = vmul.f32 %v2466, %v2486
    %v2491 = vmul.f32 %v2467, %v2486
    %v2492 = vmul.f32 %v2468, %v2486
    %v2493 = vmul.f32 %v2469, %v2486
    %v2494 = vmul.f32 %v2470, %v2486
    %v2495 = vmul.f32 %v2471, %v2486
    %v2496 = vmul.f32 %v2472, %v2486
    %v2497 = vmul.f32 %v2473, %v2486
    %v2498 = vmul.f32 %v2474, %v2486
    %v2499 = vmul.f32 %v2475, %v2486
    %v2500 = vmul.f32 %v2476, %v2486
    %v2501 = vmul.f32 %v2477, %v2486
    %v2502 = vmul.f32 %v2478, %v2486
    %v2503 = vmul.f32 %v2479, %v2486
    %2504 = vadd.xlane.f32.xlu0 %v2488
    %v2505 = vpop.xlane.xlu0 %2504
    %2506 = vadd.xlane.f32.xlu0 %v2489
    %v2507 = vpop.xlane.xlu0 %2506
    %2508 = vadd.xlane.f32.xlu0 %v2490
    %v2509 = vpop.xlane.xlu0 %2508
    %2510 = vadd.xlane.f32.xlu0 %v2491
    %v2511 = vpop.xlane.xlu0 %2510
    %2512 = vadd.xlane.f32.xlu0 %v2492
    %v2513 = vpop.xlane.xlu0 %2512
    %2514 = vadd.xlane.f32.xlu0 %v2493
    %v2515 = vpop.xlane.xlu0 %2514
    %2516 = vadd.xlane.f32.xlu0 %v2494
    %v2517 = vpop.xlane.xlu0 %2516
    %2518 = vadd.xlane.f32.xlu0 %v2495
    %v2519 = vpop.xlane.xlu0 %2518
    %2520 = vadd.xlane.f32.xlu0 %v2496
    %v2521 = vpop.xlane.xlu0 %2520
    %2522 = vadd.xlane.f32.xlu0 %v2497
    %v2523 = vpop.xlane.xlu0 %2522
    %2524 = vadd.xlane.f32.xlu0 %v2498
    %v2525 = vpop.xlane.xlu0 %2524
    %2526 = vadd.xlane.f32.xlu0 %v2499
    %v2527 = vpop.xlane.xlu0 %2526
    %2528 = vadd.xlane.f32.xlu0 %v2500
    %v2529 = vpop.xlane.xlu0 %2528
    %2530 = vadd.xlane.f32.xlu0 %v2501
    %v2531 = vpop.xlane.xlu0 %2530
    %2532 = vadd.xlane.f32.xlu0 %v2502
    %v2533 = vpop.xlane.xlu0 %2532
    %2534 = vadd.xlane.f32.xlu0 %v2503
    %v2535 = vpop.xlane.xlu0 %2534
    %v2536 = vld [vmem:[%s7 + $0x3] sm:$0x1]
    %2538 = vset.pattern.permute.xlu0 0
    %2539 = vperm.xlu0 %2538, %v2536
    %v2540 = vpop.permute.xlu0 %2539
    %v2541 = vlaneseq
    %v2542 = vshrl.u32 %v2541, 7
    %v2543 = vsub.s32 0, %v2542
    %v2544 = vrot.slane %v2540, %v2543
    %v2546 = vadd.f32 %v2505, %v2544
    %v2547 = vadd.f32 %v2507, %v2544
    %v2548 = vadd.f32 %v2509, %v2544
    %v2549 = vadd.f32 %v2511, %v2544
    %v2550 = vadd.f32 %v2513, %v2544
    %v2551 = vadd.f32 %v2515, %v2544
    %v2552 = vadd.f32 %v2517, %v2544
    %v2553 = vadd.f32 %v2519, %v2544
    %v2554 = vadd.f32 %v2521, %v2544
    %v2555 = vadd.f32 %v2523, %v2544
    %v2556 = vadd.f32 %v2525, %v2544
    %v2557 = vadd.f32 %v2527, %v2544
    %v2558 = vadd.f32 %v2529, %v2544
    %v2559 = vadd.f32 %v2531, %v2544
    %v2560 = vadd.f32 %v2533, %v2544
    %v2561 = vadd.f32 %v2535, %v2544
    %v2562 = vxor.u32 %v2546, 2147483648
    %v2563 = vxor.u32 %v2547, 2147483648
    %v2564 = vxor.u32 %v2548, 2147483648
    %v2565 = vxor.u32 %v2549, 2147483648
    %v2566 = vxor.u32 %v2550, 2147483648
    %v2567 = vxor.u32 %v2551, 2147483648
    %v2568 = vxor.u32 %v2552, 2147483648
    %v2569 = vxor.u32 %v2553, 2147483648
    %v2570 = vxor.u32 %v2554, 2147483648
    %v2571 = vxor.u32 %v2555, 2147483648
    %v2572 = vxor.u32 %v2556, 2147483648
    %v2573 = vxor.u32 %v2557, 2147483648
    %v2574 = vxor.u32 %v2558, 2147483648
    %v2575 = vxor.u32 %v2559, 2147483648
    %v2576 = vxor.u32 %v2560, 2147483648
    %v2577 = vxor.u32 %v2561, 2147483648
    %v2578 = vmul.f32 %v2562, 1.442695
    %v2579 = vpow.pop %v2578
    %v2580 = vmul.f32 %v2563, 1.442695
    %v2581 = vpow.pop %v2580
    %v2582 = vmul.f32 %v2564, 1.442695
    %v2583 = vpow.pop %v2582
    %v2584 = vmul.f32 %v2565, 1.442695
    %v2585 = vpow.pop %v2584
    %v2586 = vmul.f32 %v2566, 1.442695
    %v2587 = vpow.pop %v2586
    %v2588 = vmul.f32 %v2567, 1.442695
    %v2589 = vpow.pop %v2588
    %v2590 = vmul.f32 %v2568, 1.442695
    %v2591 = vpow.pop %v2590
    %v2592 = vmul.f32 %v2569, 1.442695
    %v2593 = vpow.pop %v2592
    %v2594 = vmul.f32 %v2570, 1.442695
    %v2595 = vpow.pop %v2594
    %v2596 = vmul.f32 %v2571, 1.442695
    %v2597 = vpow.pop %v2596
    %v2598 = vmul.f32 %v2572, 1.442695
    %v2599 = vpow.pop %v2598
    %v2600 = vmul.f32 %v2573, 1.442695
    %v2601 = vpow.pop %v2600
    %v2602 = vmul.f32 %v2574, 1.442695
    %v2603 = vpow.pop %v2602
    %v2604 = vmul.f32 %v2575, 1.442695
    %v2605 = vpow.pop %v2604
    %v2606 = vmul.f32 %v2576, 1.442695
    %v2607 = vpow.pop %v2606
    %v2608 = vmul.f32 %v2577, 1.442695
    %v2609 = vpow.pop %v2608
    %v2610 = vadd.f32 %v2579, 1.0
    %v2611 = vadd.f32 %v2581, 1.0
    %v2612 = vadd.f32 %v2583, 1.0
    %v2613 = vadd.f32 %v2585, 1.0
    %v2614 = vadd.f32 %v2587, 1.0
    %v2615 = vadd.f32 %v2589, 1.0
    %v2616 = vadd.f32 %v2591, 1.0
    %v2617 = vadd.f32 %v2593, 1.0
    %v2618 = vadd.f32 %v2595, 1.0
    %v2619 = vadd.f32 %v2597, 1.0
    %v2620 = vadd.f32 %v2599, 1.0
    %v2621 = vadd.f32 %v2601, 1.0
    %v2622 = vadd.f32 %v2603, 1.0
    %v2623 = vadd.f32 %v2605, 1.0
    %v2624 = vadd.f32 %v2607, 1.0
    %v2625 = vadd.f32 %v2609, 1.0
    %v2626 = vrcp.pop %v2610
    %v2627 = vmul.f32 1.0, %v2626
    %v2628 = vrcp.pop %v2611
    %v2629 = vmul.f32 1.0, %v2628
    %v2630 = vrcp.pop %v2612
    %v2631 = vmul.f32 1.0, %v2630
    %v2632 = vrcp.pop %v2613
    %v2633 = vmul.f32 1.0, %v2632
    %v2634 = vrcp.pop %v2614
    %v2635 = vmul.f32 1.0, %v2634
    %v2636 = vrcp.pop %v2615
    %v2637 = vmul.f32 1.0, %v2636
    %v2638 = vrcp.pop %v2616
    %v2639 = vmul.f32 1.0, %v2638
    %v2640 = vrcp.pop %v2617
    %v2641 = vmul.f32 1.0, %v2640
    %v2642 = vrcp.pop %v2618
    %v2643 = vmul.f32 1.0, %v2642
    %v2644 = vrcp.pop %v2619
    %v2645 = vmul.f32 1.0, %v2644
    %v2646 = vrcp.pop %v2620
    %v2647 = vmul.f32 1.0, %v2646
    %v2648 = vrcp.pop %v2621
    %v2649 = vmul.f32 1.0, %v2648
    %v2650 = vrcp.pop %v2622
    %v2651 = vmul.f32 1.0, %v2650
    %v2652 = vrcp.pop %v2623
    %v2653 = vmul.f32 1.0, %v2652
    %v2654 = vrcp.pop %v2624
    %v2655 = vmul.f32 1.0, %v2654
    %v2656 = vrcp.pop %v2625
    %v2657 = vmul.f32 1.0, %v2656
    %2674 = vset.pattern.permute.xlu0 0
    %2675 = vperm.xlu0 %2674, %v2627
    %v2676 = vpop.permute.xlu0 %2675
    %2677 = vset.pattern.permute.xlu0 0
    %2678 = vperm.xlu0 %2677, %v2629
    %v2679 = vpop.permute.xlu0 %2678
    %2680 = vset.pattern.permute.xlu0 0
    %2681 = vperm.xlu0 %2680, %v2631
    %v2682 = vpop.permute.xlu0 %2681
    %2683 = vset.pattern.permute.xlu0 0
    %2684 = vperm.xlu0 %2683, %v2633
    %v2685 = vpop.permute.xlu0 %2684
    %2686 = vset.pattern.permute.xlu0 0
    %2687 = vperm.xlu0 %2686, %v2635
    %v2688 = vpop.permute.xlu0 %2687
    %2689 = vset.pattern.permute.xlu0 0
    %2690 = vperm.xlu0 %2689, %v2637
    %v2691 = vpop.permute.xlu0 %2690
    %2692 = vset.pattern.permute.xlu0 0
    %2693 = vperm.xlu0 %2692, %v2639
    %v2694 = vpop.permute.xlu0 %2693
    %2695 = vset.pattern.permute.xlu0 0
    %2696 = vperm.xlu0 %2695, %v2641
    %v2697 = vpop.permute.xlu0 %2696
    %2698 = vset.pattern.permute.xlu0 0
    %2699 = vperm.xlu0 %2698, %v2643
    %v2700 = vpop.permute.xlu0 %2699
    %2701 = vset.pattern.permute.xlu0 0
    %2702 = vperm.xlu0 %2701, %v2645
    %v2703 = vpop.permute.xlu0 %2702
    %2704 = vset.pattern.permute.xlu0 0
    %2705 = vperm.xlu0 %2704, %v2647
    %v2706 = vpop.permute.xlu0 %2705
    %2707 = vset.pattern.permute.xlu0 0
    %2708 = vperm.xlu0 %2707, %v2649
    %v2709 = vpop.permute.xlu0 %2708
    %2710 = vset.pattern.permute.xlu0 0
    %2711 = vperm.xlu0 %2710, %v2651
    %v2712 = vpop.permute.xlu0 %2711
    %2713 = vset.pattern.permute.xlu0 0
    %2714 = vperm.xlu0 %2713, %v2653
    %v2715 = vpop.permute.xlu0 %2714
    %2716 = vset.pattern.permute.xlu0 0
    %2717 = vperm.xlu0 %2716, %v2655
    %v2718 = vpop.permute.xlu0 %2717
    %2719 = vset.pattern.permute.xlu0 0
    %2720 = vperm.xlu0 %2719, %v2657
    %v2721 = vpop.permute.xlu0 %2720
    %v2722 = vlaneseq
    %v2723 = vshrl.u32 %v2722, 7
    %v2724 = vsub.s32 %v648, %v2723
    %v2725 = vrot.slane %v2676, %v2724
    %v2726 = vlaneseq
    %v2727 = vshrl.u32 %v2726, 7
    %v2728 = vsub.s32 %v653, %v2727
    %v2729 = vrot.slane %v2679, %v2728
    %v2730 = vsel %vm658, %v2729, %v2725
    %v2731 = vlaneseq
    %v2732 = vshrl.u32 %v2731, 7
    %v2733 = vsub.s32 %v660, %v2732
    %v2734 = vrot.slane %v2682, %v2733
    %v2735 = vsel %vm665, %v2734, %v2730
    %v2736 = vlaneseq
    %v2737 = vshrl.u32 %v2736, 7
    %v2738 = vsub.s32 %v667, %v2737
    %v2739 = vrot.slane %v2685, %v2738
    %v2740 = vsel %vm672, %v2739, %v2735
    %v2741 = vlaneseq
    %v2742 = vshrl.u32 %v2741, 7
    %v2743 = vsub.s32 %v674, %v2742
    %v2744 = vrot.slane %v2688, %v2743
    %v2745 = vsel %vm679, %v2744, %v2740
    %v2746 = vlaneseq
    %v2747 = vshrl.u32 %v2746, 7
    %v2748 = vsub.s32 %v681, %v2747
    %v2749 = vrot.slane %v2691, %v2748
    %v2750 = vsel %vm686, %v2749, %v2745
    %v2751 = vlaneseq
    %v2752 = vshrl.u32 %v2751, 7
    %v2753 = vsub.s32 %v688, %v2752
    %v2754 = vrot.slane %v2694, %v2753
    %v2755 = vsel %vm693, %v2754, %v2750
    %v2756 = vlaneseq
    %v2757 = vshrl.u32 %v2756, 7
    %v2758 = vsub.s32 %v695, %v2757
    %v2759 = vrot.slane %v2697, %v2758
    %v2760 = vsel %vm700, %v2759, %v2755
    %v2761 = vlaneseq
    %v2762 = vshrl.u32 %v2761, 7
    %v2763 = vsub.s32 %v702, %v2762
    %v2764 = vrot.slane %v2700, %v2763
    %v2765 = vsel %vm707, %v2764, %v2760
    %v2766 = vlaneseq
    %v2767 = vshrl.u32 %v2766, 7
    %v2768 = vsub.s32 %v709, %v2767
    %v2769 = vrot.slane %v2703, %v2768
    %v2770 = vsel %vm714, %v2769, %v2765
    %v2771 = vlaneseq
    %v2772 = vshrl.u32 %v2771, 7
    %v2773 = vsub.s32 %v716, %v2772
    %v2774 = vrot.slane %v2706, %v2773
    %v2775 = vsel %vm721, %v2774, %v2770
    %v2776 = vlaneseq
    %v2777 = vshrl.u32 %v2776, 7
    %v2778 = vsub.s32 %v723, %v2777
    %v2779 = vrot.slane %v2709, %v2778
    %v2780 = vsel %vm728, %v2779, %v2775
    %v2781 = vlaneseq
    %v2782 = vshrl.u32 %v2781, 7
    %v2783 = vsub.s32 %v730, %v2782
    %v2784 = vrot.slane %v2712, %v2783
    %v2785 = vsel %vm735, %v2784, %v2780
    %v2786 = vlaneseq
    %v2787 = vshrl.u32 %v2786, 7
    %v2788 = vsub.s32 %v737, %v2787
    %v2789 = vrot.slane %v2715, %v2788
    %v2790 = vsel %vm742, %v2789, %v2785
    %v2791 = vlaneseq
    %v2792 = vshrl.u32 %v2791, 7
    %v2793 = vsub.s32 %v744, %v2792
    %v2794 = vrot.slane %v2718, %v2793
    %v2795 = vsel %vm749, %v2794, %v2790
    %v2796 = vlaneseq
    %v2797 = vshrl.u32 %v2796, 7
    %v2798 = vsub.s32 %v751, %v2797
    %v2799 = vrot.slane %v2721, %v2798
    %v2800 = vsel %vm756, %v2799, %v2795
    %2802 = vst [vmem:[#allocation10 + $0x3] sm:$0x1] %v2800
    %s2803 = sld [smem:[#allocation2 + $0x3]]
    %v2804 = vstv %s2803
    %v2805 = vmul.f32 %v2804, %v2627
    %v2806 = vmul.f32 %v2804, %v2629
    %v2807 = vmul.f32 %v2804, %v2631
    %v2808 = vmul.f32 %v2804, %v2633
    %v2809 = vmul.f32 %v2804, %v2635
    %v2810 = vmul.f32 %v2804, %v2637
    %v2811 = vmul.f32 %v2804, %v2639
    %v2812 = vmul.f32 %v2804, %v2641
    %v2813 = vmul.f32 %v2804, %v2643
    %v2814 = vmul.f32 %v2804, %v2645
    %v2815 = vmul.f32 %v2804, %v2647
    %v2816 = vmul.f32 %v2804, %v2649
    %v2817 = vmul.f32 %v2804, %v2651
    %v2818 = vmul.f32 %v2804, %v2653
    %v2819 = vmul.f32 %v2804, %v2655
    %v2820 = vmul.f32 %v2804, %v2657
    %v2821 = vadd.f32 %v2140, %v2805
    %v2822 = vadd.f32 %v2141, %v2806
    %v2823 = vadd.f32 %v2142, %v2807
    %v2824 = vadd.f32 %v2143, %v2808
    %v2825 = vadd.f32 %v2144, %v2809
    %v2826 = vadd.f32 %v2145, %v2810
    %v2827 = vadd.f32 %v2146, %v2811
    %v2828 = vadd.f32 %v2147, %v2812
    %v2829 = vadd.f32 %v2148, %v2813
    %v2830 = vadd.f32 %v2149, %v2814
    %v2831 = vadd.f32 %v2150, %v2815
    %v2832 = vadd.f32 %v2151, %v2816
    %v2833 = vadd.f32 %v2152, %v2817
    %v2834 = vadd.f32 %v2153, %v2818
    %v2835 = vadd.f32 %v2154, %v2819
    %v2836 = vadd.f32 %v2155, %v2820
    %v2837 = vmax.f32 %v2821, 0.0
    %v2838 = vmax.f32 %v2822, 0.0
    %v2839 = vmax.f32 %v2823, 0.0
    %v2840 = vmax.f32 %v2824, 0.0
    %v2841 = vmax.f32 %v2825, 0.0
    %v2842 = vmax.f32 %v2826, 0.0
    %v2843 = vmax.f32 %v2827, 0.0
    %v2844 = vmax.f32 %v2828, 0.0
    %v2845 = vmax.f32 %v2829, 0.0
    %v2846 = vmax.f32 %v2830, 0.0
    %v2847 = vmax.f32 %v2831, 0.0
    %v2848 = vmax.f32 %v2832, 0.0
    %v2849 = vmax.f32 %v2833, 0.0
    %v2850 = vmax.f32 %v2834, 0.0
    %v2851 = vmax.f32 %v2835, 0.0
    %v2852 = vmax.f32 %v2836, 0.0
    %v2853 = vmin.f32 %v2837, 1.0
    %v2854 = vmin.f32 %v2838, 1.0
    %v2855 = vmin.f32 %v2839, 1.0
    %v2856 = vmin.f32 %v2840, 1.0
    %v2857 = vmin.f32 %v2841, 1.0
    %v2858 = vmin.f32 %v2842, 1.0
    %v2859 = vmin.f32 %v2843, 1.0
    %v2860 = vmin.f32 %v2844, 1.0
    %v2861 = vmin.f32 %v2845, 1.0
    %v2862 = vmin.f32 %v2846, 1.0
    %v2863 = vmin.f32 %v2847, 1.0
    %v2864 = vmin.f32 %v2848, 1.0
    %v2865 = vmin.f32 %v2849, 1.0
    %v2866 = vmin.f32 %v2850, 1.0
    %v2867 = vmin.f32 %v2851, 1.0
    %v2868 = vmin.f32 %v2852, 1.0
    %2885 = vset.pattern.permute.xlu0 0
    %2886 = vperm.xlu0 %2885, %v2853
    %v2887 = vpop.permute.xlu0 %2886
    %2888 = vset.pattern.permute.xlu0 0
    %2889 = vperm.xlu0 %2888, %v2854
    %v2890 = vpop.permute.xlu0 %2889
    %2891 = vset.pattern.permute.xlu0 0
    %2892 = vperm.xlu0 %2891, %v2855
    %v2893 = vpop.permute.xlu0 %2892
    %2894 = vset.pattern.permute.xlu0 0
    %2895 = vperm.xlu0 %2894, %v2856
    %v2896 = vpop.permute.xlu0 %2895
    %2897 = vset.pattern.permute.xlu0 0
    %2898 = vperm.xlu0 %2897, %v2857
    %v2899 = vpop.permute.xlu0 %2898
    %2900 = vset.pattern.permute.xlu0 0
    %2901 = vperm.xlu0 %2900, %v2858
    %v2902 = vpop.permute.xlu0 %2901
    %2903 = vset.pattern.permute.xlu0 0
    %2904 = vperm.xlu0 %2903, %v2859
    %v2905 = vpop.permute.xlu0 %2904
    %2906 = vset.pattern.permute.xlu0 0
    %2907 = vperm.xlu0 %2906, %v2860
    %v2908 = vpop.permute.xlu0 %2907
    %2909 = vset.pattern.permute.xlu0 0
    %2910 = vperm.xlu0 %2909, %v2861
    %v2911 = vpop.permute.xlu0 %2910
    %2912 = vset.pattern.permute.xlu0 0
    %2913 = vperm.xlu0 %2912, %v2862
    %v2914 = vpop.permute.xlu0 %2913
    %2915 = vset.pattern.permute.xlu0 0
    %2916 = vperm.xlu0 %2915, %v2863
    %v2917 = vpop.permute.xlu0 %2916
    %2918 = vset.pattern.permute.xlu0 0
    %2919 = vperm.xlu0 %2918, %v2864
    %v2920 = vpop.permute.xlu0 %2919
    %2921 = vset.pattern.permute.xlu0 0
    %2922 = vperm.xlu0 %2921, %v2865
    %v2923 = vpop.permute.xlu0 %2922
    %2924 = vset.pattern.permute.xlu0 0
    %2925 = vperm.xlu0 %2924, %v2866
    %v2926 = vpop.permute.xlu0 %2925
    %2927 = vset.pattern.permute.xlu0 0
    %2928 = vperm.xlu0 %2927, %v2867
    %v2929 = vpop.permute.xlu0 %2928
    %2930 = vset.pattern.permute.xlu0 0
    %2931 = vperm.xlu0 %2930, %v2868
    %v2932 = vpop.permute.xlu0 %2931
    %v2933 = vlaneseq
    %v2934 = vshrl.u32 %v2933, 7
    %v2935 = vsub.s32 %v648, %v2934
    %v2936 = vrot.slane %v2887, %v2935
    %v2937 = vlaneseq
    %v2938 = vshrl.u32 %v2937, 7
    %v2939 = vsub.s32 %v653, %v2938
    %v2940 = vrot.slane %v2890, %v2939
    %v2941 = vsel %vm658, %v2940, %v2936
    %v2942 = vlaneseq
    %v2943 = vshrl.u32 %v2942, 7
    %v2944 = vsub.s32 %v660, %v2943
    %v2945 = vrot.slane %v2893, %v2944
    %v2946 = vsel %vm665, %v2945, %v2941
    %v2947 = vlaneseq
    %v2948 = vshrl.u32 %v2947, 7
    %v2949 = vsub.s32 %v667, %v2948
    %v2950 = vrot.slane %v2896, %v2949
    %v2951 = vsel %vm672, %v2950, %v2946
    %v2952 = vlaneseq
    %v2953 = vshrl.u32 %v2952, 7
    %v2954 = vsub.s32 %v674, %v2953
    %v2955 = vrot.slane %v2899, %v2954
    %v2956 = vsel %vm679, %v2955, %v2951
    %v2957 = vlaneseq
    %v2958 = vshrl.u32 %v2957, 7
    %v2959 = vsub.s32 %v681, %v2958
    %v2960 = vrot.slane %v2902, %v2959
    %v2961 = vsel %vm686, %v2960, %v2956
    %v2962 = vlaneseq
    %v2963 = vshrl.u32 %v2962, 7
    %v2964 = vsub.s32 %v688, %v2963
    %v2965 = vrot.slane %v2905, %v2964
    %v2966 = vsel %vm693, %v2965, %v2961
    %v2967 = vlaneseq
    %v2968 = vshrl.u32 %v2967, 7
    %v2969 = vsub.s32 %v695, %v2968
    %v2970 = vrot.slane %v2908, %v2969
    %v2971 = vsel %vm700, %v2970, %v2966
    %v2972 = vlaneseq
    %v2973 = vshrl.u32 %v2972, 7
    %v2974 = vsub.s32 %v702, %v2973
    %v2975 = vrot.slane %v2911, %v2974
    %v2976 = vsel %vm707, %v2975, %v2971
    %v2977 = vlaneseq
    %v2978 = vshrl.u32 %v2977, 7
    %v2979 = vsub.s32 %v709, %v2978
    %v2980 = vrot.slane %v2914, %v2979
    %v2981 = vsel %vm714, %v2980, %v2976
    %v2982 = vlaneseq
    %v2983 = vshrl.u32 %v2982, 7
    %v2984 = vsub.s32 %v716, %v2983
    %v2985 = vrot.slane %v2917, %v2984
    %v2986 = vsel %vm721, %v2985, %v2981
    %v2987 = vlaneseq
    %v2988 = vshrl.u32 %v2987, 7
    %v2989 = vsub.s32 %v723, %v2988
    %v2990 = vrot.slane %v2920, %v2989
    %v2991 = vsel %vm728, %v2990, %v2986
    %v2992 = vlaneseq
    %v2993 = vshrl.u32 %v2992, 7
    %v2994 = vsub.s32 %v730, %v2993
    %v2995 = vrot.slane %v2923, %v2994
    %v2996 = vsel %vm735, %v2995, %v2991
    %v2997 = vlaneseq
    %v2998 = vshrl.u32 %v2997, 7
    %v2999 = vsub.s32 %v737, %v2998
    %v3000 = vrot.slane %v2926, %v2999
    %v3001 = vsel %vm742, %v3000, %v2996
    %v3002 = vlaneseq
    %v3003 = vshrl.u32 %v3002, 7
    %v3004 = vsub.s32 %v744, %v3003
    %v3005 = vrot.slane %v2929, %v3004
    %v3006 = vsel %vm749, %v3005, %v3001
    %v3007 = vlaneseq
    %v3008 = vshrl.u32 %v3007, 7
    %v3009 = vsub.s32 %v751, %v3008
    %v3010 = vrot.slane %v2932, %v3009
    %v3011 = vsel %vm756, %v3010, %v3006
    %3013 = vst [vmem:[#allocation11] sm:$0x1] %v3011
    // Predicated region
    $region50: #{tpu_custom_call.1} parent=1 // pred_check
      _
    $region51: #{tpu_custom_call.1} parent=1 // pred_check_branch
      %3015 = sbr.rel (0) target = $region53
    $region52: #{tpu_custom_call.1} parent=1 // pred_region
      %s3017 = ssub.s32 64, 64
      %3018 = vsyncadd [#allocation4], %s3017
      %s3020 = sshll.u32 [#allocation10], 4
      %s3021 = int_to_ptr.vmem [resolvable:$true] %s3020
      %3023 = dma.vmem_to_hbm [thread:$0]  %s3021, 64, %s8, [#allocation4]
    $region53: #{tpu_custom_call.1} parent=1 // pred_fallthru
      _
    // Predicated region
    $region54: #{tpu_custom_call.1} parent=1 // pred_check
      _
    $region55: #{tpu_custom_call.1} parent=1 // pred_check_branch
      %3025 = sbr.rel (0) target = $region57
    $region56: #{tpu_custom_call.1} parent=1 // pred_region
      %s3027 = ssub.s32 16, 16
      %3028 = vsyncadd [#allocation12], %s3027
      %s3030 = sshll.u32 [#allocation11], 4
      %s3031 = int_to_ptr.vmem [resolvable:$true] %s3030
      %3033 = dma.vmem_to_hbm [thread:$0]  %s3031, 16, %s9, [#allocation12]
    $region57: #{tpu_custom_call.1} parent=1 // pred_fallthru
      _
    // Predicated region
    $region58: #{tpu_custom_call.1} parent=1 // pred_check
      _
    $region59: #{tpu_custom_call.1} parent=1 // pred_check_branch
      %3035 = sbr.rel (0) target = $region61
    $region60: #{tpu_custom_call.1} parent=1 // pred_region
      %3036 = dma.done [#allocation4], 64
    $region61: #{tpu_custom_call.1} parent=1 // pred_fallthru
      _
    // Predicated region
    $region62: #{tpu_custom_call.1} parent=1 // pred_check
      _
    $region63: #{tpu_custom_call.1} parent=1 // pred_check_branch
      %3038 = sbr.rel (0) target = $region65
    $region64: #{tpu_custom_call.1} parent=1 // pred_region
      %3039 = dma.done [#allocation12], 16
    $region65: #{tpu_custom_call.1} parent=1 // pred_fallthru
      _
    %3040 = vsyncpa [#allocation3], 1
    %3041 = vsyncpa [#allocation8], 1
    %3042 = vsyncpa [#allocation4], 1
    %3043 = vsyncpa [#allocation12], 1
    %3044 = vsyncpa [#allocation5], 1

</llo_original>
